<compile_context>
chip_gen: v7x
topology: tpu7x:2x2x1
jax: 0.10.0
libtpu: 0.0.40
codegen_flags: <defaults>
</compile_context>

<pallas_src>
import jax
import jax.numpy as jnp
import numpy as np
from jax.experimental import pallas as pl
from jax.experimental.pallas import tpu as pltpu

# ----------------------------- model dims (small) ----------------------------
B = 2            # batch
L = 16           # seq len
E = 32           # emb_size
H = 32           # h_size
H2 = 2 * H       # bidirectional hidden (=64)
G = 4 * H        # gates per direction (=128)
NL = 17          # num_label
NL_PAD = 128     # lane-dense padded output width
V = 50           # vocab (emb table has V+1 rows, row 0 = padding)


# --------------------------------- kernel ------------------------------------
def bilstm_atten_kernel(x_ref, wx_ref, bx_ref, whf_ref, whb_ref,
                        womega_ref, uomega_ref, wfc_ref, bfc_ref,
                        out_ref, xp_ref, o_ref):
    # x_ref: (L*B, E) time-major embedded input (row = t*B + b)
    # 1) fused input projection for BOTH directions (biases folded in):
    #    (L*B, E) @ (E, 8H) -> (L*B, 8H);  cols [0:4H] fwd gates, [4H:8H] bwd
    xp_ref[...] = (jnp.dot(x_ref[...], wx_ref[...],
                           preferred_element_type=jnp.float32) + bx_ref[...])

    whf = whf_ref[...]          # (H, 4H) recurrent weights, forward
    whb = whb_ref[...]          # (H, 4H) recurrent weights, backward

    def cell(gates, c):
        # PyTorch LSTM gate order: i, f, g, o
        i = jax.nn.sigmoid(gates[:, 0:H])
        f = jax.nn.sigmoid(gates[:, H:2 * H])
        g = jnp.tanh(gates[:, 2 * H:3 * H])
        o = jax.nn.sigmoid(gates[:, 3 * H:4 * H])
        c_new = f * c + i * g
        h_new = o * jnp.tanh(c_new)
        return h_new, c_new

    h_f = jnp.zeros((B, H), jnp.float32)
    c_f = jnp.zeros((B, H), jnp.float32)
    h_b = jnp.zeros((B, H), jnp.float32)
    c_b = jnp.zeros((B, H), jnp.float32)

    # 2) recurrence (inherently sequential): unrolled, forward step s and
    #    backward step L-1-s handled together; LSTM outputs are written
    #    batch-major (row = b*L + t) into o_ref so attention needs no relayout.
    for s in range(L):
        tf, tb = s, L - 1 - s
        gates_f = xp_ref[tf * B:(tf + 1) * B, 0:G] + jnp.dot(
            h_f, whf, preferred_element_type=jnp.float32)
        h_f, c_f = cell(gates_f, c_f)
        gates_b = xp_ref[tb * B:(tb + 1) * B, G:2 * G] + jnp.dot(
            h_b, whb, preferred_element_type=jnp.float32)
        h_b, c_b = cell(gates_b, c_b)
        for b in range(B):
            o_ref[b * L + tf: b * L + tf + 1, 0:H] = h_f[b:b + 1, :]
            o_ref[b * L + tb: b * L + tb + 1, H:H2] = h_b[b:b + 1, :]

    # 3) attention over the LSTM outputs (batch-major (B*L, 2H))
    out_all = o_ref[...]
    u = jnp.tanh(jnp.dot(out_all, womega_ref[...],
                         preferred_element_type=jnp.float32))       # (B*L, 2H)
    # att = u @ u_omega as a lane-reduce (avoids a 1-column MXU push)
    att = jnp.sum(u * uomega_ref[...], axis=-1, keepdims=True)      # (B*L, 1)

    ctx_rows = []
    for b in range(B):
        att_b = att[b * L:(b + 1) * L, :]                           # (L, 1)
        m = jnp.max(att_b, axis=0, keepdims=True)
        e = jnp.exp(att_b - m)
        denom = jnp.sum(e, axis=0, keepdims=True)
        score = e / denom                                           # (L, 1)
        o_b = out_all[b * L:(b + 1) * L, :]                         # (L, 2H)
        ctx_rows.append(jnp.sum(o_b * score, axis=0, keepdims=True))
    context = jnp.concatenate(ctx_rows, axis=0)                     # (B, 2H)

    # 4) classifier head: single matmul into a lane-dense 128-wide slab
    logits = jnp.dot(context, wfc_ref[...],
                     preferred_element_type=jnp.float32) + bfc_ref[...]
    out_ref[...] = jax.nn.sigmoid(logits).astype(out_ref.dtype)


# --------------------------------- wrapper ------------------------------------
@jax.jit
def bilstm_atten_forward(embedded, w_ih_f, w_hh_f, b_ih_f, b_hh_f,
                         w_ih_b, w_hh_b, b_ih_b, b_hh_b,
                         w_omega, u_omega, w_fc, b_fc):
    # Layout / weight prep (one-time glue; would be hoisted in a real model).
    x_tm = jnp.transpose(embedded, (1, 0, 2)).reshape(L * B, E)        # time-major
    wx = jnp.concatenate([w_ih_f.T, w_ih_b.T], axis=1)                 # (E, 8H)
    bx = jnp.concatenate([b_ih_f + b_hh_f, b_ih_b + b_hh_b])[None, :]  # (1, 8H)
    whf = w_hh_f.T                                                     # (H, 4H)
    whb = w_hh_b.T                                                     # (H, 4H)
    uomega_row = u_omega.T                                             # (1, 2H)
    wfc_pad = jnp.zeros((H2, NL_PAD), jnp.float32).at[:, :NL].set(w_fc.T)
    bfc_pad = jnp.zeros((1, NL_PAD), jnp.float32).at[:, :NL].set(b_fc[None, :])

    vmem = pl.BlockSpec(memory_space=pltpu.MemorySpace.VMEM)
    out_pad = pl.pallas_call(
        bilstm_atten_kernel,
        out_shape=jax.ShapeDtypeStruct((B, NL_PAD), jnp.float32),
        in_specs=[vmem] * 9,
        out_specs=vmem,
        scratch_shapes=[
            pltpu.VMEM((L * B, 2 * G), jnp.float32),   # fused input projections
            pltpu.VMEM((B * L, H2), jnp.float32),      # LSTM outputs, batch-major
        ],
    )(x_tm, wx, bx, whf, whb, w_omega, uomega_row, wfc_pad, bfc_pad)
    return out_pad[:, :NL]


# ------------------------------ pure-JAX reference ----------------------------
def ref_forward(tokens, emb_tab, w_ih_f, w_hh_f, b_ih_f, b_hh_f,
                w_ih_b, w_hh_b, b_ih_b, b_hh_b, w_omega, u_omega, w_fc, b_fc):
    x = emb_tab[tokens]                                   # (B, L, E)

    def run(w_ih, w_hh, b_ih, b_hh, reverse):
        xs = jnp.swapaxes(x, 0, 1)                        # (L, B, E)
        if reverse:
            xs = xs[::-1]

        def step(carry, xt):
            h, c = carry
            gates = xt @ w_ih.T + b_ih + h @ w_hh.T + b_hh
            i = jax.nn.sigmoid(gates[:, 0:H])
            f = jax.nn.sigmoid(gates[:, H:2 * H])
            g = jnp.tanh(gates[:, 2 * H:3 * H])
            o = jax.nn.sigmoid(gates[:, 3 * H:4 * H])
            c = f * c + i * g
            h = o * jnp.tanh(c)
            return (h, c), h

        init = (jnp.zeros((B, H), jnp.float32), jnp.zeros((B, H), jnp.float32))
        _, hs = jax.lax.scan(step, init, xs)
        if reverse:
            hs = hs[::-1]
        return jnp.swapaxes(hs, 0, 1)                     # (B, L, H)

    out_f = run(w_ih_f, w_hh_f, b_ih_f, b_hh_f, False)
    out_b = run(w_ih_b, w_hh_b, b_ih_b, b_hh_b, True)
    output = jnp.concatenate([out_f, out_b], axis=-1)     # (B, L, 2H)

    u = jnp.tanh(output @ w_omega)
    att = u @ u_omega                                     # (B, L, 1)
    score = jax.nn.softmax(att, axis=1)
    context = jnp.sum(output * score, axis=1)             # (B, 2H)
    return jax.nn.sigmoid(context @ w_fc.T + b_fc)


# ----------------------------------- main -------------------------------------
if __name__ == "__main__":
    key = jax.random.PRNGKey(0)
    ks = jax.random.split(key, 16)

    emb_tab = jax.random.normal(ks[0], (V + 1, E), jnp.float32) * 0.1
    emb_tab = emb_tab.at[0].set(0.0)                       # padding_idx=0
    tokens = jax.random.randint(ks[1], (B, L), 1, V + 1, dtype=jnp.int32)

    sc = 0.1
    w_ih_f = jax.random.normal(ks[2], (G, E), jnp.float32) * sc
    w_hh_f = jax.random.normal(ks[3], (G, H), jnp.float32) * sc
    b_ih_f = jax.random.normal(ks[4], (G,), jnp.float32) * sc
    b_hh_f = jax.random.normal(ks[5], (G,), jnp.float32) * sc
    w_ih_b = jax.random.normal(ks[6], (G, E), jnp.float32) * sc
    w_hh_b = jax.random.normal(ks[7], (G, H), jnp.float32) * sc
    b_ih_b = jax.random.normal(ks[8], (G,), jnp.float32) * sc
    b_hh_b = jax.random.normal(ks[9], (G,), jnp.float32) * sc
    w_omega = jax.random.uniform(ks[10], (H2, H2), jnp.float32, -0.1, 0.1)
    u_omega = jax.random.uniform(ks[11], (H2, 1), jnp.float32, -0.1, 0.1)
    w_fc = jax.random.normal(ks[12], (NL, H2), jnp.float32) * sc
    b_fc = jax.random.normal(ks[13], (NL,), jnp.float32) * sc

    # Embedding lookup (gather) as plain-JAX glue; dropout p=0.0 is a no-op.
    # TODO(synk): in-kernel embedding gather (scalar-prefetch token ids) skipped.
    embedded = emb_tab[tokens]                             # (B, L, E)

    out = bilstm_atten_forward(embedded, w_ih_f, w_hh_f, b_ih_f, b_hh_f,
                               w_ih_b, w_hh_b, b_ih_b, b_hh_b,
                               w_omega, u_omega, w_fc, b_fc)
    out = jax.block_until_ready(out)

    ref = ref_forward(tokens, emb_tab, w_ih_f, w_hh_f, b_ih_f, b_hh_f,
                      w_ih_b, w_hh_b, b_ih_b, b_hh_b,
                      w_omega, u_omega, w_fc, b_fc)
    np.testing.assert_allclose(np.asarray(out), np.asarray(ref),
                               rtol=1e-4, atol=1e-4)

    assert out.shape == (B, NL)
    print("KERNEL_OK")
</pallas_src>

<mosaic_0001>
module attributes {stable_mosaic.version = 11 : i64} {
  func.func @bilstm_atten_kernel(%arg0: memref<32x32xf32, #tpu.memory_space<vmem>>, %arg1: memref<32x256xf32, #tpu.memory_space<vmem>>, %arg2: memref<1x256xf32, #tpu.memory_space<vmem>>, %arg3: memref<32x128xf32, #tpu.memory_space<vmem>>, %arg4: memref<32x128xf32, #tpu.memory_space<vmem>>, %arg5: memref<64x64xf32, #tpu.memory_space<vmem>>, %arg6: memref<1x64xf32, #tpu.memory_space<vmem>>, %arg7: memref<64x128xf32, #tpu.memory_space<vmem>>, %arg8: memref<1x128xf32, #tpu.memory_space<vmem>>, %arg9: memref<2x128xf32, #tpu.memory_space<vmem>>, %arg10: memref<32x256xf32, #tpu.memory_space<vmem>>, %arg11: memref<32x64xf32, #tpu.memory_space<vmem>>) attributes {dimension_semantics = [], scalar_prefetch = 0 : i64, scratch_operands = 2 : i64, tpu.core_type = #tpu.core_type<tc>} {
    %c0 = arith.constant 0 : index
    %c0_0 = arith.constant 0 : index
    %0 = vector.load %arg0[%c0, %c0_0] : memref<32x32xf32, #tpu.memory_space<vmem>>, vector<32x32xf32>
    %c0_1 = arith.constant 0 : index
    %c0_2 = arith.constant 0 : index
    %1 = vector.load %arg1[%c0_1, %c0_2] : memref<32x256xf32, #tpu.memory_space<vmem>>, vector<32x256xf32>
    %cst = arith.constant dense<0.000000e+00> : vector<32x256xf32>
    %2 = tpu.matmul %0, %1, %cst {dimension_numbers = #tpu.dot_dimension_numbers<[1], [0], [0], [1], [0, 0, 1, 1], [], []>} : vector<32x32xf32>, vector<32x256xf32>, vector<32x256xf32> -> vector<32x256xf32>
    %c0_3 = arith.constant 0 : index
    %c0_4 = arith.constant 0 : index
    %3 = vector.load %arg2[%c0_3, %c0_4] : memref<1x256xf32, #tpu.memory_space<vmem>>, vector<1x256xf32>
    %4 = vector.broadcast %3 : vector<1x256xf32> to vector<32x256xf32>
    %5 = arith.addf %2, %4 : vector<32x256xf32>
    %c0_5 = arith.constant 0 : index
    %c0_6 = arith.constant 0 : index
    %6 = vector.load %arg10[%c0_5, %c0_6] : memref<32x256xf32, #tpu.memory_space<vmem>>, vector<32x256xf32>
    tpu.vector_store %arg10[%c0_5, %c0_6], %5 {strides = array<i32>} : memref<32x256xf32, #tpu.memory_space<vmem>>, vector<32x256xf32>,
    %c0_7 = arith.constant 0 : index
    %c0_8 = arith.constant 0 : index
    %7 = vector.load %arg3[%c0_7, %c0_8] : memref<32x128xf32, #tpu.memory_space<vmem>>, vector<32x128xf32>
    %c0_9 = arith.constant 0 : index
    %c0_10 = arith.constant 0 : index
    %8 = vector.load %arg4[%c0_9, %c0_10] : memref<32x128xf32, #tpu.memory_space<vmem>>, vector<32x128xf32>
    %cst_11 = arith.constant 0.000000e+00 : f32
    %9 = vector.broadcast %cst_11 : f32 to vector<2x32xf32>
    %cst_12 = arith.constant 0.000000e+00 : f32
    %10 = vector.broadcast %cst_12 : f32 to vector<2x32xf32>
    %cst_13 = arith.constant 0.000000e+00 : f32
    %11 = vector.broadcast %cst_13 : f32 to vector<2x32xf32>
    %cst_14 = arith.constant 0.000000e+00 : f32
    %12 = vector.broadcast %cst_14 : f32 to vector<2x32xf32>
    %c0_15 = arith.constant 0 : index
    %c0_16 = arith.constant 0 : index
    %13 = vector.load %arg10[%c0_15, %c0_16] : memref<32x256xf32, #tpu.memory_space<vmem>>, vector<2x128xf32>
    %cst_17 = arith.constant dense<0.000000e+00> : vector<2x128xf32>
    %14 = tpu.matmul %9, %7, %cst_17 {dimension_numbers = #tpu.dot_dimension_numbers<[1], [0], [0], [1], [0, 0, 1, 1], [], []>} : vector<2x32xf32>, vector<32x128xf32>, vector<2x128xf32> -> vector<2x128xf32>
    %15 = arith.addf %13, %14 : vector<2x128xf32>
    %16 = vector.extract_strided_slice %15 {offsets = [0, 0], sizes = [2, 32], strides = [1, 1]} : vector<2x128xf32> to vector<2x32xf32>
    %17 = arith.negf %16 : vector<2x32xf32>
    %18 = math.exp %17 : vector<2x32xf32>
    %cst_18 = arith.constant 1.000000e+00 : f32
    %19 = vector.broadcast %cst_18 : f32 to vector<2x32xf32>
    %20 = arith.addf %19, %18 : vector<2x32xf32>
    %21 = arith.divf %19, %20 : vector<2x32xf32>
    %22 = vector.extract_strided_slice %15 {offsets = [0, 32], sizes = [2, 32], strides = [1, 1]} : vector<2x128xf32> to vector<2x32xf32>
    %23 = arith.negf %22 : vector<2x32xf32>
    %24 = math.exp %23 : vector<2x32xf32>
    %cst_19 = arith.constant 1.000000e+00 : f32
    %25 = vector.broadcast %cst_19 : f32 to vector<2x32xf32>
    %26 = arith.addf %25, %24 : vector<2x32xf32>
    %27 = arith.divf %25, %26 : vector<2x32xf32>
    %28 = vector.extract_strided_slice %15 {offsets = [0, 64], sizes = [2, 32], strides = [1, 1]} : vector<2x128xf32> to vector<2x32xf32>
    %29 = math.tanh %28 : vector<2x32xf32>
    %30 = vector.extract_strided_slice %15 {offsets = [0, 96], sizes = [2, 32], strides = [1, 1]} : vector<2x128xf32> to vector<2x32xf32>
    %31 = arith.negf %30 : vector<2x32xf32>
    %32 = math.exp %31 : vector<2x32xf32>
    %cst_20 = arith.constant 1.000000e+00 : f32
    %33 = vector.broadcast %cst_20 : f32 to vector<2x32xf32>
    %34 = arith.addf %33, %32 : vector<2x32xf32>
    %35 = arith.divf %33, %34 : vector<2x32xf32>
    %36 = arith.mulf %27, %10 : vector<2x32xf32>
    %37 = arith.mulf %21, %29 : vector<2x32xf32>
    %38 = arith.addf %36, %37 : vector<2x32xf32>
    %39 = math.tanh %38 : vector<2x32xf32>
    %40 = arith.mulf %35, %39 : vector<2x32xf32>
    %c30 = arith.constant 30 : index
    %c128 = arith.constant 128 : index
    %41 = vector.load %arg10[%c30, %c128] : memref<32x256xf32, #tpu.memory_space<vmem>>, vector<2x128xf32>
    %cst_21 = arith.constant dense<0.000000e+00> : vector<2x128xf32>
    %42 = tpu.matmul %11, %8, %cst_21 {dimension_numbers = #tpu.dot_dimension_numbers<[1], [0], [0], [1], [0, 0, 1, 1], [], []>} : vector<2x32xf32>, vector<32x128xf32>, vector<2x128xf32> -> vector<2x128xf32>
    %43 = arith.addf %41, %42 : vector<2x128xf32>
    %44 = vector.extract_strided_slice %43 {offsets = [0, 0], sizes = [2, 32], strides = [1, 1]} : vector<2x128xf32> to vector<2x32xf32>
    %45 = arith.negf %44 : vector<2x32xf32>
    %46 = math.exp %45 : vector<2x32xf32>
    %cst_22 = arith.constant 1.000000e+00 : f32
    %47 = vector.broadcast %cst_22 : f32 to vector<2x32xf32>
    %48 = arith.addf %47, %46 : vector<2x32xf32>
    %49 = arith.divf %47, %48 : vector<2x32xf32>
    %50 = vector.extract_strided_slice %43 {offsets = [0, 32], sizes = [2, 32], strides = [1, 1]} : vector<2x128xf32> to vector<2x32xf32>
    %51 = arith.negf %50 : vector<2x32xf32>
    %52 = math.exp %51 : vector<2x32xf32>
    %cst_23 = arith.constant 1.000000e+00 : f32
    %53 = vector.broadcast %cst_23 : f32 to vector<2x32xf32>
    %54 = arith.addf %53, %52 : vector<2x32xf32>
    %55 = arith.divf %53, %54 : vector<2x32xf32>
    %56 = vector.extract_strided_slice %43 {offsets = [0, 64], sizes = [2, 32], strides = [1, 1]} : vector<2x128xf32> to vector<2x32xf32>
    %57 = math.tanh %56 : vector<2x32xf32>
    %58 = vector.extract_strided_slice %43 {offsets = [0, 96], sizes = [2, 32], strides = [1, 1]} : vector<2x128xf32> to vector<2x32xf32>
    %59 = arith.negf %58 : vector<2x32xf32>
    %60 = math.exp %59 : vector<2x32xf32>
    %cst_24 = arith.constant 1.000000e+00 : f32
    %61 = vector.broadcast %cst_24 : f32 to vector<2x32xf32>
    %62 = arith.addf %61, %60 : vector<2x32xf32>
    %63 = arith.divf %61, %62 : vector<2x32xf32>
    %64 = arith.mulf %55, %12 : vector<2x32xf32>
    %65 = arith.mulf %49, %57 : vector<2x32xf32>
    %66 = arith.addf %64, %65 : vector<2x32xf32>
    %67 = math.tanh %66 : vector<2x32xf32>
    %68 = arith.mulf %63, %67 : vector<2x32xf32>
    %69 = vector.extract_strided_slice %40 {offsets = [0, 0], sizes = [1, 32], strides = [1, 1]} : vector<2x32xf32> to vector<1x32xf32>
    %c0_25 = arith.constant 0 : index
    %c0_26 = arith.constant 0 : index
    %70 = vector.load %arg11[%c0_25, %c0_26] : memref<32x64xf32, #tpu.memory_space<vmem>>, vector<1x32xf32>
    tpu.vector_store %arg11[%c0_25, %c0_26], %69 {strides = array<i32>} : memref<32x64xf32, #tpu.memory_space<vmem>>, vector<1x32xf32>,
    %71 = vector.extract_strided_slice %68 {offsets = [0, 0], sizes = [1, 32], strides = [1, 1]} : vector<2x32xf32> to vector<1x32xf32>
    %c15 = arith.constant 15 : index
    %c32 = arith.constant 32 : index
    %72 = vector.load %arg11[%c15, %c32] : memref<32x64xf32, #tpu.memory_space<vmem>>, vector<1x32xf32>
    tpu.vector_store %arg11[%c15, %c32], %71 {strides = array<i32>} : memref<32x64xf32, #tpu.memory_space<vmem>>, vector<1x32xf32>,
    %73 = vector.extract_strided_slice %40 {offsets = [1, 0], sizes = [1, 32], strides = [1, 1]} : vector<2x32xf32> to vector<1x32xf32>
    %c16 = arith.constant 16 : index
    %c0_27 = arith.constant 0 : index
    %74 = vector.load %arg11[%c16, %c0_27] : memref<32x64xf32, #tpu.memory_space<vmem>>, vector<1x32xf32>
    tpu.vector_store %arg11[%c16, %c0_27], %73 {strides = array<i32>} : memref<32x64xf32, #tpu.memory_space<vmem>>, vector<1x32xf32>,
    %75 = vector.extract_strided_slice %68 {offsets = [1, 0], sizes = [1, 32], strides = [1, 1]} : vector<2x32xf32> to vector<1x32xf32>
    %c31 = arith.constant 31 : index
    %c32_28 = arith.constant 32 : index
    %76 = vector.load %arg11[%c31, %c32_28] : memref<32x64xf32, #tpu.memory_space<vmem>>, vector<1x32xf32>
    tpu.vector_store %arg11[%c31, %c32_28], %75 {strides = array<i32>} : memref<32x64xf32, #tpu.memory_space<vmem>>, vector<1x32xf32>,
    %c2 = arith.constant 2 : index
    %c0_29 = arith.constant 0 : index
    %77 = vector.load %arg10[%c2, %c0_29] : memref<32x256xf32, #tpu.memory_space<vmem>>, vector<2x128xf32>
    %cst_30 = arith.constant dense<0.000000e+00> : vector<2x128xf32>
    %78 = tpu.matmul %40, %7, %cst_30 {dimension_numbers = #tpu.dot_dimension_numbers<[1], [0], [0], [1], [0, 0, 1, 1], [], []>} : vector<2x32xf32>, vector<32x128xf32>, vector<2x128xf32> -> vector<2x128xf32>
    %79 = arith.addf %77, %78 : vector<2x128xf32>
    %80 = vector.extract_strided_slice %79 {offsets = [0, 0], sizes = [2, 32], strides = [1, 1]} : vector<2x128xf32> to vector<2x32xf32>
    %81 = arith.negf %80 : vector<2x32xf32>
    %82 = math.exp %81 : vector<2x32xf32>
    %cst_31 = arith.constant 1.000000e+00 : f32
    %83 = vector.broadcast %cst_31 : f32 to vector<2x32xf32>
    %84 = arith.addf %83, %82 : vector<2x32xf32>
    %85 = arith.divf %83, %84 : vector<2x32xf32>
    %86 = vector.extract_strided_slice %79 {offsets = [0, 32], sizes = [2, 32], strides = [1, 1]} : vector<2x128xf32> to vector<2x32xf32>
    %87 = arith.negf %86 : vector<2x32xf32>
    %88 = math.exp %87 : vector<2x32xf32>
    %cst_32 = arith.constant 1.000000e+00 : f32
    %89 = vector.broadcast %cst_32 : f32 to vector<2x32xf32>
    %90 = arith.addf %89, %88 : vector<2x32xf32>
    %91 = arith.divf %89, %90 : vector<2x32xf32>
    %92 = vector.extract_strided_slice %79 {offsets = [0, 64], sizes = [2, 32], strides = [1, 1]} : vector<2x128xf32> to vector<2x32xf32>
    %93 = math.tanh %92 : vector<2x32xf32>
    %94 = vector.extract_strided_slice %79 {offsets = [0, 96], sizes = [2, 32], strides = [1, 1]} : vector<2x128xf32> to vector<2x32xf32>
    %95 = arith.negf %94 : vector<2x32xf32>
    %96 = math.exp %95 : vector<2x32xf32>
    %cst_33 = arith.constant 1.000000e+00 : f32
    %97 = vector.broadcast %cst_33 : f32 to vector<2x32xf32>
    %98 = arith.addf %97, %96 : vector<2x32xf32>
    %99 = arith.divf %97, %98 : vector<2x32xf32>
    %100 = arith.mulf %91, %38 : vector<2x32xf32>
    %101 = arith.mulf %85, %93 : vector<2x32xf32>
    %102 = arith.addf %100, %101 : vector<2x32xf32>
    %103 = math.tanh %102 : vector<2x32xf32>
    %104 = arith.mulf %99, %103 : vector<2x32xf32>
    %c28 = arith.constant 28 : index
    %c128_34 = arith.constant 128 : index
    %105 = vector.load %arg10[%c28, %c128_34] : memref<32x256xf32, #tpu.memory_space<vmem>>, vector<2x128xf32>
    %cst_35 = arith.constant dense<0.000000e+00> : vector<2x128xf32>
    %106 = tpu.matmul %68, %8, %cst_35 {dimension_numbers = #tpu.dot_dimension_numbers<[1], [0], [0], [1], [0, 0, 1, 1], [], []>} : vector<2x32xf32>, vector<32x128xf32>, vector<2x128xf32> -> vector<2x128xf32>
    %107 = arith.addf %105, %106 : vector<2x128xf32>
    %108 = vector.extract_strided_slice %107 {offsets = [0, 0], sizes = [2, 32], strides = [1, 1]} : vector<2x128xf32> to vector<2x32xf32>
    %109 = arith.negf %108 : vector<2x32xf32>
    %110 = math.exp %109 : vector<2x32xf32>
    %cst_36 = arith.constant 1.000000e+00 : f32
    %111 = vector.broadcast %cst_36 : f32 to vector<2x32xf32>
    %112 = arith.addf %111, %110 : vector<2x32xf32>
    %113 = arith.divf %111, %112 : vector<2x32xf32>
    %114 = vector.extract_strided_slice %107 {offsets = [0, 32], sizes = [2, 32], strides = [1, 1]} : vector<2x128xf32> to vector<2x32xf32>
    %115 = arith.negf %114 : vector<2x32xf32>
    %116 = math.exp %115 : vector<2x32xf32>
    %cst_37 = arith.constant 1.000000e+00 : f32
    %117 = vector.broadcast %cst_37 : f32 to vector<2x32xf32>
    %118 = arith.addf %117, %116 : vector<2x32xf32>
    %119 = arith.divf %117, %118 : vector<2x32xf32>
    %120 = vector.extract_strided_slice %107 {offsets = [0, 64], sizes = [2, 32], strides = [1, 1]} : vector<2x128xf32> to vector<2x32xf32>
    %121 = math.tanh %120 : vector<2x32xf32>
    %122 = vector.extract_strided_slice %107 {offsets = [0, 96], sizes = [2, 32], strides = [1, 1]} : vector<2x128xf32> to vector<2x32xf32>
    %123 = arith.negf %122 : vector<2x32xf32>
    %124 = math.exp %123 : vector<2x32xf32>
    %cst_38 = arith.constant 1.000000e+00 : f32
    %125 = vector.broadcast %cst_38 : f32 to vector<2x32xf32>
    %126 = arith.addf %125, %124 : vector<2x32xf32>
    %127 = arith.divf %125, %126 : vector<2x32xf32>
    %128 = arith.mulf %119, %66 : vector<2x32xf32>
    %129 = arith.mulf %113, %121 : vector<2x32xf32>
    %130 = arith.addf %128, %129 : vector<2x32xf32>
    %131 = math.tanh %130 : vector<2x32xf32>
    %132 = arith.mulf %127, %131 : vector<2x32xf32>
    %133 = vector.extract_strided_slice %104 {offsets = [0, 0], sizes = [1, 32], strides = [1, 1]} : vector<2x32xf32> to vector<1x32xf32>
    %c1 = arith.constant 1 : index
    %c0_39 = arith.constant 0 : index
    %134 = vector.load %arg11[%c1, %c0_39] : memref<32x64xf32, #tpu.memory_space<vmem>>, vector<1x32xf32>
    tpu.vector_store %arg11[%c1, %c0_39], %133 {strides = array<i32>} : memref<32x64xf32, #tpu.memory_space<vmem>>, vector<1x32xf32>,
    %135 = vector.extract_strided_slice %132 {offsets = [0, 0], sizes = [1, 32], strides = [1, 1]} : vector<2x32xf32> to vector<1x32xf32>
    %c14 = arith.constant 14 : index
    %c32_40 = arith.constant 32 : index
    %136 = vector.load %arg11[%c14, %c32_40] : memref<32x64xf32, #tpu.memory_space<vmem>>, vector<1x32xf32>
    tpu.vector_store %arg11[%c14, %c32_40], %135 {strides = array<i32>} : memref<32x64xf32, #tpu.memory_space<vmem>>, vector<1x32xf32>,
    %137 = vector.extract_strided_slice %104 {offsets = [1, 0], sizes = [1, 32], strides = [1, 1]} : vector<2x32xf32> to vector<1x32xf32>
    %c17 = arith.constant 17 : index
    %c0_41 = arith.constant 0 : index
    %138 = vector.load %arg11[%c17, %c0_41] : memref<32x64xf32, #tpu.memory_space<vmem>>, vector<1x32xf32>
    tpu.vector_store %arg11[%c17, %c0_41], %137 {strides = array<i32>} : memref<32x64xf32, #tpu.memory_space<vmem>>, vector<1x32xf32>,
    %139 = vector.extract_strided_slice %132 {offsets = [1, 0], sizes = [1, 32], strides = [1, 1]} : vector<2x32xf32> to vector<1x32xf32>
    %c30_42 = arith.constant 30 : index
    %c32_43 = arith.constant 32 : index
    %140 = vector.load %arg11[%c30_42, %c32_43] : memref<32x64xf32, #tpu.memory_space<vmem>>, vector<1x32xf32>
    tpu.vector_store %arg11[%c30_42, %c32_43], %139 {strides = array<i32>} : memref<32x64xf32, #tpu.memory_space<vmem>>, vector<1x32xf32>,
    %c4 = arith.constant 4 : index
    %c0_44 = arith.constant 0 : index
    %141 = vector.load %arg10[%c4, %c0_44] : memref<32x256xf32, #tpu.memory_space<vmem>>, vector<2x128xf32>
    %cst_45 = arith.constant dense<0.000000e+00> : vector<2x128xf32>
    %142 = tpu.matmul %104, %7, %cst_45 {dimension_numbers = #tpu.dot_dimension_numbers<[1], [0], [0], [1], [0, 0, 1, 1], [], []>} : vector<2x32xf32>, vector<32x128xf32>, vector<2x128xf32> -> vector<2x128xf32>
    %143 = arith.addf %141, %142 : vector<2x128xf32>
    %144 = vector.extract_strided_slice %143 {offsets = [0, 0], sizes = [2, 32], strides = [1, 1]} : vector<2x128xf32> to vector<2x32xf32>
    %145 = arith.negf %144 : vector<2x32xf32>
    %146 = math.exp %145 : vector<2x32xf32>
    %cst_46 = arith.constant 1.000000e+00 : f32
    %147 = vector.broadcast %cst_46 : f32 to vector<2x32xf32>
    %148 = arith.addf %147, %146 : vector<2x32xf32>
    %149 = arith.divf %147, %148 : vector<2x32xf32>
    %150 = vector.extract_strided_slice %143 {offsets = [0, 32], sizes = [2, 32], strides = [1, 1]} : vector<2x128xf32> to vector<2x32xf32>
    %151 = arith.negf %150 : vector<2x32xf32>
    %152 = math.exp %151 : vector<2x32xf32>
    %cst_47 = arith.constant 1.000000e+00 : f32
    %153 = vector.broadcast %cst_47 : f32 to vector<2x32xf32>
    %154 = arith.addf %153, %152 : vector<2x32xf32>
    %155 = arith.divf %153, %154 : vector<2x32xf32>
    %156 = vector.extract_strided_slice %143 {offsets = [0, 64], sizes = [2, 32], strides = [1, 1]} : vector<2x128xf32> to vector<2x32xf32>
    %157 = math.tanh %156 : vector<2x32xf32>
    %158 = vector.extract_strided_slice %143 {offsets = [0, 96], sizes = [2, 32], strides = [1, 1]} : vector<2x128xf32> to vector<2x32xf32>
    %159 = arith.negf %158 : vector<2x32xf32>
    %160 = math.exp %159 : vector<2x32xf32>
    %cst_48 = arith.constant 1.000000e+00 : f32
    %161 = vector.broadcast %cst_48 : f32 to vector<2x32xf32>
    %162 = arith.addf %161, %160 : vector<2x32xf32>
    %163 = arith.divf %161, %162 : vector<2x32xf32>
    %164 = arith.mulf %155, %102 : vector<2x32xf32>
    %165 = arith.mulf %149, %157 : vector<2x32xf32>
    %166 = arith.addf %164, %165 : vector<2x32xf32>
    %167 = math.tanh %166 : vector<2x32xf32>
    %168 = arith.mulf %163, %167 : vector<2x32xf32>
    %c26 = arith.constant 26 : index
    %c128_49 = arith.constant 128 : index
    %169 = vector.load %arg10[%c26, %c128_49] : memref<32x256xf32, #tpu.memory_space<vmem>>, vector<2x128xf32>
    %cst_50 = arith.constant dense<0.000000e+00> : vector<2x128xf32>
    %170 = tpu.matmul %132, %8, %cst_50 {dimension_numbers = #tpu.dot_dimension_numbers<[1], [0], [0], [1], [0, 0, 1, 1], [], []>} : vector<2x32xf32>, vector<32x128xf32>, vector<2x128xf32> -> vector<2x128xf32>
    %171 = arith.addf %169, %170 : vector<2x128xf32>
    %172 = vector.extract_strided_slice %171 {offsets = [0, 0], sizes = [2, 32], strides = [1, 1]} : vector<2x128xf32> to vector<2x32xf32>
    %173 = arith.negf %172 : vector<2x32xf32>
    %174 = math.exp %173 : vector<2x32xf32>
    %cst_51 = arith.constant 1.000000e+00 : f32
    %175 = vector.broadcast %cst_51 : f32 to vector<2x32xf32>
    %176 = arith.addf %175, %174 : vector<2x32xf32>
    %177 = arith.divf %175, %176 : vector<2x32xf32>
    %178 = vector.extract_strided_slice %171 {offsets = [0, 32], sizes = [2, 32], strides = [1, 1]} : vector<2x128xf32> to vector<2x32xf32>
    %179 = arith.negf %178 : vector<2x32xf32>
    %180 = math.exp %179 : vector<2x32xf32>
    %cst_52 = arith.constant 1.000000e+00 : f32
    %181 = vector.broadcast %cst_52 : f32 to vector<2x32xf32>
    %182 = arith.addf %181, %180 : vector<2x32xf32>
    %183 = arith.divf %181, %182 : vector<2x32xf32>
    %184 = vector.extract_strided_slice %171 {offsets = [0, 64], sizes = [2, 32], strides = [1, 1]} : vector<2x128xf32> to vector<2x32xf32>
    %185 = math.tanh %184 : vector<2x32xf32>
    %186 = vector.extract_strided_slice %171 {offsets = [0, 96], sizes = [2, 32], strides = [1, 1]} : vector<2x128xf32> to vector<2x32xf32>
    %187 = arith.negf %186 : vector<2x32xf32>
    %188 = math.exp %187 : vector<2x32xf32>
    %cst_53 = arith.constant 1.000000e+00 : f32
    %189 = vector.broadcast %cst_53 : f32 to vector<2x32xf32>
    %190 = arith.addf %189, %188 : vector<2x32xf32>
    %191 = arith.divf %189, %190 : vector<2x32xf32>
    %192 = arith.mulf %183, %130 : vector<2x32xf32>
    %193 = arith.mulf %177, %185 : vector<2x32xf32>
    %194 = arith.addf %192, %193 : vector<2x32xf32>
    %195 = math.tanh %194 : vector<2x32xf32>
    %196 = arith.mulf %191, %195 : vector<2x32xf32>
    %197 = vector.extract_strided_slice %168 {offsets = [0, 0], sizes = [1, 32], strides = [1, 1]} : vector<2x32xf32> to vector<1x32xf32>
    %c2_54 = arith.constant 2 : index
    %c0_55 = arith.constant 0 : index
    %198 = vector.load %arg11[%c2_54, %c0_55] : memref<32x64xf32, #tpu.memory_space<vmem>>, vector<1x32xf32>
    tpu.vector_store %arg11[%c2_54, %c0_55], %197 {strides = array<i32>} : memref<32x64xf32, #tpu.memory_space<vmem>>, vector<1x32xf32>,
    %199 = vector.extract_strided_slice %196 {offsets = [0, 0], sizes = [1, 32], strides = [1, 1]} : vector<2x32xf32> to vector<1x32xf32>
    %c13 = arith.constant 13 : index
    %c32_56 = arith.constant 32 : index
    %200 = vector.load %arg11[%c13, %c32_56] : memref<32x64xf32, #tpu.memory_space<vmem>>, vector<1x32xf32>
    tpu.vector_store %arg11[%c13, %c32_56], %199 {strides = array<i32>} : memref<32x64xf32, #tpu.memory_space<vmem>>, vector<1x32xf32>,
    %201 = vector.extract_strided_slice %168 {offsets = [1, 0], sizes = [1, 32], strides = [1, 1]} : vector<2x32xf32> to vector<1x32xf32>
    %c18 = arith.constant 18 : index
    %c0_57 = arith.constant 0 : index
    %202 = vector.load %arg11[%c18, %c0_57] : memref<32x64xf32, #tpu.memory_space<vmem>>, vector<1x32xf32>
    tpu.vector_store %arg11[%c18, %c0_57], %201 {strides = array<i32>} : memref<32x64xf32, #tpu.memory_space<vmem>>, vector<1x32xf32>,
    %203 = vector.extract_strided_slice %196 {offsets = [1, 0], sizes = [1, 32], strides = [1, 1]} : vector<2x32xf32> to vector<1x32xf32>
    %c29 = arith.constant 29 : index
    %c32_58 = arith.constant 32 : index
    %204 = vector.load %arg11[%c29, %c32_58] : memref<32x64xf32, #tpu.memory_space<vmem>>, vector<1x32xf32>
    tpu.vector_store %arg11[%c29, %c32_58], %203 {strides = array<i32>} : memref<32x64xf32, #tpu.memory_space<vmem>>, vector<1x32xf32>,
    %c6 = arith.constant 6 : index
    %c0_59 = arith.constant 0 : index
    %205 = vector.load %arg10[%c6, %c0_59] : memref<32x256xf32, #tpu.memory_space<vmem>>, vector<2x128xf32>
    %cst_60 = arith.constant dense<0.000000e+00> : vector<2x128xf32>
    %206 = tpu.matmul %168, %7, %cst_60 {dimension_numbers = #tpu.dot_dimension_numbers<[1], [0], [0], [1], [0, 0, 1, 1], [], []>} : vector<2x32xf32>, vector<32x128xf32>, vector<2x128xf32> -> vector<2x128xf32>
    %207 = arith.addf %205, %206 : vector<2x128xf32>
    %208 = vector.extract_strided_slice %207 {offsets = [0, 0], sizes = [2, 32], strides = [1, 1]} : vector<2x128xf32> to vector<2x32xf32>
    %209 = arith.negf %208 : vector<2x32xf32>
    %210 = math.exp %209 : vector<2x32xf32>
    %cst_61 = arith.constant 1.000000e+00 : f32
    %211 = vector.broadcast %cst_61 : f32 to vector<2x32xf32>
    %212 = arith.addf %211, %210 : vector<2x32xf32>
    %213 = arith.divf %211, %212 : vector<2x32xf32>
    %214 = vector.extract_strided_slice %207 {offsets = [0, 32], sizes = [2, 32], strides = [1, 1]} : vector<2x128xf32> to vector<2x32xf32>
    %215 = arith.negf %214 : vector<2x32xf32>
    %216 = math.exp %215 : vector<2x32xf32>
    %cst_62 = arith.constant 1.000000e+00 : f32
    %217 = vector.broadcast %cst_62 : f32 to vector<2x32xf32>
    %218 = arith.addf %217, %216 : vector<2x32xf32>
    %219 = arith.divf %217, %218 : vector<2x32xf32>
    %220 = vector.extract_strided_slice %207 {offsets = [0, 64], sizes = [2, 32], strides = [1, 1]} : vector<2x128xf32> to vector<2x32xf32>
    %221 = math.tanh %220 : vector<2x32xf32>
    %222 = vector.extract_strided_slice %207 {offsets = [0, 96], sizes = [2, 32], strides = [1, 1]} : vector<2x128xf32> to vector<2x32xf32>
    %223 = arith.negf %222 : vector<2x32xf32>
    %224 = math.exp %223 : vector<2x32xf32>
    %cst_63 = arith.constant 1.000000e+00 : f32
    %225 = vector.broadcast %cst_63 : f32 to vector<2x32xf32>
    %226 = arith.addf %225, %224 : vector<2x32xf32>
    %227 = arith.divf %225, %226 : vector<2x32xf32>
    %228 = arith.mulf %219, %166 : vector<2x32xf32>
    %229 = arith.mulf %213, %221 : vector<2x32xf32>
    %230 = arith.addf %228, %229 : vector<2x32xf32>
    %231 = math.tanh %230 : vector<2x32xf32>
    %232 = arith.mulf %227, %231 : vector<2x32xf32>
    %c24 = arith.constant 24 : index
    %c128_64 = arith.constant 128 : index
    %233 = vector.load %arg10[%c24, %c128_64] : memref<32x256xf32, #tpu.memory_space<vmem>>, vector<2x128xf32>
    %cst_65 = arith.constant dense<0.000000e+00> : vector<2x128xf32>
    %234 = tpu.matmul %196, %8, %cst_65 {dimension_numbers = #tpu.dot_dimension_numbers<[1], [0], [0], [1], [0, 0, 1, 1], [], []>} : vector<2x32xf32>, vector<32x128xf32>, vector<2x128xf32> -> vector<2x128xf32>
    %235 = arith.addf %233, %234 : vector<2x128xf32>
    %236 = vector.extract_strided_slice %235 {offsets = [0, 0], sizes = [2, 32], strides = [1, 1]} : vector<2x128xf32> to vector<2x32xf32>
    %237 = arith.negf %236 : vector<2x32xf32>
    %238 = math.exp %237 : vector<2x32xf32>
    %cst_66 = arith.constant 1.000000e+00 : f32
    %239 = vector.broadcast %cst_66 : f32 to vector<2x32xf32>
    %240 = arith.addf %239, %238 : vector<2x32xf32>
    %241 = arith.divf %239, %240 : vector<2x32xf32>
    %242 = vector.extract_strided_slice %235 {offsets = [0, 32], sizes = [2, 32], strides = [1, 1]} : vector<2x128xf32> to vector<2x32xf32>
    %243 = arith.negf %242 : vector<2x32xf32>
    %244 = math.exp %243 : vector<2x32xf32>
    %cst_67 = arith.constant 1.000000e+00 : f32
    %245 = vector.broadcast %cst_67 : f32 to vector<2x32xf32>
    %246 = arith.addf %245, %244 : vector<2x32xf32>
    %247 = arith.divf %245, %246 : vector<2x32xf32>
    %248 = vector.extract_strided_slice %235 {offsets = [0, 64], sizes = [2, 32], strides = [1, 1]} : vector<2x128xf32> to vector<2x32xf32>
    %249 = math.tanh %248 : vector<2x32xf32>
    %250 = vector.extract_strided_slice %235 {offsets = [0, 96], sizes = [2, 32], strides = [1, 1]} : vector<2x128xf32> to vector<2x32xf32>
    %251 = arith.negf %250 : vector<2x32xf32>
    %252 = math.exp %251 : vector<2x32xf32>
    %cst_68 = arith.constant 1.000000e+00 : f32
    %253 = vector.broadcast %cst_68 : f32 to vector<2x32xf32>
    %254 = arith.addf %253, %252 : vector<2x32xf32>
    %255 = arith.divf %253, %254 : vector<2x32xf32>
    %256 = arith.mulf %247, %194 : vector<2x32xf32>
    %257 = arith.mulf %241, %249 : vector<2x32xf32>
    %258 = arith.addf %256, %257 : vector<2x32xf32>
    %259 = math.tanh %258 : vector<2x32xf32>
    %260 = arith.mulf %255, %259 : vector<2x32xf32>
    %261 = vector.extract_strided_slice %232 {offsets = [0, 0], sizes = [1, 32], strides = [1, 1]} : vector<2x32xf32> to vector<1x32xf32>
    %c3 = arith.constant 3 : index
    %c0_69 = arith.constant 0 : index
    %262 = vector.load %arg11[%c3, %c0_69] : memref<32x64xf32, #tpu.memory_space<vmem>>, vector<1x32xf32>
    tpu.vector_store %arg11[%c3, %c0_69], %261 {strides = array<i32>} : memref<32x64xf32, #tpu.memory_space<vmem>>, vector<1x32xf32>,
    %263 = vector.extract_strided_slice %260 {offsets = [0, 0], sizes = [1, 32], strides = [1, 1]} : vector<2x32xf32> to vector<1x32xf32>
    %c12 = arith.constant 12 : index
    %c32_70 = arith.constant 32 : index
    %264 = vector.load %arg11[%c12, %c32_70] : memref<32x64xf32, #tpu.memory_space<vmem>>, vector<1x32xf32>
    tpu.vector_store %arg11[%c12, %c32_70], %263 {strides = array<i32>} : memref<32x64xf32, #tpu.memory_space<vmem>>, vector<1x32xf32>,
    %265 = vector.extract_strided_slice %232 {offsets = [1, 0], sizes = [1, 32], strides = [1, 1]} : vector<2x32xf32> to vector<1x32xf32>
    %c19 = arith.constant 19 : index
    %c0_71 = arith.constant 0 : index
    %266 = vector.load %arg11[%c19, %c0_71] : memref<32x64xf32, #tpu.memory_space<vmem>>, vector<1x32xf32>
    tpu.vector_store %arg11[%c19, %c0_71], %265 {strides = array<i32>} : memref<32x64xf32, #tpu.memory_space<vmem>>, vector<1x32xf32>,
    %267 = vector.extract_strided_slice %260 {offsets = [1, 0], sizes = [1, 32], strides = [1, 1]} : vector<2x32xf32> to vector<1x32xf32>
    %c28_72 = arith.constant 28 : index
    %c32_73 = arith.constant 32 : index
    %268 = vector.load %arg11[%c28_72, %c32_73] : memref<32x64xf32, #tpu.memory_space<vmem>>, vector<1x32xf32>
    tpu.vector_store %arg11[%c28_72, %c32_73], %267 {strides = array<i32>} : memref<32x64xf32, #tpu.memory_space<vmem>>, vector<1x32xf32>,
    %c8 = arith.constant 8 : index
    %c0_74 = arith.constant 0 : index
    %269 = vector.load %arg10[%c8, %c0_74] : memref<32x256xf32, #tpu.memory_space<vmem>>, vector<2x128xf32>
    %cst_75 = arith.constant dense<0.000000e+00> : vector<2x128xf32>
    %270 = tpu.matmul %232, %7, %cst_75 {dimension_numbers = #tpu.dot_dimension_numbers<[1], [0], [0], [1], [0, 0, 1, 1], [], []>} : vector<2x32xf32>, vector<32x128xf32>, vector<2x128xf32> -> vector<2x128xf32>
    %271 = arith.addf %269, %270 : vector<2x128xf32>
    %272 = vector.extract_strided_slice %271 {offsets = [0, 0], sizes = [2, 32], strides = [1, 1]} : vector<2x128xf32> to vector<2x32xf32>
    %273 = arith.negf %272 : vector<2x32xf32>
    %274 = math.exp %273 : vector<2x32xf32>
    %cst_76 = arith.constant 1.000000e+00 : f32
    %275 = vector.broadcast %cst_76 : f32 to vector<2x32xf32>
    %276 = arith.addf %275, %274 : vector<2x32xf32>
    %277 = arith.divf %275, %276 : vector<2x32xf32>
    %278 = vector.extract_strided_slice %271 {offsets = [0, 32], sizes = [2, 32], strides = [1, 1]} : vector<2x128xf32> to vector<2x32xf32>
    %279 = arith.negf %278 : vector<2x32xf32>
    %280 = math.exp %279 : vector<2x32xf32>
    %cst_77 = arith.constant 1.000000e+00 : f32
    %281 = vector.broadcast %cst_77 : f32 to vector<2x32xf32>
    %282 = arith.addf %281, %280 : vector<2x32xf32>
    %283 = arith.divf %281, %282 : vector<2x32xf32>
    %284 = vector.extract_strided_slice %271 {offsets = [0, 64], sizes = [2, 32], strides = [1, 1]} : vector<2x128xf32> to vector<2x32xf32>
    %285 = math.tanh %284 : vector<2x32xf32>
    %286 = vector.extract_strided_slice %271 {offsets = [0, 96], sizes = [2, 32], strides = [1, 1]} : vector<2x128xf32> to vector<2x32xf32>
    %287 = arith.negf %286 : vector<2x32xf32>
    %288 = math.exp %287 : vector<2x32xf32>
    %cst_78 = arith.constant 1.000000e+00 : f32
    %289 = vector.broadcast %cst_78 : f32 to vector<2x32xf32>
    %290 = arith.addf %289, %288 : vector<2x32xf32>
    %291 = arith.divf %289, %290 : vector<2x32xf32>
    %292 = arith.mulf %283, %230 : vector<2x32xf32>
    %293 = arith.mulf %277, %285 : vector<2x32xf32>
    %294 = arith.addf %292, %293 : vector<2x32xf32>
    %295 = math.tanh %294 : vector<2x32xf32>
    %296 = arith.mulf %291, %295 : vector<2x32xf32>
    %c22 = arith.constant 22 : index
    %c128_79 = arith.constant 128 : index
    %297 = vector.load %arg10[%c22, %c128_79] : memref<32x256xf32, #tpu.memory_space<vmem>>, vector<2x128xf32>
    %cst_80 = arith.constant dense<0.000000e+00> : vector<2x128xf32>
    %298 = tpu.matmul %260, %8, %cst_80 {dimension_numbers = #tpu.dot_dimension_numbers<[1], [0], [0], [1], [0, 0, 1, 1], [], []>} : vector<2x32xf32>, vector<32x128xf32>, vector<2x128xf32> -> vector<2x128xf32>
    %299 = arith.addf %297, %298 : vector<2x128xf32>
    %300 = vector.extract_strided_slice %299 {offsets = [0, 0], sizes = [2, 32], strides = [1, 1]} : vector<2x128xf32> to vector<2x32xf32>
    %301 = arith.negf %300 : vector<2x32xf32>
    %302 = math.exp %301 : vector<2x32xf32>
    %cst_81 = arith.constant 1.000000e+00 : f32
    %303 = vector.broadcast %cst_81 : f32 to vector<2x32xf32>
    %304 = arith.addf %303, %302 : vector<2x32xf32>
    %305 = arith.divf %303, %304 : vector<2x32xf32>
    %306 = vector.extract_strided_slice %299 {offsets = [0, 32], sizes = [2, 32], strides = [1, 1]} : vector<2x128xf32> to vector<2x32xf32>
    %307 = arith.negf %306 : vector<2x32xf32>
    %308 = math.exp %307 : vector<2x32xf32>
    %cst_82 = arith.constant 1.000000e+00 : f32
    %309 = vector.broadcast %cst_82 : f32 to vector<2x32xf32>
    %310 = arith.addf %309, %308 : vector<2x32xf32>
    %311 = arith.divf %309, %310 : vector<2x32xf32>
    %312 = vector.extract_strided_slice %299 {offsets = [0, 64], sizes = [2, 32], strides = [1, 1]} : vector<2x128xf32> to vector<2x32xf32>
    %313 = math.tanh %312 : vector<2x32xf32>
    %314 = vector.extract_strided_slice %299 {offsets = [0, 96], sizes = [2, 32], strides = [1, 1]} : vector<2x128xf32> to vector<2x32xf32>
    %315 = arith.negf %314 : vector<2x32xf32>
    %316 = math.exp %315 : vector<2x32xf32>
    %cst_83 = arith.constant 1.000000e+00 : f32
    %317 = vector.broadcast %cst_83 : f32 to vector<2x32xf32>
    %318 = arith.addf %317, %316 : vector<2x32xf32>
    %319 = arith.divf %317, %318 : vector<2x32xf32>
    %320 = arith.mulf %311, %258 : vector<2x32xf32>
    %321 = arith.mulf %305, %313 : vector<2x32xf32>
    %322 = arith.addf %320, %321 : vector<2x32xf32>
    %323 = math.tanh %322 : vector<2x32xf32>
    %324 = arith.mulf %319, %323 : vector<2x32xf32>
    %325 = vector.extract_strided_slice %296 {offsets = [0, 0], sizes = [1, 32], strides = [1, 1]} : vector<2x32xf32> to vector<1x32xf32>
    %c4_84 = arith.constant 4 : index
    %c0_85 = arith.constant 0 : index
    %326 = vector.load %arg11[%c4_84, %c0_85] : memref<32x64xf32, #tpu.memory_space<vmem>>, vector<1x32xf32>
    tpu.vector_store %arg11[%c4_84, %c0_85], %325 {strides = array<i32>} : memref<32x64xf32, #tpu.memory_space<vmem>>, vector<1x32xf32>,
    %327 = vector.extract_strided_slice %324 {offsets = [0, 0], sizes = [1, 32], strides = [1, 1]} : vector<2x32xf32> to vector<1x32xf32>
    %c11 = arith.constant 11 : index
    %c32_86 = arith.constant 32 : index
    %328 = vector.load %arg11[%c11, %c32_86] : memref<32x64xf32, #tpu.memory_space<vmem>>, vector<1x32xf32>
    tpu.vector_store %arg11[%c11, %c32_86], %327 {strides = array<i32>} : memref<32x64xf32, #tpu.memory_space<vmem>>, vector<1x32xf32>,
    %329 = vector.extract_strided_slice %296 {offsets = [1, 0], sizes = [1, 32], strides = [1, 1]} : vector<2x32xf32> to vector<1x32xf32>
    %c20 = arith.constant 20 : index
    %c0_87 = arith.constant 0 : index
    %330 = vector.load %arg11[%c20, %c0_87] : memref<32x64xf32, #tpu.memory_space<vmem>>, vector<1x32xf32>
    tpu.vector_store %arg11[%c20, %c0_87], %329 {strides = array<i32>} : memref<32x64xf32, #tpu.memory_space<vmem>>, vector<1x32xf32>,
    %331 = vector.extract_strided_slice %324 {offsets = [1, 0], sizes = [1, 32], strides = [1, 1]} : vector<2x32xf32> to vector<1x32xf32>
    %c27 = arith.constant 27 : index
    %c32_88 = arith.constant 32 : index
    %332 = vector.load %arg11[%c27, %c32_88] : memref<32x64xf32, #tpu.memory_space<vmem>>, vector<1x32xf32>
    tpu.vector_store %arg11[%c27, %c32_88], %331 {strides = array<i32>} : memref<32x64xf32, #tpu.memory_space<vmem>>, vector<1x32xf32>,
    %c10 = arith.constant 10 : index
    %c0_89 = arith.constant 0 : index
    %333 = vector.load %arg10[%c10, %c0_89] : memref<32x256xf32, #tpu.memory_space<vmem>>, vector<2x128xf32>
    %cst_90 = arith.constant dense<0.000000e+00> : vector<2x128xf32>
    %334 = tpu.matmul %296, %7, %cst_90 {dimension_numbers = #tpu.dot_dimension_numbers<[1], [0], [0], [1], [0, 0, 1, 1], [], []>} : vector<2x32xf32>, vector<32x128xf32>, vector<2x128xf32> -> vector<2x128xf32>
    %335 = arith.addf %333, %334 : vector<2x128xf32>
    %336 = vector.extract_strided_slice %335 {offsets = [0, 0], sizes = [2, 32], strides = [1, 1]} : vector<2x128xf32> to vector<2x32xf32>
    %337 = arith.negf %336 : vector<2x32xf32>
    %338 = math.exp %337 : vector<2x32xf32>
    %cst_91 = arith.constant 1.000000e+00 : f32
    %339 = vector.broadcast %cst_91 : f32 to vector<2x32xf32>
    %340 = arith.addf %339, %338 : vector<2x32xf32>
    %341 = arith.divf %339, %340 : vector<2x32xf32>
    %342 = vector.extract_strided_slice %335 {offsets = [0, 32], sizes = [2, 32], strides = [1, 1]} : vector<2x128xf32> to vector<2x32xf32>
    %343 = arith.negf %342 : vector<2x32xf32>
    %344 = math.exp %343 : vector<2x32xf32>
    %cst_92 = arith.constant 1.000000e+00 : f32
    %345 = vector.broadcast %cst_92 : f32 to vector<2x32xf32>
    %346 = arith.addf %345, %344 : vector<2x32xf32>
    %347 = arith.divf %345, %346 : vector<2x32xf32>
    %348 = vector.extract_strided_slice %335 {offsets = [0, 64], sizes = [2, 32], strides = [1, 1]} : vector<2x128xf32> to vector<2x32xf32>
    %349 = math.tanh %348 : vector<2x32xf32>
    %350 = vector.extract_strided_slice %335 {offsets = [0, 96], sizes = [2, 32], strides = [1, 1]} : vector<2x128xf32> to vector<2x32xf32>
    %351 = arith.negf %350 : vector<2x32xf32>
    %352 = math.exp %351 : vector<2x32xf32>
    %cst_93 = arith.constant 1.000000e+00 : f32
    %353 = vector.broadcast %cst_93 : f32 to vector<2x32xf32>
    %354 = arith.addf %353, %352 : vector<2x32xf32>
    %355 = arith.divf %353, %354 : vector<2x32xf32>
    %356 = arith.mulf %347, %294 : vector<2x32xf32>
    %357 = arith.mulf %341, %349 : vector<2x32xf32>
    %358 = arith.addf %356, %357 : vector<2x32xf32>
    %359 = math.tanh %358 : vector<2x32xf32>
    %360 = arith.mulf %355, %359 : vector<2x32xf32>
    %c20_94 = arith.constant 20 : index
    %c128_95 = arith.constant 128 : index
    %361 = vector.load %arg10[%c20_94, %c128_95] : memref<32x256xf32, #tpu.memory_space<vmem>>, vector<2x128xf32>
    %cst_96 = arith.constant dense<0.000000e+00> : vector<2x128xf32>
    %362 = tpu.matmul %324, %8, %cst_96 {dimension_numbers = #tpu.dot_dimension_numbers<[1], [0], [0], [1], [0, 0, 1, 1], [], []>} : vector<2x32xf32>, vector<32x128xf32>, vector<2x128xf32> -> vector<2x128xf32>
    %363 = arith.addf %361, %362 : vector<2x128xf32>
    %364 = vector.extract_strided_slice %363 {offsets = [0, 0], sizes = [2, 32], strides = [1, 1]} : vector<2x128xf32> to vector<2x32xf32>
    %365 = arith.negf %364 : vector<2x32xf32>
    %366 = math.exp %365 : vector<2x32xf32>
    %cst_97 = arith.constant 1.000000e+00 : f32
    %367 = vector.broadcast %cst_97 : f32 to vector<2x32xf32>
    %368 = arith.addf %367, %366 : vector<2x32xf32>
    %369 = arith.divf %367, %368 : vector<2x32xf32>
    %370 = vector.extract_strided_slice %363 {offsets = [0, 32], sizes = [2, 32], strides = [1, 1]} : vector<2x128xf32> to vector<2x32xf32>
    %371 = arith.negf %370 : vector<2x32xf32>
    %372 = math.exp %371 : vector<2x32xf32>
    %cst_98 = arith.constant 1.000000e+00 : f32
    %373 = vector.broadcast %cst_98 : f32 to vector<2x32xf32>
    %374 = arith.addf %373, %372 : vector<2x32xf32>
    %375 = arith.divf %373, %374 : vector<2x32xf32>
    %376 = vector.extract_strided_slice %363 {offsets = [0, 64], sizes = [2, 32], strides = [1, 1]} : vector<2x128xf32> to vector<2x32xf32>
    %377 = math.tanh %376 : vector<2x32xf32>
    %378 = vector.extract_strided_slice %363 {offsets = [0, 96], sizes = [2, 32], strides = [1, 1]} : vector<2x128xf32> to vector<2x32xf32>
    %379 = arith.negf %378 : vector<2x32xf32>
    %380 = math.exp %379 : vector<2x32xf32>
    %cst_99 = arith.constant 1.000000e+00 : f32
    %381 = vector.broadcast %cst_99 : f32 to vector<2x32xf32>
    %382 = arith.addf %381, %380 : vector<2x32xf32>
    %383 = arith.divf %381, %382 : vector<2x32xf32>
    %384 = arith.mulf %375, %322 : vector<2x32xf32>
    %385 = arith.mulf %369, %377 : vector<2x32xf32>
    %386 = arith.addf %384, %385 : vector<2x32xf32>
    %387 = math.tanh %386 : vector<2x32xf32>
    %388 = arith.mulf %383, %387 : vector<2x32xf32>
    %389 = vector.extract_strided_slice %360 {offsets = [0, 0], sizes = [1, 32], strides = [1, 1]} : vector<2x32xf32> to vector<1x32xf32>
    %c5 = arith.constant 5 : index
    %c0_100 = arith.constant 0 : index
    %390 = vector.load %arg11[%c5, %c0_100] : memref<32x64xf32, #tpu.memory_space<vmem>>, vector<1x32xf32>
    tpu.vector_store %arg11[%c5, %c0_100], %389 {strides = array<i32>} : memref<32x64xf32, #tpu.memory_space<vmem>>, vector<1x32xf32>,
    %391 = vector.extract_strided_slice %388 {offsets = [0, 0], sizes = [1, 32], strides = [1, 1]} : vector<2x32xf32> to vector<1x32xf32>
    %c10_101 = arith.constant 10 : index
    %c32_102 = arith.constant 32 : index
    %392 = vector.load %arg11[%c10_101, %c32_102] : memref<32x64xf32, #tpu.memory_space<vmem>>, vector<1x32xf32>
    tpu.vector_store %arg11[%c10_101, %c32_102], %391 {strides = array<i32>} : memref<32x64xf32, #tpu.memory_space<vmem>>, vector<1x32xf32>,
    %393 = vector.extract_strided_slice %360 {offsets = [1, 0], sizes = [1, 32], strides = [1, 1]} : vector<2x32xf32> to vector<1x32xf32>
    %c21 = arith.constant 21 : index
    %c0_103 = arith.constant 0 : index
    %394 = vector.load %arg11[%c21, %c0_103] : memref<32x64xf32, #tpu.memory_space<vmem>>, vector<1x32xf32>
    tpu.vector_store %arg11[%c21, %c0_103], %393 {strides = array<i32>} : memref<32x64xf32, #tpu.memory_space<vmem>>, vector<1x32xf32>,
    %395 = vector.extract_strided_slice %388 {offsets = [1, 0], sizes = [1, 32], strides = [1, 1]} : vector<2x32xf32> to vector<1x32xf32>
    %c26_104 = arith.constant 26 : index
    %c32_105 = arith.constant 32 : index
    %396 = vector.load %arg11[%c26_104, %c32_105] : memref<32x64xf32, #tpu.memory_space<vmem>>, vector<1x32xf32>
    tpu.vector_store %arg11[%c26_104, %c32_105], %395 {strides = array<i32>} : memref<32x64xf32, #tpu.memory_space<vmem>>, vector<1x32xf32>,
    %c12_106 = arith.constant 12 : index
    %c0_107 = arith.constant 0 : index
    %397 = vector.load %arg10[%c12_106, %c0_107] : memref<32x256xf32, #tpu.memory_space<vmem>>, vector<2x128xf32>
    %cst_108 = arith.constant dense<0.000000e+00> : vector<2x128xf32>
    %398 = tpu.matmul %360, %7, %cst_108 {dimension_numbers = #tpu.dot_dimension_numbers<[1], [0], [0], [1], [0, 0, 1, 1], [], []>} : vector<2x32xf32>, vector<32x128xf32>, vector<2x128xf32> -> vector<2x128xf32>
    %399 = arith.addf %397, %398 : vector<2x128xf32>
    %400 = vector.extract_strided_slice %399 {offsets = [0, 0], sizes = [2, 32], strides = [1, 1]} : vector<2x128xf32> to vector<2x32xf32>
    %401 = arith.negf %400 : vector<2x32xf32>
    %402 = math.exp %401 : vector<2x32xf32>
    %cst_109 = arith.constant 1.000000e+00 : f32
    %403 = vector.broadcast %cst_109 : f32 to vector<2x32xf32>
    %404 = arith.addf %403, %402 : vector<2x32xf32>
    %405 = arith.divf %403, %404 : vector<2x32xf32>
    %406 = vector.extract_strided_slice %399 {offsets = [0, 32], sizes = [2, 32], strides = [1, 1]} : vector<2x128xf32> to vector<2x32xf32>
    %407 = arith.negf %406 : vector<2x32xf32>
    %408 = math.exp %407 : vector<2x32xf32>
    %cst_110 = arith.constant 1.000000e+00 : f32
    %409 = vector.broadcast %cst_110 : f32 to vector<2x32xf32>
    %410 = arith.addf %409, %408 : vector<2x32xf32>
    %411 = arith.divf %409, %410 : vector<2x32xf32>
    %412 = vector.extract_strided_slice %399 {offsets = [0, 64], sizes = [2, 32], strides = [1, 1]} : vector<2x128xf32> to vector<2x32xf32>
    %413 = math.tanh %412 : vector<2x32xf32>
    %414 = vector.extract_strided_slice %399 {offsets = [0, 96], sizes = [2, 32], strides = [1, 1]} : vector<2x128xf32> to vector<2x32xf32>
    %415 = arith.negf %414 : vector<2x32xf32>
    %416 = math.exp %415 : vector<2x32xf32>
    %cst_111 = arith.constant 1.000000e+00 : f32
    %417 = vector.broadcast %cst_111 : f32 to vector<2x32xf32>
    %418 = arith.addf %417, %416 : vector<2x32xf32>
    %419 = arith.divf %417, %418 : vector<2x32xf32>
    %420 = arith.mulf %411, %358 : vector<2x32xf32>
    %421 = arith.mulf %405, %413 : vector<2x32xf32>
    %422 = arith.addf %420, %421 : vector<2x32xf32>
    %423 = math.tanh %422 : vector<2x32xf32>
    %424 = arith.mulf %419, %423 : vector<2x32xf32>
    %c18_112 = arith.constant 18 : index
    %c128_113 = arith.constant 128 : index
    %425 = vector.load %arg10[%c18_112, %c128_113] : memref<32x256xf32, #tpu.memory_space<vmem>>, vector<2x128xf32>
    %cst_114 = arith.constant dense<0.000000e+00> : vector<2x128xf32>
    %426 = tpu.matmul %388, %8, %cst_114 {dimension_numbers = #tpu.dot_dimension_numbers<[1], [0], [0], [1], [0, 0, 1, 1], [], []>} : vector<2x32xf32>, vector<32x128xf32>, vector<2x128xf32> -> vector<2x128xf32>
    %427 = arith.addf %425, %426 : vector<2x128xf32>
    %428 = vector.extract_strided_slice %427 {offsets = [0, 0], sizes = [2, 32], strides = [1, 1]} : vector<2x128xf32> to vector<2x32xf32>
    %429 = arith.negf %428 : vector<2x32xf32>
    %430 = math.exp %429 : vector<2x32xf32>
    %cst_115 = arith.constant 1.000000e+00 : f32
    %431 = vector.broadcast %cst_115 : f32 to vector<2x32xf32>
    %432 = arith.addf %431, %430 : vector<2x32xf32>
    %433 = arith.divf %431, %432 : vector<2x32xf32>
    %434 = vector.extract_strided_slice %427 {offsets = [0, 32], sizes = [2, 32], strides = [1, 1]} : vector<2x128xf32> to vector<2x32xf32>
    %435 = arith.negf %434 : vector<2x32xf32>
    %436 = math.exp %435 : vector<2x32xf32>
    %cst_116 = arith.constant 1.000000e+00 : f32
    %437 = vector.broadcast %cst_116 : f32 to vector<2x32xf32>
    %438 = arith.addf %437, %436 : vector<2x32xf32>
    %439 = arith.divf %437, %438 : vector<2x32xf32>
    %440 = vector.extract_strided_slice %427 {offsets = [0, 64], sizes = [2, 32], strides = [1, 1]} : vector<2x128xf32> to vector<2x32xf32>
    %441 = math.tanh %440 : vector<2x32xf32>
    %442 = vector.extract_strided_slice %427 {offsets = [0, 96], sizes = [2, 32], strides = [1, 1]} : vector<2x128xf32> to vector<2x32xf32>
    %443 = arith.negf %442 : vector<2x32xf32>
    %444 = math.exp %443 : vector<2x32xf32>
    %cst_117 = arith.constant 1.000000e+00 : f32
    %445 = vector.broadcast %cst_117 : f32 to vector<2x32xf32>
    %446 = arith.addf %445, %444 : vector<2x32xf32>
    %447 = arith.divf %445, %446 : vector<2x32xf32>
    %448 = arith.mulf %439, %386 : vector<2x32xf32>
    %449 = arith.mulf %433, %441 : vector<2x32xf32>
    %450 = arith.addf %448, %449 : vector<2x32xf32>
    %451 = math.tanh %450 : vector<2x32xf32>
    %452 = arith.mulf %447, %451 : vector<2x32xf32>
    %453 = vector.extract_strided_slice %424 {offsets = [0, 0], sizes = [1, 32], strides = [1, 1]} : vector<2x32xf32> to vector<1x32xf32>
    %c6_118 = arith.constant 6 : index
    %c0_119 = arith.constant 0 : index
    %454 = vector.load %arg11[%c6_118, %c0_119] : memref<32x64xf32, #tpu.memory_space<vmem>>, vector<1x32xf32>
    tpu.vector_store %arg11[%c6_118, %c0_119], %453 {strides = array<i32>} : memref<32x64xf32, #tpu.memory_space<vmem>>, vector<1x32xf32>,
    %455 = vector.extract_strided_slice %452 {offsets = [0, 0], sizes = [1, 32], strides = [1, 1]} : vector<2x32xf32> to vector<1x32xf32>
    %c9 = arith.constant 9 : index
    %c32_120 = arith.constant 32 : index
    %456 = vector.load %arg11[%c9, %c32_120] : memref<32x64xf32, #tpu.memory_space<vmem>>, vector<1x32xf32>
    tpu.vector_store %arg11[%c9, %c32_120], %455 {strides = array<i32>} : memref<32x64xf32, #tpu.memory_space<vmem>>, vector<1x32xf32>,
    %457 = vector.extract_strided_slice %424 {offsets = [1, 0], sizes = [1, 32], strides = [1, 1]} : vector<2x32xf32> to vector<1x32xf32>
    %c22_121 = arith.constant 22 : index
    %c0_122 = arith.constant 0 : index
    %458 = vector.load %arg11[%c22_121, %c0_122] : memref<32x64xf32, #tpu.memory_space<vmem>>, vector<1x32xf32>
    tpu.vector_store %arg11[%c22_121, %c0_122], %457 {strides = array<i32>} : memref<32x64xf32, #tpu.memory_space<vmem>>, vector<1x32xf32>,
    %459 = vector.extract_strided_slice %452 {offsets = [1, 0], sizes = [1, 32], strides = [1, 1]} : vector<2x32xf32> to vector<1x32xf32>
    %c25 = arith.constant 25 : index
    %c32_123 = arith.constant 32 : index
    %460 = vector.load %arg11[%c25, %c32_123] : memref<32x64xf32, #tpu.memory_space<vmem>>, vector<1x32xf32>
    tpu.vector_store %arg11[%c25, %c32_123], %459 {strides = array<i32>} : memref<32x64xf32, #tpu.memory_space<vmem>>, vector<1x32xf32>,
    %c14_124 = arith.constant 14 : index
    %c0_125 = arith.constant 0 : index
    %461 = vector.load %arg10[%c14_124, %c0_125] : memref<32x256xf32, #tpu.memory_space<vmem>>, vector<2x128xf32>
    %cst_126 = arith.constant dense<0.000000e+00> : vector<2x128xf32>
    %462 = tpu.matmul %424, %7, %cst_126 {dimension_numbers = #tpu.dot_dimension_numbers<[1], [0], [0], [1], [0, 0, 1, 1], [], []>} : vector<2x32xf32>, vector<32x128xf32>, vector<2x128xf32> -> vector<2x128xf32>
    %463 = arith.addf %461, %462 : vector<2x128xf32>
    %464 = vector.extract_strided_slice %463 {offsets = [0, 0], sizes = [2, 32], strides = [1, 1]} : vector<2x128xf32> to vector<2x32xf32>
    %465 = arith.negf %464 : vector<2x32xf32>
    %466 = math.exp %465 : vector<2x32xf32>
    %cst_127 = arith.constant 1.000000e+00 : f32
    %467 = vector.broadcast %cst_127 : f32 to vector<2x32xf32>
    %468 = arith.addf %467, %466 : vector<2x32xf32>
    %469 = arith.divf %467, %468 : vector<2x32xf32>
    %470 = vector.extract_strided_slice %463 {offsets = [0, 32], sizes = [2, 32], strides = [1, 1]} : vector<2x128xf32> to vector<2x32xf32>
    %471 = arith.negf %470 : vector<2x32xf32>
    %472 = math.exp %471 : vector<2x32xf32>
    %cst_128 = arith.constant 1.000000e+00 : f32
    %473 = vector.broadcast %cst_128 : f32 to vector<2x32xf32>
    %474 = arith.addf %473, %472 : vector<2x32xf32>
    %475 = arith.divf %473, %474 : vector<2x32xf32>
    %476 = vector.extract_strided_slice %463 {offsets = [0, 64], sizes = [2, 32], strides = [1, 1]} : vector<2x128xf32> to vector<2x32xf32>
    %477 = math.tanh %476 : vector<2x32xf32>
    %478 = vector.extract_strided_slice %463 {offsets = [0, 96], sizes = [2, 32], strides = [1, 1]} : vector<2x128xf32> to vector<2x32xf32>
    %479 = arith.negf %478 : vector<2x32xf32>
    %480 = math.exp %479 : vector<2x32xf32>
    %cst_129 = arith.constant 1.000000e+00 : f32
    %481 = vector.broadcast %cst_129 : f32 to vector<2x32xf32>
    %482 = arith.addf %481, %480 : vector<2x32xf32>
    %483 = arith.divf %481, %482 : vector<2x32xf32>
    %484 = arith.mulf %475, %422 : vector<2x32xf32>
    %485 = arith.mulf %469, %477 : vector<2x32xf32>
    %486 = arith.addf %484, %485 : vector<2x32xf32>
    %487 = math.tanh %486 : vector<2x32xf32>
    %488 = arith.mulf %483, %487 : vector<2x32xf32>
    %c16_130 = arith.constant 16 : index
    %c128_131 = arith.constant 128 : index
    %489 = vector.load %arg10[%c16_130, %c128_131] : memref<32x256xf32, #tpu.memory_space<vmem>>, vector<2x128xf32>
    %cst_132 = arith.constant dense<0.000000e+00> : vector<2x128xf32>
    %490 = tpu.matmul %452, %8, %cst_132 {dimension_numbers = #tpu.dot_dimension_numbers<[1], [0], [0], [1], [0, 0, 1, 1], [], []>} : vector<2x32xf32>, vector<32x128xf32>, vector<2x128xf32> -> vector<2x128xf32>
    %491 = arith.addf %489, %490 : vector<2x128xf32>
    %492 = vector.extract_strided_slice %491 {offsets = [0, 0], sizes = [2, 32], strides = [1, 1]} : vector<2x128xf32> to vector<2x32xf32>
    %493 = arith.negf %492 : vector<2x32xf32>
    %494 = math.exp %493 : vector<2x32xf32>
    %cst_133 = arith.constant 1.000000e+00 : f32
    %495 = vector.broadcast %cst_133 : f32 to vector<2x32xf32>
    %496 = arith.addf %495, %494 : vector<2x32xf32>
    %497 = arith.divf %495, %496 : vector<2x32xf32>
    %498 = vector.extract_strided_slice %491 {offsets = [0, 32], sizes = [2, 32], strides = [1, 1]} : vector<2x128xf32> to vector<2x32xf32>
    %499 = arith.negf %498 : vector<2x32xf32>
    %500 = math.exp %499 : vector<2x32xf32>
    %cst_134 = arith.constant 1.000000e+00 : f32
    %501 = vector.broadcast %cst_134 : f32 to vector<2x32xf32>
    %502 = arith.addf %501, %500 : vector<2x32xf32>
    %503 = arith.divf %501, %502 : vector<2x32xf32>
    %504 = vector.extract_strided_slice %491 {offsets = [0, 64], sizes = [2, 32], strides = [1, 1]} : vector<2x128xf32> to vector<2x32xf32>
    %505 = math.tanh %504 : vector<2x32xf32>
    %506 = vector.extract_strided_slice %491 {offsets = [0, 96], sizes = [2, 32], strides = [1, 1]} : vector<2x128xf32> to vector<2x32xf32>
    %507 = arith.negf %506 : vector<2x32xf32>
    %508 = math.exp %507 : vector<2x32xf32>
    %cst_135 = arith.constant 1.000000e+00 : f32
    %509 = vector.broadcast %cst_135 : f32 to vector<2x32xf32>
    %510 = arith.addf %509, %508 : vector<2x32xf32>
    %511 = arith.divf %509, %510 : vector<2x32xf32>
    %512 = arith.mulf %503, %450 : vector<2x32xf32>
    %513 = arith.mulf %497, %505 : vector<2x32xf32>
    %514 = arith.addf %512, %513 : vector<2x32xf32>
    %515 = math.tanh %514 : vector<2x32xf32>
    %516 = arith.mulf %511, %515 : vector<2x32xf32>
    %517 = vector.extract_strided_slice %488 {offsets = [0, 0], sizes = [1, 32], strides = [1, 1]} : vector<2x32xf32> to vector<1x32xf32>
    %c7 = arith.constant 7 : index
    %c0_136 = arith.constant 0 : index
    %518 = vector.load %arg11[%c7, %c0_136] : memref<32x64xf32, #tpu.memory_space<vmem>>, vector<1x32xf32>
    tpu.vector_store %arg11[%c7, %c0_136], %517 {strides = array<i32>} : memref<32x64xf32, #tpu.memory_space<vmem>>, vector<1x32xf32>,
    %519 = vector.extract_strided_slice %516 {offsets = [0, 0], sizes = [1, 32], strides = [1, 1]} : vector<2x32xf32> to vector<1x32xf32>
    %c8_137 = arith.constant 8 : index
    %c32_138 = arith.constant 32 : index
    %520 = vector.load %arg11[%c8_137, %c32_138] : memref<32x64xf32, #tpu.memory_space<vmem>>, vector<1x32xf32>
    tpu.vector_store %arg11[%c8_137, %c32_138], %519 {strides = array<i32>} : memref<32x64xf32, #tpu.memory_space<vmem>>, vector<1x32xf32>,
    %521 = vector.extract_strided_slice %488 {offsets = [1, 0], sizes = [1, 32], strides = [1, 1]} : vector<2x32xf32> to vector<1x32xf32>
    %c23 = arith.constant 23 : index
    %c0_139 = arith.constant 0 : index
    %522 = vector.load %arg11[%c23, %c0_139] : memref<32x64xf32, #tpu.memory_space<vmem>>, vector<1x32xf32>
    tpu.vector_store %arg11[%c23, %c0_139], %521 {strides = array<i32>} : memref<32x64xf32, #tpu.memory_space<vmem>>, vector<1x32xf32>,
    %523 = vector.extract_strided_slice %516 {offsets = [1, 0], sizes = [1, 32], strides = [1, 1]} : vector<2x32xf32> to vector<1x32xf32>
    %c24_140 = arith.constant 24 : index
    %c32_141 = arith.constant 32 : index
    %524 = vector.load %arg11[%c24_140, %c32_141] : memref<32x64xf32, #tpu.memory_space<vmem>>, vector<1x32xf32>
    tpu.vector_store %arg11[%c24_140, %c32_141], %523 {strides = array<i32>} : memref<32x64xf32, #tpu.memory_space<vmem>>, vector<1x32xf32>,
    %c16_142 = arith.constant 16 : index
    %c0_143 = arith.constant 0 : index
    %525 = vector.load %arg10[%c16_142, %c0_143] : memref<32x256xf32, #tpu.memory_space<vmem>>, vector<2x128xf32>
    %cst_144 = arith.constant dense<0.000000e+00> : vector<2x128xf32>
    %526 = tpu.matmul %488, %7, %cst_144 {dimension_numbers = #tpu.dot_dimension_numbers<[1], [0], [0], [1], [0, 0, 1, 1], [], []>} : vector<2x32xf32>, vector<32x128xf32>, vector<2x128xf32> -> vector<2x128xf32>
    %527 = arith.addf %525, %526 : vector<2x128xf32>
    %528 = vector.extract_strided_slice %527 {offsets = [0, 0], sizes = [2, 32], strides = [1, 1]} : vector<2x128xf32> to vector<2x32xf32>
    %529 = arith.negf %528 : vector<2x32xf32>
    %530 = math.exp %529 : vector<2x32xf32>
    %cst_145 = arith.constant 1.000000e+00 : f32
    %531 = vector.broadcast %cst_145 : f32 to vector<2x32xf32>
    %532 = arith.addf %531, %530 : vector<2x32xf32>
    %533 = arith.divf %531, %532 : vector<2x32xf32>
    %534 = vector.extract_strided_slice %527 {offsets = [0, 32], sizes = [2, 32], strides = [1, 1]} : vector<2x128xf32> to vector<2x32xf32>
    %535 = arith.negf %534 : vector<2x32xf32>
    %536 = math.exp %535 : vector<2x32xf32>
    %cst_146 = arith.constant 1.000000e+00 : f32
    %537 = vector.broadcast %cst_146 : f32 to vector<2x32xf32>
    %538 = arith.addf %537, %536 : vector<2x32xf32>
    %539 = arith.divf %537, %538 : vector<2x32xf32>
    %540 = vector.extract_strided_slice %527 {offsets = [0, 64], sizes = [2, 32], strides = [1, 1]} : vector<2x128xf32> to vector<2x32xf32>
    %541 = math.tanh %540 : vector<2x32xf32>
    %542 = vector.extract_strided_slice %527 {offsets = [0, 96], sizes = [2, 32], strides = [1, 1]} : vector<2x128xf32> to vector<2x32xf32>
    %543 = arith.negf %542 : vector<2x32xf32>
    %544 = math.exp %543 : vector<2x32xf32>
    %cst_147 = arith.constant 1.000000e+00 : f32
    %545 = vector.broadcast %cst_147 : f32 to vector<2x32xf32>
    %546 = arith.addf %545, %544 : vector<2x32xf32>
    %547 = arith.divf %545, %546 : vector<2x32xf32>
    %548 = arith.mulf %539, %486 : vector<2x32xf32>
    %549 = arith.mulf %533, %541 : vector<2x32xf32>
    %550 = arith.addf %548, %549 : vector<2x32xf32>
    %551 = math.tanh %550 : vector<2x32xf32>
    %552 = arith.mulf %547, %551 : vector<2x32xf32>
    %c14_148 = arith.constant 14 : index
    %c128_149 = arith.constant 128 : index
    %553 = vector.load %arg10[%c14_148, %c128_149] : memref<32x256xf32, #tpu.memory_space<vmem>>, vector<2x128xf32>
    %cst_150 = arith.constant dense<0.000000e+00> : vector<2x128xf32>
    %554 = tpu.matmul %516, %8, %cst_150 {dimension_numbers = #tpu.dot_dimension_numbers<[1], [0], [0], [1], [0, 0, 1, 1], [], []>} : vector<2x32xf32>, vector<32x128xf32>, vector<2x128xf32> -> vector<2x128xf32>
    %555 = arith.addf %553, %554 : vector<2x128xf32>
    %556 = vector.extract_strided_slice %555 {offsets = [0, 0], sizes = [2, 32], strides = [1, 1]} : vector<2x128xf32> to vector<2x32xf32>
    %557 = arith.negf %556 : vector<2x32xf32>
    %558 = math.exp %557 : vector<2x32xf32>
    %cst_151 = arith.constant 1.000000e+00 : f32
    %559 = vector.broadcast %cst_151 : f32 to vector<2x32xf32>
    %560 = arith.addf %559, %558 : vector<2x32xf32>
    %561 = arith.divf %559, %560 : vector<2x32xf32>
    %562 = vector.extract_strided_slice %555 {offsets = [0, 32], sizes = [2, 32], strides = [1, 1]} : vector<2x128xf32> to vector<2x32xf32>
    %563 = arith.negf %562 : vector<2x32xf32>
    %564 = math.exp %563 : vector<2x32xf32>
    %cst_152 = arith.constant 1.000000e+00 : f32
    %565 = vector.broadcast %cst_152 : f32 to vector<2x32xf32>
    %566 = arith.addf %565, %564 : vector<2x32xf32>
    %567 = arith.divf %565, %566 : vector<2x32xf32>
    %568 = vector.extract_strided_slice %555 {offsets = [0, 64], sizes = [2, 32], strides = [1, 1]} : vector<2x128xf32> to vector<2x32xf32>
    %569 = math.tanh %568 : vector<2x32xf32>
    %570 = vector.extract_strided_slice %555 {offsets = [0, 96], sizes = [2, 32], strides = [1, 1]} : vector<2x128xf32> to vector<2x32xf32>
    %571 = arith.negf %570 : vector<2x32xf32>
    %572 = math.exp %571 : vector<2x32xf32>
    %cst_153 = arith.constant 1.000000e+00 : f32
    %573 = vector.broadcast %cst_153 : f32 to vector<2x32xf32>
    %574 = arith.addf %573, %572 : vector<2x32xf32>
    %575 = arith.divf %573, %574 : vector<2x32xf32>
    %576 = arith.mulf %567, %514 : vector<2x32xf32>
    %577 = arith.mulf %561, %569 : vector<2x32xf32>
    %578 = arith.addf %576, %577 : vector<2x32xf32>
    %579 = math.tanh %578 : vector<2x32xf32>
    %580 = arith.mulf %575, %579 : vector<2x32xf32>
    %581 = vector.extract_strided_slice %552 {offsets = [0, 0], sizes = [1, 32], strides = [1, 1]} : vector<2x32xf32> to vector<1x32xf32>
    %c8_154 = arith.constant 8 : index
    %c0_155 = arith.constant 0 : index
    %582 = vector.load %arg11[%c8_154, %c0_155] : memref<32x64xf32, #tpu.memory_space<vmem>>, vector<1x32xf32>
    tpu.vector_store %arg11[%c8_154, %c0_155], %581 {strides = array<i32>} : memref<32x64xf32, #tpu.memory_space<vmem>>, vector<1x32xf32>,
    %583 = vector.extract_strided_slice %580 {offsets = [0, 0], sizes = [1, 32], strides = [1, 1]} : vector<2x32xf32> to vector<1x32xf32>
    %c7_156 = arith.constant 7 : index
    %c32_157 = arith.constant 32 : index
    %584 = vector.load %arg11[%c7_156, %c32_157] : memref<32x64xf32, #tpu.memory_space<vmem>>, vector<1x32xf32>
    tpu.vector_store %arg11[%c7_156, %c32_157], %583 {strides = array<i32>} : memref<32x64xf32, #tpu.memory_space<vmem>>, vector<1x32xf32>,
    %585 = vector.extract_strided_slice %552 {offsets = [1, 0], sizes = [1, 32], strides = [1, 1]} : vector<2x32xf32> to vector<1x32xf32>
    %c24_158 = arith.constant 24 : index
    %c0_159 = arith.constant 0 : index
    %586 = vector.load %arg11[%c24_158, %c0_159] : memref<32x64xf32, #tpu.memory_space<vmem>>, vector<1x32xf32>
    tpu.vector_store %arg11[%c24_158, %c0_159], %585 {strides = array<i32>} : memref<32x64xf32, #tpu.memory_space<vmem>>, vector<1x32xf32>,
    %587 = vector.extract_strided_slice %580 {offsets = [1, 0], sizes = [1, 32], strides = [1, 1]} : vector<2x32xf32> to vector<1x32xf32>
    %c23_160 = arith.constant 23 : index
    %c32_161 = arith.constant 32 : index
    %588 = vector.load %arg11[%c23_160, %c32_161] : memref<32x64xf32, #tpu.memory_space<vmem>>, vector<1x32xf32>
    tpu.vector_store %arg11[%c23_160, %c32_161], %587 {strides = array<i32>} : memref<32x64xf32, #tpu.memory_space<vmem>>, vector<1x32xf32>,
    %c18_162 = arith.constant 18 : index
    %c0_163 = arith.constant 0 : index
    %589 = vector.load %arg10[%c18_162, %c0_163] : memref<32x256xf32, #tpu.memory_space<vmem>>, vector<2x128xf32>
    %cst_164 = arith.constant dense<0.000000e+00> : vector<2x128xf32>
    %590 = tpu.matmul %552, %7, %cst_164 {dimension_numbers = #tpu.dot_dimension_numbers<[1], [0], [0], [1], [0, 0, 1, 1], [], []>} : vector<2x32xf32>, vector<32x128xf32>, vector<2x128xf32> -> vector<2x128xf32>
    %591 = arith.addf %589, %590 : vector<2x128xf32>
    %592 = vector.extract_strided_slice %591 {offsets = [0, 0], sizes = [2, 32], strides = [1, 1]} : vector<2x128xf32> to vector<2x32xf32>
    %593 = arith.negf %592 : vector<2x32xf32>
    %594 = math.exp %593 : vector<2x32xf32>
    %cst_165 = arith.constant 1.000000e+00 : f32
    %595 = vector.broadcast %cst_165 : f32 to vector<2x32xf32>
    %596 = arith.addf %595, %594 : vector<2x32xf32>
    %597 = arith.divf %595, %596 : vector<2x32xf32>
    %598 = vector.extract_strided_slice %591 {offsets = [0, 32], sizes = [2, 32], strides = [1, 1]} : vector<2x128xf32> to vector<2x32xf32>
    %599 = arith.negf %598 : vector<2x32xf32>
    %600 = math.exp %599 : vector<2x32xf32>
    %cst_166 = arith.constant 1.000000e+00 : f32
    %601 = vector.broadcast %cst_166 : f32 to vector<2x32xf32>
    %602 = arith.addf %601, %600 : vector<2x32xf32>
    %603 = arith.divf %601, %602 : vector<2x32xf32>
    %604 = vector.extract_strided_slice %591 {offsets = [0, 64], sizes = [2, 32], strides = [1, 1]} : vector<2x128xf32> to vector<2x32xf32>
    %605 = math.tanh %604 : vector<2x32xf32>
    %606 = vector.extract_strided_slice %591 {offsets = [0, 96], sizes = [2, 32], strides = [1, 1]} : vector<2x128xf32> to vector<2x32xf32>
    %607 = arith.negf %606 : vector<2x32xf32>
    %608 = math.exp %607 : vector<2x32xf32>
    %cst_167 = arith.constant 1.000000e+00 : f32
    %609 = vector.broadcast %cst_167 : f32 to vector<2x32xf32>
    %610 = arith.addf %609, %608 : vector<2x32xf32>
    %611 = arith.divf %609, %610 : vector<2x32xf32>
    %612 = arith.mulf %603, %550 : vector<2x32xf32>
    %613 = arith.mulf %597, %605 : vector<2x32xf32>
    %614 = arith.addf %612, %613 : vector<2x32xf32>
    %615 = math.tanh %614 : vector<2x32xf32>
    %616 = arith.mulf %611, %615 : vector<2x32xf32>
    %c12_168 = arith.constant 12 : index
    %c128_169 = arith.constant 128 : index
    %617 = vector.load %arg10[%c12_168, %c128_169] : memref<32x256xf32, #tpu.memory_space<vmem>>, vector<2x128xf32>
    %cst_170 = arith.constant dense<0.000000e+00> : vector<2x128xf32>
    %618 = tpu.matmul %580, %8, %cst_170 {dimension_numbers = #tpu.dot_dimension_numbers<[1], [0], [0], [1], [0, 0, 1, 1], [], []>} : vector<2x32xf32>, vector<32x128xf32>, vector<2x128xf32> -> vector<2x128xf32>
    %619 = arith.addf %617, %618 : vector<2x128xf32>
    %620 = vector.extract_strided_slice %619 {offsets = [0, 0], sizes = [2, 32], strides = [1, 1]} : vector<2x128xf32> to vector<2x32xf32>
    %621 = arith.negf %620 : vector<2x32xf32>
    %622 = math.exp %621 : vector<2x32xf32>
    %cst_171 = arith.constant 1.000000e+00 : f32
    %623 = vector.broadcast %cst_171 : f32 to vector<2x32xf32>
    %624 = arith.addf %623, %622 : vector<2x32xf32>
    %625 = arith.divf %623, %624 : vector<2x32xf32>
    %626 = vector.extract_strided_slice %619 {offsets = [0, 32], sizes = [2, 32], strides = [1, 1]} : vector<2x128xf32> to vector<2x32xf32>
    %627 = arith.negf %626 : vector<2x32xf32>
    %628 = math.exp %627 : vector<2x32xf32>
    %cst_172 = arith.constant 1.000000e+00 : f32
    %629 = vector.broadcast %cst_172 : f32 to vector<2x32xf32>
    %630 = arith.addf %629, %628 : vector<2x32xf32>
    %631 = arith.divf %629, %630 : vector<2x32xf32>
    %632 = vector.extract_strided_slice %619 {offsets = [0, 64], sizes = [2, 32], strides = [1, 1]} : vector<2x128xf32> to vector<2x32xf32>
    %633 = math.tanh %632 : vector<2x32xf32>
    %634 = vector.extract_strided_slice %619 {offsets = [0, 96], sizes = [2, 32], strides = [1, 1]} : vector<2x128xf32> to vector<2x32xf32>
    %635 = arith.negf %634 : vector<2x32xf32>
    %636 = math.exp %635 : vector<2x32xf32>
    %cst_173 = arith.constant 1.000000e+00 : f32
    %637 = vector.broadcast %cst_173 : f32 to vector<2x32xf32>
    %638 = arith.addf %637, %636 : vector<2x32xf32>
    %639 = arith.divf %637, %638 : vector<2x32xf32>
    %640 = arith.mulf %631, %578 : vector<2x32xf32>
    %641 = arith.mulf %625, %633 : vector<2x32xf32>
    %642 = arith.addf %640, %641 : vector<2x32xf32>
    %643 = math.tanh %642 : vector<2x32xf32>
    %644 = arith.mulf %639, %643 : vector<2x32xf32>
    %645 = vector.extract_strided_slice %616 {offsets = [0, 0], sizes = [1, 32], strides = [1, 1]} : vector<2x32xf32> to vector<1x32xf32>
    %c9_174 = arith.constant 9 : index
    %c0_175 = arith.constant 0 : index
    %646 = vector.load %arg11[%c9_174, %c0_175] : memref<32x64xf32, #tpu.memory_space<vmem>>, vector<1x32xf32>
    tpu.vector_store %arg11[%c9_174, %c0_175], %645 {strides = array<i32>} : memref<32x64xf32, #tpu.memory_space<vmem>>, vector<1x32xf32>,
    %647 = vector.extract_strided_slice %644 {offsets = [0, 0], sizes = [1, 32], strides = [1, 1]} : vector<2x32xf32> to vector<1x32xf32>
    %c6_176 = arith.constant 6 : index
    %c32_177 = arith.constant 32 : index
    %648 = vector.load %arg11[%c6_176, %c32_177] : memref<32x64xf32, #tpu.memory_space<vmem>>, vector<1x32xf32>
    tpu.vector_store %arg11[%c6_176, %c32_177], %647 {strides = array<i32>} : memref<32x64xf32, #tpu.memory_space<vmem>>, vector<1x32xf32>,
    %649 = vector.extract_strided_slice %616 {offsets = [1, 0], sizes = [1, 32], strides = [1, 1]} : vector<2x32xf32> to vector<1x32xf32>
    %c25_178 = arith.constant 25 : index
    %c0_179 = arith.constant 0 : index
    %650 = vector.load %arg11[%c25_178, %c0_179] : memref<32x64xf32, #tpu.memory_space<vmem>>, vector<1x32xf32>
    tpu.vector_store %arg11[%c25_178, %c0_179], %649 {strides = array<i32>} : memref<32x64xf32, #tpu.memory_space<vmem>>, vector<1x32xf32>,
    %651 = vector.extract_strided_slice %644 {offsets = [1, 0], sizes = [1, 32], strides = [1, 1]} : vector<2x32xf32> to vector<1x32xf32>
    %c22_180 = arith.constant 22 : index
    %c32_181 = arith.constant 32 : index
    %652 = vector.load %arg11[%c22_180, %c32_181] : memref<32x64xf32, #tpu.memory_space<vmem>>, vector<1x32xf32>
    tpu.vector_store %arg11[%c22_180, %c32_181], %651 {strides = array<i32>} : memref<32x64xf32, #tpu.memory_space<vmem>>, vector<1x32xf32>,
    %c20_182 = arith.constant 20 : index
    %c0_183 = arith.constant 0 : index
    %653 = vector.load %arg10[%c20_182, %c0_183] : memref<32x256xf32, #tpu.memory_space<vmem>>, vector<2x128xf32>
    %cst_184 = arith.constant dense<0.000000e+00> : vector<2x128xf32>
    %654 = tpu.matmul %616, %7, %cst_184 {dimension_numbers = #tpu.dot_dimension_numbers<[1], [0], [0], [1], [0, 0, 1, 1], [], []>} : vector<2x32xf32>, vector<32x128xf32>, vector<2x128xf32> -> vector<2x128xf32>
    %655 = arith.addf %653, %654 : vector<2x128xf32>
    %656 = vector.extract_strided_slice %655 {offsets = [0, 0], sizes = [2, 32], strides = [1, 1]} : vector<2x128xf32> to vector<2x32xf32>
    %657 = arith.negf %656 : vector<2x32xf32>
    %658 = math.exp %657 : vector<2x32xf32>
    %cst_185 = arith.constant 1.000000e+00 : f32
    %659 = vector.broadcast %cst_185 : f32 to vector<2x32xf32>
    %660 = arith.addf %659, %658 : vector<2x32xf32>
    %661 = arith.divf %659, %660 : vector<2x32xf32>
    %662 = vector.extract_strided_slice %655 {offsets = [0, 32], sizes = [2, 32], strides = [1, 1]} : vector<2x128xf32> to vector<2x32xf32>
    %663 = arith.negf %662 : vector<2x32xf32>
    %664 = math.exp %663 : vector<2x32xf32>
    %cst_186 = arith.constant 1.000000e+00 : f32
    %665 = vector.broadcast %cst_186 : f32 to vector<2x32xf32>
    %666 = arith.addf %665, %664 : vector<2x32xf32>
    %667 = arith.divf %665, %666 : vector<2x32xf32>
    %668 = vector.extract_strided_slice %655 {offsets = [0, 64], sizes = [2, 32], strides = [1, 1]} : vector<2x128xf32> to vector<2x32xf32>
    %669 = math.tanh %668 : vector<2x32xf32>
    %670 = vector.extract_strided_slice %655 {offsets = [0, 96], sizes = [2, 32], strides = [1, 1]} : vector<2x128xf32> to vector<2x32xf32>
    %671 = arith.negf %670 : vector<2x32xf32>
    %672 = math.exp %671 : vector<2x32xf32>
    %cst_187 = arith.constant 1.000000e+00 : f32
    %673 = vector.broadcast %cst_187 : f32 to vector<2x32xf32>
    %674 = arith.addf %673, %672 : vector<2x32xf32>
    %675 = arith.divf %673, %674 : vector<2x32xf32>
    %676 = arith.mulf %667, %614 : vector<2x32xf32>
    %677 = arith.mulf %661, %669 : vector<2x32xf32>
    %678 = arith.addf %676, %677 : vector<2x32xf32>
    %679 = math.tanh %678 : vector<2x32xf32>
    %680 = arith.mulf %675, %679 : vector<2x32xf32>
    %c10_188 = arith.constant 10 : index
    %c128_189 = arith.constant 128 : index
    %681 = vector.load %arg10[%c10_188, %c128_189] : memref<32x256xf32, #tpu.memory_space<vmem>>, vector<2x128xf32>
    %cst_190 = arith.constant dense<0.000000e+00> : vector<2x128xf32>
    %682 = tpu.matmul %644, %8, %cst_190 {dimension_numbers = #tpu.dot_dimension_numbers<[1], [0], [0], [1], [0, 0, 1, 1], [], []>} : vector<2x32xf32>, vector<32x128xf32>, vector<2x128xf32> -> vector<2x128xf32>
    %683 = arith.addf %681, %682 : vector<2x128xf32>
    %684 = vector.extract_strided_slice %683 {offsets = [0, 0], sizes = [2, 32], strides = [1, 1]} : vector<2x128xf32> to vector<2x32xf32>
    %685 = arith.negf %684 : vector<2x32xf32>
    %686 = math.exp %685 : vector<2x32xf32>
    %cst_191 = arith.constant 1.000000e+00 : f32
    %687 = vector.broadcast %cst_191 : f32 to vector<2x32xf32>
    %688 = arith.addf %687, %686 : vector<2x32xf32>
    %689 = arith.divf %687, %688 : vector<2x32xf32>
    %690 = vector.extract_strided_slice %683 {offsets = [0, 32], sizes = [2, 32], strides = [1, 1]} : vector<2x128xf32> to vector<2x32xf32>
    %691 = arith.negf %690 : vector<2x32xf32>
    %692 = math.exp %691 : vector<2x32xf32>
    %cst_192 = arith.constant 1.000000e+00 : f32
    %693 = vector.broadcast %cst_192 : f32 to vector<2x32xf32>
    %694 = arith.addf %693, %692 : vector<2x32xf32>
    %695 = arith.divf %693, %694 : vector<2x32xf32>
    %696 = vector.extract_strided_slice %683 {offsets = [0, 64], sizes = [2, 32], strides = [1, 1]} : vector<2x128xf32> to vector<2x32xf32>
    %697 = math.tanh %696 : vector<2x32xf32>
    %698 = vector.extract_strided_slice %683 {offsets = [0, 96], sizes = [2, 32], strides = [1, 1]} : vector<2x128xf32> to vector<2x32xf32>
    %699 = arith.negf %698 : vector<2x32xf32>
    %700 = math.exp %699 : vector<2x32xf32>
    %cst_193 = arith.constant 1.000000e+00 : f32
    %701 = vector.broadcast %cst_193 : f32 to vector<2x32xf32>
    %702 = arith.addf %701, %700 : vector<2x32xf32>
    %703 = arith.divf %701, %702 : vector<2x32xf32>
    %704 = arith.mulf %695, %642 : vector<2x32xf32>
    %705 = arith.mulf %689, %697 : vector<2x32xf32>
    %706 = arith.addf %704, %705 : vector<2x32xf32>
    %707 = math.tanh %706 : vector<2x32xf32>
    %708 = arith.mulf %703, %707 : vector<2x32xf32>
    %709 = vector.extract_strided_slice %680 {offsets = [0, 0], sizes = [1, 32], strides = [1, 1]} : vector<2x32xf32> to vector<1x32xf32>
    %c10_194 = arith.constant 10 : index
    %c0_195 = arith.constant 0 : index
    %710 = vector.load %arg11[%c10_194, %c0_195] : memref<32x64xf32, #tpu.memory_space<vmem>>, vector<1x32xf32>
    tpu.vector_store %arg11[%c10_194, %c0_195], %709 {strides = array<i32>} : memref<32x64xf32, #tpu.memory_space<vmem>>, vector<1x32xf32>,
    %711 = vector.extract_strided_slice %708 {offsets = [0, 0], sizes = [1, 32], strides = [1, 1]} : vector<2x32xf32> to vector<1x32xf32>
    %c5_196 = arith.constant 5 : index
    %c32_197 = arith.constant 32 : index
    %712 = vector.load %arg11[%c5_196, %c32_197] : memref<32x64xf32, #tpu.memory_space<vmem>>, vector<1x32xf32>
    tpu.vector_store %arg11[%c5_196, %c32_197], %711 {strides = array<i32>} : memref<32x64xf32, #tpu.memory_space<vmem>>, vector<1x32xf32>,
    %713 = vector.extract_strided_slice %680 {offsets = [1, 0], sizes = [1, 32], strides = [1, 1]} : vector<2x32xf32> to vector<1x32xf32>
    %c26_198 = arith.constant 26 : index
    %c0_199 = arith.constant 0 : index
    %714 = vector.load %arg11[%c26_198, %c0_199] : memref<32x64xf32, #tpu.memory_space<vmem>>, vector<1x32xf32>
    tpu.vector_store %arg11[%c26_198, %c0_199], %713 {strides = array<i32>} : memref<32x64xf32, #tpu.memory_space<vmem>>, vector<1x32xf32>,
    %715 = vector.extract_strided_slice %708 {offsets = [1, 0], sizes = [1, 32], strides = [1, 1]} : vector<2x32xf32> to vector<1x32xf32>
    %c21_200 = arith.constant 21 : index
    %c32_201 = arith.constant 32 : index
    %716 = vector.load %arg11[%c21_200, %c32_201] : memref<32x64xf32, #tpu.memory_space<vmem>>, vector<1x32xf32>
    tpu.vector_store %arg11[%c21_200, %c32_201], %715 {strides = array<i32>} : memref<32x64xf32, #tpu.memory_space<vmem>>, vector<1x32xf32>,
    %c22_202 = arith.constant 22 : index
    %c0_203 = arith.constant 0 : index
    %717 = vector.load %arg10[%c22_202, %c0_203] : memref<32x256xf32, #tpu.memory_space<vmem>>, vector<2x128xf32>
    %cst_204 = arith.constant dense<0.000000e+00> : vector<2x128xf32>
    %718 = tpu.matmul %680, %7, %cst_204 {dimension_numbers = #tpu.dot_dimension_numbers<[1], [0], [0], [1], [0, 0, 1, 1], [], []>} : vector<2x32xf32>, vector<32x128xf32>, vector<2x128xf32> -> vector<2x128xf32>
    %719 = arith.addf %717, %718 : vector<2x128xf32>
    %720 = vector.extract_strided_slice %719 {offsets = [0, 0], sizes = [2, 32], strides = [1, 1]} : vector<2x128xf32> to vector<2x32xf32>
    %721 = arith.negf %720 : vector<2x32xf32>
    %722 = math.exp %721 : vector<2x32xf32>
    %cst_205 = arith.constant 1.000000e+00 : f32
    %723 = vector.broadcast %cst_205 : f32 to vector<2x32xf32>
    %724 = arith.addf %723, %722 : vector<2x32xf32>
    %725 = arith.divf %723, %724 : vector<2x32xf32>
    %726 = vector.extract_strided_slice %719 {offsets = [0, 32], sizes = [2, 32], strides = [1, 1]} : vector<2x128xf32> to vector<2x32xf32>
    %727 = arith.negf %726 : vector<2x32xf32>
    %728 = math.exp %727 : vector<2x32xf32>
    %cst_206 = arith.constant 1.000000e+00 : f32
    %729 = vector.broadcast %cst_206 : f32 to vector<2x32xf32>
    %730 = arith.addf %729, %728 : vector<2x32xf32>
    %731 = arith.divf %729, %730 : vector<2x32xf32>
    %732 = vector.extract_strided_slice %719 {offsets = [0, 64], sizes = [2, 32], strides = [1, 1]} : vector<2x128xf32> to vector<2x32xf32>
    %733 = math.tanh %732 : vector<2x32xf32>
    %734 = vector.extract_strided_slice %719 {offsets = [0, 96], sizes = [2, 32], strides = [1, 1]} : vector<2x128xf32> to vector<2x32xf32>
    %735 = arith.negf %734 : vector<2x32xf32>
    %736 = math.exp %735 : vector<2x32xf32>
    %cst_207 = arith.constant 1.000000e+00 : f32
    %737 = vector.broadcast %cst_207 : f32 to vector<2x32xf32>
    %738 = arith.addf %737, %736 : vector<2x32xf32>
    %739 = arith.divf %737, %738 : vector<2x32xf32>
    %740 = arith.mulf %731, %678 : vector<2x32xf32>
    %741 = arith.mulf %725, %733 : vector<2x32xf32>
    %742 = arith.addf %740, %741 : vector<2x32xf32>
    %743 = math.tanh %742 : vector<2x32xf32>
    %744 = arith.mulf %739, %743 : vector<2x32xf32>
    %c8_208 = arith.constant 8 : index
    %c128_209 = arith.constant 128 : index
    %745 = vector.load %arg10[%c8_208, %c128_209] : memref<32x256xf32, #tpu.memory_space<vmem>>, vector<2x128xf32>
    %cst_210 = arith.constant dense<0.000000e+00> : vector<2x128xf32>
    %746 = tpu.matmul %708, %8, %cst_210 {dimension_numbers = #tpu.dot_dimension_numbers<[1], [0], [0], [1], [0, 0, 1, 1], [], []>} : vector<2x32xf32>, vector<32x128xf32>, vector<2x128xf32> -> vector<2x128xf32>
    %747 = arith.addf %745, %746 : vector<2x128xf32>
    %748 = vector.extract_strided_slice %747 {offsets = [0, 0], sizes = [2, 32], strides = [1, 1]} : vector<2x128xf32> to vector<2x32xf32>
    %749 = arith.negf %748 : vector<2x32xf32>
    %750 = math.exp %749 : vector<2x32xf32>
    %cst_211 = arith.constant 1.000000e+00 : f32
    %751 = vector.broadcast %cst_211 : f32 to vector<2x32xf32>
    %752 = arith.addf %751, %750 : vector<2x32xf32>
    %753 = arith.divf %751, %752 : vector<2x32xf32>
    %754 = vector.extract_strided_slice %747 {offsets = [0, 32], sizes = [2, 32], strides = [1, 1]} : vector<2x128xf32> to vector<2x32xf32>
    %755 = arith.negf %754 : vector<2x32xf32>
    %756 = math.exp %755 : vector<2x32xf32>
    %cst_212 = arith.constant 1.000000e+00 : f32
    %757 = vector.broadcast %cst_212 : f32 to vector<2x32xf32>
    %758 = arith.addf %757, %756 : vector<2x32xf32>
    %759 = arith.divf %757, %758 : vector<2x32xf32>
    %760 = vector.extract_strided_slice %747 {offsets = [0, 64], sizes = [2, 32], strides = [1, 1]} : vector<2x128xf32> to vector<2x32xf32>
    %761 = math.tanh %760 : vector<2x32xf32>
    %762 = vector.extract_strided_slice %747 {offsets = [0, 96], sizes = [2, 32], strides = [1, 1]} : vector<2x128xf32> to vector<2x32xf32>
    %763 = arith.negf %762 : vector<2x32xf32>
    %764 = math.exp %763 : vector<2x32xf32>
    %cst_213 = arith.constant 1.000000e+00 : f32
    %765 = vector.broadcast %cst_213 : f32 to vector<2x32xf32>
    %766 = arith.addf %765, %764 : vector<2x32xf32>
    %767 = arith.divf %765, %766 : vector<2x32xf32>
    %768 = arith.mulf %759, %706 : vector<2x32xf32>
    %769 = arith.mulf %753, %761 : vector<2x32xf32>
    %770 = arith.addf %768, %769 : vector<2x32xf32>
    %771 = math.tanh %770 : vector<2x32xf32>
    %772 = arith.mulf %767, %771 : vector<2x32xf32>
    %773 = vector.extract_strided_slice %744 {offsets = [0, 0], sizes = [1, 32], strides = [1, 1]} : vector<2x32xf32> to vector<1x32xf32>
    %c11_214 = arith.constant 11 : index
    %c0_215 = arith.constant 0 : index
    %774 = vector.load %arg11[%c11_214, %c0_215] : memref<32x64xf32, #tpu.memory_space<vmem>>, vector<1x32xf32>
    tpu.vector_store %arg11[%c11_214, %c0_215], %773 {strides = array<i32>} : memref<32x64xf32, #tpu.memory_space<vmem>>, vector<1x32xf32>,
    %775 = vector.extract_strided_slice %772 {offsets = [0, 0], sizes = [1, 32], strides = [1, 1]} : vector<2x32xf32> to vector<1x32xf32>
    %c4_216 = arith.constant 4 : index
    %c32_217 = arith.constant 32 : index
    %776 = vector.load %arg11[%c4_216, %c32_217] : memref<32x64xf32, #tpu.memory_space<vmem>>, vector<1x32xf32>
    tpu.vector_store %arg11[%c4_216, %c32_217], %775 {strides = array<i32>} : memref<32x64xf32, #tpu.memory_space<vmem>>, vector<1x32xf32>,
    %777 = vector.extract_strided_slice %744 {offsets = [1, 0], sizes = [1, 32], strides = [1, 1]} : vector<2x32xf32> to vector<1x32xf32>
    %c27_218 = arith.constant 27 : index
    %c0_219 = arith.constant 0 : index
    %778 = vector.load %arg11[%c27_218, %c0_219] : memref<32x64xf32, #tpu.memory_space<vmem>>, vector<1x32xf32>
    tpu.vector_store %arg11[%c27_218, %c0_219], %777 {strides = array<i32>} : memref<32x64xf32, #tpu.memory_space<vmem>>, vector<1x32xf32>,
    %779 = vector.extract_strided_slice %772 {offsets = [1, 0], sizes = [1, 32], strides = [1, 1]} : vector<2x32xf32> to vector<1x32xf32>
    %c20_220 = arith.constant 20 : index
    %c32_221 = arith.constant 32 : index
    %780 = vector.load %arg11[%c20_220, %c32_221] : memref<32x64xf32, #tpu.memory_space<vmem>>, vector<1x32xf32>
    tpu.vector_store %arg11[%c20_220, %c32_221], %779 {strides = array<i32>} : memref<32x64xf32, #tpu.memory_space<vmem>>, vector<1x32xf32>,
    %c24_222 = arith.constant 24 : index
    %c0_223 = arith.constant 0 : index
    %781 = vector.load %arg10[%c24_222, %c0_223] : memref<32x256xf32, #tpu.memory_space<vmem>>, vector<2x128xf32>
    %cst_224 = arith.constant dense<0.000000e+00> : vector<2x128xf32>
    %782 = tpu.matmul %744, %7, %cst_224 {dimension_numbers = #tpu.dot_dimension_numbers<[1], [0], [0], [1], [0, 0, 1, 1], [], []>} : vector<2x32xf32>, vector<32x128xf32>, vector<2x128xf32> -> vector<2x128xf32>
    %783 = arith.addf %781, %782 : vector<2x128xf32>
    %784 = vector.extract_strided_slice %783 {offsets = [0, 0], sizes = [2, 32], strides = [1, 1]} : vector<2x128xf32> to vector<2x32xf32>
    %785 = arith.negf %784 : vector<2x32xf32>
    %786 = math.exp %785 : vector<2x32xf32>
    %cst_225 = arith.constant 1.000000e+00 : f32
    %787 = vector.broadcast %cst_225 : f32 to vector<2x32xf32>
    %788 = arith.addf %787, %786 : vector<2x32xf32>
    %789 = arith.divf %787, %788 : vector<2x32xf32>
    %790 = vector.extract_strided_slice %783 {offsets = [0, 32], sizes = [2, 32], strides = [1, 1]} : vector<2x128xf32> to vector<2x32xf32>
    %791 = arith.negf %790 : vector<2x32xf32>
    %792 = math.exp %791 : vector<2x32xf32>
    %cst_226 = arith.constant 1.000000e+00 : f32
    %793 = vector.broadcast %cst_226 : f32 to vector<2x32xf32>
    %794 = arith.addf %793, %792 : vector<2x32xf32>
    %795 = arith.divf %793, %794 : vector<2x32xf32>
    %796 = vector.extract_strided_slice %783 {offsets = [0, 64], sizes = [2, 32], strides = [1, 1]} : vector<2x128xf32> to vector<2x32xf32>
    %797 = math.tanh %796 : vector<2x32xf32>
    %798 = vector.extract_strided_slice %783 {offsets = [0, 96], sizes = [2, 32], strides = [1, 1]} : vector<2x128xf32> to vector<2x32xf32>
    %799 = arith.negf %798 : vector<2x32xf32>
    %800 = math.exp %799 : vector<2x32xf32>
    %cst_227 = arith.constant 1.000000e+00 : f32
    %801 = vector.broadcast %cst_227 : f32 to vector<2x32xf32>
    %802 = arith.addf %801, %800 : vector<2x32xf32>
    %803 = arith.divf %801, %802 : vector<2x32xf32>
    %804 = arith.mulf %795, %742 : vector<2x32xf32>
    %805 = arith.mulf %789, %797 : vector<2x32xf32>
    %806 = arith.addf %804, %805 : vector<2x32xf32>
    %807 = math.tanh %806 : vector<2x32xf32>
    %808 = arith.mulf %803, %807 : vector<2x32xf32>
    %c6_228 = arith.constant 6 : index
    %c128_229 = arith.constant 128 : index
    %809 = vector.load %arg10[%c6_228, %c128_229] : memref<32x256xf32, #tpu.memory_space<vmem>>, vector<2x128xf32>
    %cst_230 = arith.constant dense<0.000000e+00> : vector<2x128xf32>
    %810 = tpu.matmul %772, %8, %cst_230 {dimension_numbers = #tpu.dot_dimension_numbers<[1], [0], [0], [1], [0, 0, 1, 1], [], []>} : vector<2x32xf32>, vector<32x128xf32>, vector<2x128xf32> -> vector<2x128xf32>
    %811 = arith.addf %809, %810 : vector<2x128xf32>
    %812 = vector.extract_strided_slice %811 {offsets = [0, 0], sizes = [2, 32], strides = [1, 1]} : vector<2x128xf32> to vector<2x32xf32>
    %813 = arith.negf %812 : vector<2x32xf32>
    %814 = math.exp %813 : vector<2x32xf32>
    %cst_231 = arith.constant 1.000000e+00 : f32
    %815 = vector.broadcast %cst_231 : f32 to vector<2x32xf32>
    %816 = arith.addf %815, %814 : vector<2x32xf32>
    %817 = arith.divf %815, %816 : vector<2x32xf32>
    %818 = vector.extract_strided_slice %811 {offsets = [0, 32], sizes = [2, 32], strides = [1, 1]} : vector<2x128xf32> to vector<2x32xf32>
    %819 = arith.negf %818 : vector<2x32xf32>
    %820 = math.exp %819 : vector<2x32xf32>
    %cst_232 = arith.constant 1.000000e+00 : f32
    %821 = vector.broadcast %cst_232 : f32 to vector<2x32xf32>
    %822 = arith.addf %821, %820 : vector<2x32xf32>
    %823 = arith.divf %821, %822 : vector<2x32xf32>
    %824 = vector.extract_strided_slice %811 {offsets = [0, 64], sizes = [2, 32], strides = [1, 1]} : vector<2x128xf32> to vector<2x32xf32>
    %825 = math.tanh %824 : vector<2x32xf32>
    %826 = vector.extract_strided_slice %811 {offsets = [0, 96], sizes = [2, 32], strides = [1, 1]} : vector<2x128xf32> to vector<2x32xf32>
    %827 = arith.negf %826 : vector<2x32xf32>
    %828 = math.exp %827 : vector<2x32xf32>
    %cst_233 = arith.constant 1.000000e+00 : f32
    %829 = vector.broadcast %cst_233 : f32 to vector<2x32xf32>
    %830 = arith.addf %829, %828 : vector<2x32xf32>
    %831 = arith.divf %829, %830 : vector<2x32xf32>
    %832 = arith.mulf %823, %770 : vector<2x32xf32>
    %833 = arith.mulf %817, %825 : vector<2x32xf32>
    %834 = arith.addf %832, %833 : vector<2x32xf32>
    %835 = math.tanh %834 : vector<2x32xf32>
    %836 = arith.mulf %831, %835 : vector<2x32xf32>
    %837 = vector.extract_strided_slice %808 {offsets = [0, 0], sizes = [1, 32], strides = [1, 1]} : vector<2x32xf32> to vector<1x32xf32>
    %c12_234 = arith.constant 12 : index
    %c0_235 = arith.constant 0 : index
    %838 = vector.load %arg11[%c12_234, %c0_235] : memref<32x64xf32, #tpu.memory_space<vmem>>, vector<1x32xf32>
    tpu.vector_store %arg11[%c12_234, %c0_235], %837 {strides = array<i32>} : memref<32x64xf32, #tpu.memory_space<vmem>>, vector<1x32xf32>,
    %839 = vector.extract_strided_slice %836 {offsets = [0, 0], sizes = [1, 32], strides = [1, 1]} : vector<2x32xf32> to vector<1x32xf32>
    %c3_236 = arith.constant 3 : index
    %c32_237 = arith.constant 32 : index
    %840 = vector.load %arg11[%c3_236, %c32_237] : memref<32x64xf32, #tpu.memory_space<vmem>>, vector<1x32xf32>
    tpu.vector_store %arg11[%c3_236, %c32_237], %839 {strides = array<i32>} : memref<32x64xf32, #tpu.memory_space<vmem>>, vector<1x32xf32>,
    %841 = vector.extract_strided_slice %808 {offsets = [1, 0], sizes = [1, 32], strides = [1, 1]} : vector<2x32xf32> to vector<1x32xf32>
    %c28_238 = arith.constant 28 : index
    %c0_239 = arith.constant 0 : index
    %842 = vector.load %arg11[%c28_238, %c0_239] : memref<32x64xf32, #tpu.memory_space<vmem>>, vector<1x32xf32>
    tpu.vector_store %arg11[%c28_238, %c0_239], %841 {strides = array<i32>} : memref<32x64xf32, #tpu.memory_space<vmem>>, vector<1x32xf32>,
    %843 = vector.extract_strided_slice %836 {offsets = [1, 0], sizes = [1, 32], strides = [1, 1]} : vector<2x32xf32> to vector<1x32xf32>
    %c19_240 = arith.constant 19 : index
    %c32_241 = arith.constant 32 : index
    %844 = vector.load %arg11[%c19_240, %c32_241] : memref<32x64xf32, #tpu.memory_space<vmem>>, vector<1x32xf32>
    tpu.vector_store %arg11[%c19_240, %c32_241], %843 {strides = array<i32>} : memref<32x64xf32, #tpu.memory_space<vmem>>, vector<1x32xf32>,
    %c26_242 = arith.constant 26 : index
    %c0_243 = arith.constant 0 : index
    %845 = vector.load %arg10[%c26_242, %c0_243] : memref<32x256xf32, #tpu.memory_space<vmem>>, vector<2x128xf32>
    %cst_244 = arith.constant dense<0.000000e+00> : vector<2x128xf32>
    %846 = tpu.matmul %808, %7, %cst_244 {dimension_numbers = #tpu.dot_dimension_numbers<[1], [0], [0], [1], [0, 0, 1, 1], [], []>} : vector<2x32xf32>, vector<32x128xf32>, vector<2x128xf32> -> vector<2x128xf32>
    %847 = arith.addf %845, %846 : vector<2x128xf32>
    %848 = vector.extract_strided_slice %847 {offsets = [0, 0], sizes = [2, 32], strides = [1, 1]} : vector<2x128xf32> to vector<2x32xf32>
    %849 = arith.negf %848 : vector<2x32xf32>
    %850 = math.exp %849 : vector<2x32xf32>
    %cst_245 = arith.constant 1.000000e+00 : f32
    %851 = vector.broadcast %cst_245 : f32 to vector<2x32xf32>
    %852 = arith.addf %851, %850 : vector<2x32xf32>
    %853 = arith.divf %851, %852 : vector<2x32xf32>
    %854 = vector.extract_strided_slice %847 {offsets = [0, 32], sizes = [2, 32], strides = [1, 1]} : vector<2x128xf32> to vector<2x32xf32>
    %855 = arith.negf %854 : vector<2x32xf32>
    %856 = math.exp %855 : vector<2x32xf32>
    %cst_246 = arith.constant 1.000000e+00 : f32
    %857 = vector.broadcast %cst_246 : f32 to vector<2x32xf32>
    %858 = arith.addf %857, %856 : vector<2x32xf32>
    %859 = arith.divf %857, %858 : vector<2x32xf32>
    %860 = vector.extract_strided_slice %847 {offsets = [0, 64], sizes = [2, 32], strides = [1, 1]} : vector<2x128xf32> to vector<2x32xf32>
    %861 = math.tanh %860 : vector<2x32xf32>
    %862 = vector.extract_strided_slice %847 {offsets = [0, 96], sizes = [2, 32], strides = [1, 1]} : vector<2x128xf32> to vector<2x32xf32>
    %863 = arith.negf %862 : vector<2x32xf32>
    %864 = math.exp %863 : vector<2x32xf32>
    %cst_247 = arith.constant 1.000000e+00 : f32
    %865 = vector.broadcast %cst_247 : f32 to vector<2x32xf32>
    %866 = arith.addf %865, %864 : vector<2x32xf32>
    %867 = arith.divf %865, %866 : vector<2x32xf32>
    %868 = arith.mulf %859, %806 : vector<2x32xf32>
    %869 = arith.mulf %853, %861 : vector<2x32xf32>
    %870 = arith.addf %868, %869 : vector<2x32xf32>
    %871 = math.tanh %870 : vector<2x32xf32>
    %872 = arith.mulf %867, %871 : vector<2x32xf32>
    %c4_248 = arith.constant 4 : index
    %c128_249 = arith.constant 128 : index
    %873 = vector.load %arg10[%c4_248, %c128_249] : memref<32x256xf32, #tpu.memory_space<vmem>>, vector<2x128xf32>
    %cst_250 = arith.constant dense<0.000000e+00> : vector<2x128xf32>
    %874 = tpu.matmul %836, %8, %cst_250 {dimension_numbers = #tpu.dot_dimension_numbers<[1], [0], [0], [1], [0, 0, 1, 1], [], []>} : vector<2x32xf32>, vector<32x128xf32>, vector<2x128xf32> -> vector<2x128xf32>
    %875 = arith.addf %873, %874 : vector<2x128xf32>
    %876 = vector.extract_strided_slice %875 {offsets = [0, 0], sizes = [2, 32], strides = [1, 1]} : vector<2x128xf32> to vector<2x32xf32>
    %877 = arith.negf %876 : vector<2x32xf32>
    %878 = math.exp %877 : vector<2x32xf32>
    %cst_251 = arith.constant 1.000000e+00 : f32
    %879 = vector.broadcast %cst_251 : f32 to vector<2x32xf32>
    %880 = arith.addf %879, %878 : vector<2x32xf32>
    %881 = arith.divf %879, %880 : vector<2x32xf32>
    %882 = vector.extract_strided_slice %875 {offsets = [0, 32], sizes = [2, 32], strides = [1, 1]} : vector<2x128xf32> to vector<2x32xf32>
    %883 = arith.negf %882 : vector<2x32xf32>
    %884 = math.exp %883 : vector<2x32xf32>
    %cst_252 = arith.constant 1.000000e+00 : f32
    %885 = vector.broadcast %cst_252 : f32 to vector<2x32xf32>
    %886 = arith.addf %885, %884 : vector<2x32xf32>
    %887 = arith.divf %885, %886 : vector<2x32xf32>
    %888 = vector.extract_strided_slice %875 {offsets = [0, 64], sizes = [2, 32], strides = [1, 1]} : vector<2x128xf32> to vector<2x32xf32>
    %889 = math.tanh %888 : vector<2x32xf32>
    %890 = vector.extract_strided_slice %875 {offsets = [0, 96], sizes = [2, 32], strides = [1, 1]} : vector<2x128xf32> to vector<2x32xf32>
    %891 = arith.negf %890 : vector<2x32xf32>
    %892 = math.exp %891 : vector<2x32xf32>
    %cst_253 = arith.constant 1.000000e+00 : f32
    %893 = vector.broadcast %cst_253 : f32 to vector<2x32xf32>
    %894 = arith.addf %893, %892 : vector<2x32xf32>
    %895 = arith.divf %893, %894 : vector<2x32xf32>
    %896 = arith.mulf %887, %834 : vector<2x32xf32>
    %897 = arith.mulf %881, %889 : vector<2x32xf32>
    %898 = arith.addf %896, %897 : vector<2x32xf32>
    %899 = math.tanh %898 : vector<2x32xf32>
    %900 = arith.mulf %895, %899 : vector<2x32xf32>
    %901 = vector.extract_strided_slice %872 {offsets = [0, 0], sizes = [1, 32], strides = [1, 1]} : vector<2x32xf32> to vector<1x32xf32>
    %c13_254 = arith.constant 13 : index
    %c0_255 = arith.constant 0 : index
    %902 = vector.load %arg11[%c13_254, %c0_255] : memref<32x64xf32, #tpu.memory_space<vmem>>, vector<1x32xf32>
    tpu.vector_store %arg11[%c13_254, %c0_255], %901 {strides = array<i32>} : memref<32x64xf32, #tpu.memory_space<vmem>>, vector<1x32xf32>,
    %903 = vector.extract_strided_slice %900 {offsets = [0, 0], sizes = [1, 32], strides = [1, 1]} : vector<2x32xf32> to vector<1x32xf32>
    %c2_256 = arith.constant 2 : index
    %c32_257 = arith.constant 32 : index
    %904 = vector.load %arg11[%c2_256, %c32_257] : memref<32x64xf32, #tpu.memory_space<vmem>>, vector<1x32xf32>
    tpu.vector_store %arg11[%c2_256, %c32_257], %903 {strides = array<i32>} : memref<32x64xf32, #tpu.memory_space<vmem>>, vector<1x32xf32>,
    %905 = vector.extract_strided_slice %872 {offsets = [1, 0], sizes = [1, 32], strides = [1, 1]} : vector<2x32xf32> to vector<1x32xf32>
    %c29_258 = arith.constant 29 : index
    %c0_259 = arith.constant 0 : index
    %906 = vector.load %arg11[%c29_258, %c0_259] : memref<32x64xf32, #tpu.memory_space<vmem>>, vector<1x32xf32>
    tpu.vector_store %arg11[%c29_258, %c0_259], %905 {strides = array<i32>} : memref<32x64xf32, #tpu.memory_space<vmem>>, vector<1x32xf32>,
    %907 = vector.extract_strided_slice %900 {offsets = [1, 0], sizes = [1, 32], strides = [1, 1]} : vector<2x32xf32> to vector<1x32xf32>
    %c18_260 = arith.constant 18 : index
    %c32_261 = arith.constant 32 : index
    %908 = vector.load %arg11[%c18_260, %c32_261] : memref<32x64xf32, #tpu.memory_space<vmem>>, vector<1x32xf32>
    tpu.vector_store %arg11[%c18_260, %c32_261], %907 {strides = array<i32>} : memref<32x64xf32, #tpu.memory_space<vmem>>, vector<1x32xf32>,
    %c28_262 = arith.constant 28 : index
    %c0_263 = arith.constant 0 : index
    %909 = vector.load %arg10[%c28_262, %c0_263] : memref<32x256xf32, #tpu.memory_space<vmem>>, vector<2x128xf32>
    %cst_264 = arith.constant dense<0.000000e+00> : vector<2x128xf32>
    %910 = tpu.matmul %872, %7, %cst_264 {dimension_numbers = #tpu.dot_dimension_numbers<[1], [0], [0], [1], [0, 0, 1, 1], [], []>} : vector<2x32xf32>, vector<32x128xf32>, vector<2x128xf32> -> vector<2x128xf32>
    %911 = arith.addf %909, %910 : vector<2x128xf32>
    %912 = vector.extract_strided_slice %911 {offsets = [0, 0], sizes = [2, 32], strides = [1, 1]} : vector<2x128xf32> to vector<2x32xf32>
    %913 = arith.negf %912 : vector<2x32xf32>
    %914 = math.exp %913 : vector<2x32xf32>
    %cst_265 = arith.constant 1.000000e+00 : f32
    %915 = vector.broadcast %cst_265 : f32 to vector<2x32xf32>
    %916 = arith.addf %915, %914 : vector<2x32xf32>
    %917 = arith.divf %915, %916 : vector<2x32xf32>
    %918 = vector.extract_strided_slice %911 {offsets = [0, 32], sizes = [2, 32], strides = [1, 1]} : vector<2x128xf32> to vector<2x32xf32>
    %919 = arith.negf %918 : vector<2x32xf32>
    %920 = math.exp %919 : vector<2x32xf32>
    %cst_266 = arith.constant 1.000000e+00 : f32
    %921 = vector.broadcast %cst_266 : f32 to vector<2x32xf32>
    %922 = arith.addf %921, %920 : vector<2x32xf32>
    %923 = arith.divf %921, %922 : vector<2x32xf32>
    %924 = vector.extract_strided_slice %911 {offsets = [0, 64], sizes = [2, 32], strides = [1, 1]} : vector<2x128xf32> to vector<2x32xf32>
    %925 = math.tanh %924 : vector<2x32xf32>
    %926 = vector.extract_strided_slice %911 {offsets = [0, 96], sizes = [2, 32], strides = [1, 1]} : vector<2x128xf32> to vector<2x32xf32>
    %927 = arith.negf %926 : vector<2x32xf32>
    %928 = math.exp %927 : vector<2x32xf32>
    %cst_267 = arith.constant 1.000000e+00 : f32
    %929 = vector.broadcast %cst_267 : f32 to vector<2x32xf32>
    %930 = arith.addf %929, %928 : vector<2x32xf32>
    %931 = arith.divf %929, %930 : vector<2x32xf32>
    %932 = arith.mulf %923, %870 : vector<2x32xf32>
    %933 = arith.mulf %917, %925 : vector<2x32xf32>
    %934 = arith.addf %932, %933 : vector<2x32xf32>
    %935 = math.tanh %934 : vector<2x32xf32>
    %936 = arith.mulf %931, %935 : vector<2x32xf32>
    %c2_268 = arith.constant 2 : index
    %c128_269 = arith.constant 128 : index
    %937 = vector.load %arg10[%c2_268, %c128_269] : memref<32x256xf32, #tpu.memory_space<vmem>>, vector<2x128xf32>
    %cst_270 = arith.constant dense<0.000000e+00> : vector<2x128xf32>
    %938 = tpu.matmul %900, %8, %cst_270 {dimension_numbers = #tpu.dot_dimension_numbers<[1], [0], [0], [1], [0, 0, 1, 1], [], []>} : vector<2x32xf32>, vector<32x128xf32>, vector<2x128xf32> -> vector<2x128xf32>
    %939 = arith.addf %937, %938 : vector<2x128xf32>
    %940 = vector.extract_strided_slice %939 {offsets = [0, 0], sizes = [2, 32], strides = [1, 1]} : vector<2x128xf32> to vector<2x32xf32>
    %941 = arith.negf %940 : vector<2x32xf32>
    %942 = math.exp %941 : vector<2x32xf32>
    %cst_271 = arith.constant 1.000000e+00 : f32
    %943 = vector.broadcast %cst_271 : f32 to vector<2x32xf32>
    %944 = arith.addf %943, %942 : vector<2x32xf32>
    %945 = arith.divf %943, %944 : vector<2x32xf32>
    %946 = vector.extract_strided_slice %939 {offsets = [0, 32], sizes = [2, 32], strides = [1, 1]} : vector<2x128xf32> to vector<2x32xf32>
    %947 = arith.negf %946 : vector<2x32xf32>
    %948 = math.exp %947 : vector<2x32xf32>
    %cst_272 = arith.constant 1.000000e+00 : f32
    %949 = vector.broadcast %cst_272 : f32 to vector<2x32xf32>
    %950 = arith.addf %949, %948 : vector<2x32xf32>
    %951 = arith.divf %949, %950 : vector<2x32xf32>
    %952 = vector.extract_strided_slice %939 {offsets = [0, 64], sizes = [2, 32], strides = [1, 1]} : vector<2x128xf32> to vector<2x32xf32>
    %953 = math.tanh %952 : vector<2x32xf32>
    %954 = vector.extract_strided_slice %939 {offsets = [0, 96], sizes = [2, 32], strides = [1, 1]} : vector<2x128xf32> to vector<2x32xf32>
    %955 = arith.negf %954 : vector<2x32xf32>
    %956 = math.exp %955 : vector<2x32xf32>
    %cst_273 = arith.constant 1.000000e+00 : f32
    %957 = vector.broadcast %cst_273 : f32 to vector<2x32xf32>
    %958 = arith.addf %957, %956 : vector<2x32xf32>
    %959 = arith.divf %957, %958 : vector<2x32xf32>
    %960 = arith.mulf %951, %898 : vector<2x32xf32>
    %961 = arith.mulf %945, %953 : vector<2x32xf32>
    %962 = arith.addf %960, %961 : vector<2x32xf32>
    %963 = math.tanh %962 : vector<2x32xf32>
    %964 = arith.mulf %959, %963 : vector<2x32xf32>
    %965 = vector.extract_strided_slice %936 {offsets = [0, 0], sizes = [1, 32], strides = [1, 1]} : vector<2x32xf32> to vector<1x32xf32>
    %c14_274 = arith.constant 14 : index
    %c0_275 = arith.constant 0 : index
    %966 = vector.load %arg11[%c14_274, %c0_275] : memref<32x64xf32, #tpu.memory_space<vmem>>, vector<1x32xf32>
    tpu.vector_store %arg11[%c14_274, %c0_275], %965 {strides = array<i32>} : memref<32x64xf32, #tpu.memory_space<vmem>>, vector<1x32xf32>,
    %967 = vector.extract_strided_slice %964 {offsets = [0, 0], sizes = [1, 32], strides = [1, 1]} : vector<2x32xf32> to vector<1x32xf32>
    %c1_276 = arith.constant 1 : index
    %c32_277 = arith.constant 32 : index
    %968 = vector.load %arg11[%c1_276, %c32_277] : memref<32x64xf32, #tpu.memory_space<vmem>>, vector<1x32xf32>
    tpu.vector_store %arg11[%c1_276, %c32_277], %967 {strides = array<i32>} : memref<32x64xf32, #tpu.memory_space<vmem>>, vector<1x32xf32>,
    %969 = vector.extract_strided_slice %936 {offsets = [1, 0], sizes = [1, 32], strides = [1, 1]} : vector<2x32xf32> to vector<1x32xf32>
    %c30_278 = arith.constant 30 : index
    %c0_279 = arith.constant 0 : index
    %970 = vector.load %arg11[%c30_278, %c0_279] : memref<32x64xf32, #tpu.memory_space<vmem>>, vector<1x32xf32>
    tpu.vector_store %arg11[%c30_278, %c0_279], %969 {strides = array<i32>} : memref<32x64xf32, #tpu.memory_space<vmem>>, vector<1x32xf32>,
    %971 = vector.extract_strided_slice %964 {offsets = [1, 0], sizes = [1, 32], strides = [1, 1]} : vector<2x32xf32> to vector<1x32xf32>
    %c17_280 = arith.constant 17 : index
    %c32_281 = arith.constant 32 : index
    %972 = vector.load %arg11[%c17_280, %c32_281] : memref<32x64xf32, #tpu.memory_space<vmem>>, vector<1x32xf32>
    tpu.vector_store %arg11[%c17_280, %c32_281], %971 {strides = array<i32>} : memref<32x64xf32, #tpu.memory_space<vmem>>, vector<1x32xf32>,
    %c30_282 = arith.constant 30 : index
    %c0_283 = arith.constant 0 : index
    %973 = vector.load %arg10[%c30_282, %c0_283] : memref<32x256xf32, #tpu.memory_space<vmem>>, vector<2x128xf32>
    %cst_284 = arith.constant dense<0.000000e+00> : vector<2x128xf32>
    %974 = tpu.matmul %936, %7, %cst_284 {dimension_numbers = #tpu.dot_dimension_numbers<[1], [0], [0], [1], [0, 0, 1, 1], [], []>} : vector<2x32xf32>, vector<32x128xf32>, vector<2x128xf32> -> vector<2x128xf32>
    %975 = arith.addf %973, %974 : vector<2x128xf32>
    %976 = vector.extract_strided_slice %975 {offsets = [0, 0], sizes = [2, 32], strides = [1, 1]} : vector<2x128xf32> to vector<2x32xf32>
    %977 = arith.negf %976 : vector<2x32xf32>
    %978 = math.exp %977 : vector<2x32xf32>
    %cst_285 = arith.constant 1.000000e+00 : f32
    %979 = vector.broadcast %cst_285 : f32 to vector<2x32xf32>
    %980 = arith.addf %979, %978 : vector<2x32xf32>
    %981 = arith.divf %979, %980 : vector<2x32xf32>
    %982 = vector.extract_strided_slice %975 {offsets = [0, 32], sizes = [2, 32], strides = [1, 1]} : vector<2x128xf32> to vector<2x32xf32>
    %983 = arith.negf %982 : vector<2x32xf32>
    %984 = math.exp %983 : vector<2x32xf32>
    %cst_286 = arith.constant 1.000000e+00 : f32
    %985 = vector.broadcast %cst_286 : f32 to vector<2x32xf32>
    %986 = arith.addf %985, %984 : vector<2x32xf32>
    %987 = arith.divf %985, %986 : vector<2x32xf32>
    %988 = vector.extract_strided_slice %975 {offsets = [0, 64], sizes = [2, 32], strides = [1, 1]} : vector<2x128xf32> to vector<2x32xf32>
    %989 = math.tanh %988 : vector<2x32xf32>
    %990 = vector.extract_strided_slice %975 {offsets = [0, 96], sizes = [2, 32], strides = [1, 1]} : vector<2x128xf32> to vector<2x32xf32>
    %991 = arith.negf %990 : vector<2x32xf32>
    %992 = math.exp %991 : vector<2x32xf32>
    %cst_287 = arith.constant 1.000000e+00 : f32
    %993 = vector.broadcast %cst_287 : f32 to vector<2x32xf32>
    %994 = arith.addf %993, %992 : vector<2x32xf32>
    %995 = arith.divf %993, %994 : vector<2x32xf32>
    %996 = arith.mulf %987, %934 : vector<2x32xf32>
    %997 = arith.mulf %981, %989 : vector<2x32xf32>
    %998 = arith.addf %996, %997 : vector<2x32xf32>
    %999 = math.tanh %998 : vector<2x32xf32>
    %1000 = arith.mulf %995, %999 : vector<2x32xf32>
    %c0_288 = arith.constant 0 : index
    %c128_289 = arith.constant 128 : index
    %1001 = vector.load %arg10[%c0_288, %c128_289] : memref<32x256xf32, #tpu.memory_space<vmem>>, vector<2x128xf32>
    %cst_290 = arith.constant dense<0.000000e+00> : vector<2x128xf32>
    %1002 = tpu.matmul %964, %8, %cst_290 {dimension_numbers = #tpu.dot_dimension_numbers<[1], [0], [0], [1], [0, 0, 1, 1], [], []>} : vector<2x32xf32>, vector<32x128xf32>, vector<2x128xf32> -> vector<2x128xf32>
    %1003 = arith.addf %1001, %1002 : vector<2x128xf32>
    %1004 = vector.extract_strided_slice %1003 {offsets = [0, 0], sizes = [2, 32], strides = [1, 1]} : vector<2x128xf32> to vector<2x32xf32>
    %1005 = arith.negf %1004 : vector<2x32xf32>
    %1006 = math.exp %1005 : vector<2x32xf32>
    %cst_291 = arith.constant 1.000000e+00 : f32
    %1007 = vector.broadcast %cst_291 : f32 to vector<2x32xf32>
    %1008 = arith.addf %1007, %1006 : vector<2x32xf32>
    %1009 = arith.divf %1007, %1008 : vector<2x32xf32>
    %1010 = vector.extract_strided_slice %1003 {offsets = [0, 32], sizes = [2, 32], strides = [1, 1]} : vector<2x128xf32> to vector<2x32xf32>
    %1011 = arith.negf %1010 : vector<2x32xf32>
    %1012 = math.exp %1011 : vector<2x32xf32>
    %cst_292 = arith.constant 1.000000e+00 : f32
    %1013 = vector.broadcast %cst_292 : f32 to vector<2x32xf32>
    %1014 = arith.addf %1013, %1012 : vector<2x32xf32>
    %1015 = arith.divf %1013, %1014 : vector<2x32xf32>
    %1016 = vector.extract_strided_slice %1003 {offsets = [0, 64], sizes = [2, 32], strides = [1, 1]} : vector<2x128xf32> to vector<2x32xf32>
    %1017 = math.tanh %1016 : vector<2x32xf32>
    %1018 = vector.extract_strided_slice %1003 {offsets = [0, 96], sizes = [2, 32], strides = [1, 1]} : vector<2x128xf32> to vector<2x32xf32>
    %1019 = arith.negf %1018 : vector<2x32xf32>
    %1020 = math.exp %1019 : vector<2x32xf32>
    %cst_293 = arith.constant 1.000000e+00 : f32
    %1021 = vector.broadcast %cst_293 : f32 to vector<2x32xf32>
    %1022 = arith.addf %1021, %1020 : vector<2x32xf32>
    %1023 = arith.divf %1021, %1022 : vector<2x32xf32>
    %1024 = arith.mulf %1015, %962 : vector<2x32xf32>
    %1025 = arith.mulf %1009, %1017 : vector<2x32xf32>
    %1026 = arith.addf %1024, %1025 : vector<2x32xf32>
    %1027 = math.tanh %1026 : vector<2x32xf32>
    %1028 = arith.mulf %1023, %1027 : vector<2x32xf32>
    %1029 = vector.extract_strided_slice %1000 {offsets = [0, 0], sizes = [1, 32], strides = [1, 1]} : vector<2x32xf32> to vector<1x32xf32>
    %c15_294 = arith.constant 15 : index
    %c0_295 = arith.constant 0 : index
    %1030 = vector.load %arg11[%c15_294, %c0_295] : memref<32x64xf32, #tpu.memory_space<vmem>>, vector<1x32xf32>
    tpu.vector_store %arg11[%c15_294, %c0_295], %1029 {strides = array<i32>} : memref<32x64xf32, #tpu.memory_space<vmem>>, vector<1x32xf32>,
    %1031 = vector.extract_strided_slice %1028 {offsets = [0, 0], sizes = [1, 32], strides = [1, 1]} : vector<2x32xf32> to vector<1x32xf32>
    %c0_296 = arith.constant 0 : index
    %c32_297 = arith.constant 32 : index
    %1032 = vector.load %arg11[%c0_296, %c32_297] : memref<32x64xf32, #tpu.memory_space<vmem>>, vector<1x32xf32>
    tpu.vector_store %arg11[%c0_296, %c32_297], %1031 {strides = array<i32>} : memref<32x64xf32, #tpu.memory_space<vmem>>, vector<1x32xf32>,
    %1033 = vector.extract_strided_slice %1000 {offsets = [1, 0], sizes = [1, 32], strides = [1, 1]} : vector<2x32xf32> to vector<1x32xf32>
    %c31_298 = arith.constant 31 : index
    %c0_299 = arith.constant 0 : index
    %1034 = vector.load %arg11[%c31_298, %c0_299] : memref<32x64xf32, #tpu.memory_space<vmem>>, vector<1x32xf32>
    tpu.vector_store %arg11[%c31_298, %c0_299], %1033 {strides = array<i32>} : memref<32x64xf32, #tpu.memory_space<vmem>>, vector<1x32xf32>,
    %1035 = vector.extract_strided_slice %1028 {offsets = [1, 0], sizes = [1, 32], strides = [1, 1]} : vector<2x32xf32> to vector<1x32xf32>
    %c16_300 = arith.constant 16 : index
    %c32_301 = arith.constant 32 : index
    %1036 = vector.load %arg11[%c16_300, %c32_301] : memref<32x64xf32, #tpu.memory_space<vmem>>, vector<1x32xf32>
    tpu.vector_store %arg11[%c16_300, %c32_301], %1035 {strides = array<i32>} : memref<32x64xf32, #tpu.memory_space<vmem>>, vector<1x32xf32>,
    %c0_302 = arith.constant 0 : index
    %c0_303 = arith.constant 0 : index
    %1037 = vector.load %arg11[%c0_302, %c0_303] : memref<32x64xf32, #tpu.memory_space<vmem>>, vector<32x64xf32>
    %c0_304 = arith.constant 0 : index
    %c0_305 = arith.constant 0 : index
    %1038 = vector.load %arg5[%c0_304, %c0_305] : memref<64x64xf32, #tpu.memory_space<vmem>>, vector<64x64xf32>
    %cst_306 = arith.constant dense<0.000000e+00> : vector<32x64xf32>
    %1039 = tpu.matmul %1037, %1038, %cst_306 {dimension_numbers = #tpu.dot_dimension_numbers<[1], [0], [0], [1], [0, 0, 1, 1], [], []>} : vector<32x64xf32>, vector<64x64xf32>, vector<32x64xf32> -> vector<32x64xf32>
    %1040 = math.tanh %1039 : vector<32x64xf32>
    %c0_307 = arith.constant 0 : index
    %c0_308 = arith.constant 0 : index
    %1041 = vector.load %arg6[%c0_307, %c0_308] : memref<1x64xf32, #tpu.memory_space<vmem>>, vector<1x64xf32>
    %1042 = vector.broadcast %1041 : vector<1x64xf32> to vector<32x64xf32>
    %1043 = arith.mulf %1040, %1042 : vector<32x64xf32>
    %cst_309 = arith.constant dense<0.000000e+00> : vector<32xf32>
    %1044 = vector.multi_reduction <add>, %1043, %cst_309 [1] : vector<32x64xf32> to vector<32xf32>
    %1045 = vector.shape_cast %1044 : vector<32xf32> to vector<32x1xf32>
    %1046 = vector.extract_strided_slice %1045 {offsets = [0, 0], sizes = [16, 1], strides = [1, 1]} : vector<32x1xf32> to vector<16x1xf32>
    %cst_310 = arith.constant dense<0xFF800000> : vector<1xf32>
    %1047 = vector.multi_reduction <maximumf>, %1046, %cst_310 [0] : vector<16x1xf32> to vector<1xf32>
    %1048 = vector.shape_cast %1047 : vector<1xf32> to vector<1x1xf32>
    %1049 = vector.broadcast %1048 : vector<1x1xf32> to vector<16x1xf32>
    %1050 = arith.subf %1046, %1049 : vector<16x1xf32>
    %1051 = math.exp %1050 : vector<16x1xf32>
    %cst_311 = arith.constant dense<0.000000e+00> : vector<1xf32>
    %1052 = vector.multi_reduction <add>, %1051, %cst_311 [0] : vector<16x1xf32> to vector<1xf32>
    %1053 = vector.shape_cast %1052 : vector<1xf32> to vector<1x1xf32>
    %1054 = vector.broadcast %1053 : vector<1x1xf32> to vector<16x1xf32>
    %1055 = arith.divf %1051, %1054 : vector<16x1xf32>
    %1056 = vector.extract_strided_slice %1037 {offsets = [0, 0], sizes = [16, 64], strides = [1, 1]} : vector<32x64xf32> to vector<16x64xf32>
    %1057 = vector.broadcast %1055 : vector<16x1xf32> to vector<16x64xf32>
    %1058 = arith.mulf %1056, %1057 : vector<16x64xf32>
    %cst_312 = arith.constant dense<0.000000e+00> : vector<64xf32>
    %1059 = vector.multi_reduction <add>, %1058, %cst_312 [0] : vector<16x64xf32> to vector<64xf32>
    %1060 = vector.shape_cast %1059 : vector<64xf32> to vector<1x64xf32>
    %1061 = vector.extract_strided_slice %1045 {offsets = [16, 0], sizes = [16, 1], strides = [1, 1]} : vector<32x1xf32> to vector<16x1xf32>
    %cst_313 = arith.constant dense<0xFF800000> : vector<1xf32>
    %1062 = vector.multi_reduction <maximumf>, %1061, %cst_313 [0] : vector<16x1xf32> to vector<1xf32>
    %1063 = vector.shape_cast %1062 : vector<1xf32> to vector<1x1xf32>
    %1064 = vector.broadcast %1063 : vector<1x1xf32> to vector<16x1xf32>
    %1065 = arith.subf %1061, %1064 : vector<16x1xf32>
    %1066 = math.exp %1065 : vector<16x1xf32>
    %cst_314 = arith.constant dense<0.000000e+00> : vector<1xf32>
    %1067 = vector.multi_reduction <add>, %1066, %cst_314 [0] : vector<16x1xf32> to vector<1xf32>
    %1068 = vector.shape_cast %1067 : vector<1xf32> to vector<1x1xf32>
    %1069 = vector.broadcast %1068 : vector<1x1xf32> to vector<16x1xf32>
    %1070 = arith.divf %1066, %1069 : vector<16x1xf32>
    %1071 = vector.extract_strided_slice %1037 {offsets = [16, 0], sizes = [16, 64], strides = [1, 1]} : vector<32x64xf32> to vector<16x64xf32>
    %1072 = vector.broadcast %1070 : vector<16x1xf32> to vector<16x64xf32>
    %1073 = arith.mulf %1071, %1072 : vector<16x64xf32>
    %cst_315 = arith.constant dense<0.000000e+00> : vector<64xf32>
    %1074 = vector.multi_reduction <add>, %1073, %cst_315 [0] : vector<16x64xf32> to vector<64xf32>
    %1075 = vector.shape_cast %1074 : vector<64xf32> to vector<1x64xf32>
    %1076 = tpu.concatenate %1060, %1075 in 0 : vector<1x64xf32>, vector<1x64xf32> -> vector<2x64xf32>
    %c0_316 = arith.constant 0 : index
    %c0_317 = arith.constant 0 : index
    %1077 = vector.load %arg7[%c0_316, %c0_317] : memref<64x128xf32, #tpu.memory_space<vmem>>, vector<64x128xf32>
    %cst_318 = arith.constant dense<0.000000e+00> : vector<2x128xf32>
    %1078 = tpu.matmul %1076, %1077, %cst_318 {dimension_numbers = #tpu.dot_dimension_numbers<[1], [0], [0], [1], [0, 0, 1, 1], [], []>} : vector<2x64xf32>, vector<64x128xf32>, vector<2x128xf32> -> vector<2x128xf32>
    %c0_319 = arith.constant 0 : index
    %c0_320 = arith.constant 0 : index
    %1079 = vector.load %arg8[%c0_319, %c0_320] : memref<1x128xf32, #tpu.memory_space<vmem>>, vector<1x128xf32>
    %1080 = vector.broadcast %1079 : vector<1x128xf32> to vector<2x128xf32>
    %1081 = arith.addf %1078, %1080 : vector<2x128xf32>
    %1082 = arith.negf %1081 : vector<2x128xf32>
    %1083 = math.exp %1082 : vector<2x128xf32>
    %cst_321 = arith.constant 1.000000e+00 : f32
    %1084 = vector.broadcast %cst_321 : f32 to vector<2x128xf32>
    %1085 = arith.addf %1084, %1083 : vector<2x128xf32>
    %1086 = arith.divf %1084, %1085 : vector<2x128xf32>
    %c0_322 = arith.constant 0 : index
    %c0_323 = arith.constant 0 : index
    %1087 = vector.load %arg9[%c0_322, %c0_323] : memref<2x128xf32, #tpu.memory_space<vmem>>, vector<2x128xf32>
    tpu.vector_store %arg9[%c0_322, %c0_323], %1086 {strides = array<i32>} : memref<2x128xf32, #tpu.memory_space<vmem>>, vector<2x128xf32>,
    return
  }
}

</mosaic_0001>

<llo_original>
// kernel: bilstm_atten_forward.1
$region0: #{bilstm_atten_forward.1}
  #allocation0 [shape = 'u32[]', space=smem, size = 0x4, offset = 0x4, fixed_abs, tag = 'smem constant byte address 0x4 - core index']
  #allocation1 [shape = 'u32[144,128]{1,0:T(1,128)}', space=vmem, size = 0x12000, scoped, tag = 'internal scratch']
  #allocation2 [shape = 'f32[32,256]{1,0:T(8,128)}', space=vmem, size = 0x8000, scoped, tag = 'scratch operand']
  #allocation3 [shape = 'f32[32,64]{1,0:T(8,128)}', space=vmem, size = 0x4000, scoped, tag = 'scratch operand']
  %s0 = inlined_call_operand.vmem [shape: f32[32,32], index: 0, kind: input, shape index: {}]
  %s1 = inlined_call_operand.vmem [shape: f32[32,256], index: 1, kind: input, shape index: {}]
  %s2 = inlined_call_operand.vmem [shape: f32[1,256], index: 2, kind: input, shape index: {}]
  %s3 = inlined_call_operand.vmem [shape: f32[32,128], index: 3, kind: input, shape index: {}]
  %s4 = inlined_call_operand.vmem [shape: f32[32,128], index: 4, kind: input, shape index: {}]
  %s5 = inlined_call_operand.vmem [shape: f32[64,64], index: 5, kind: input, shape index: {}]
  %s6 = inlined_call_operand.vmem [shape: f32[1,64], index: 6, kind: input, shape index: {}]
  %s7 = inlined_call_operand.vmem [shape: f32[64,128], index: 7, kind: input, shape index: {}]
  %s8 = inlined_call_operand.vmem [shape: f32[1,128], index: 8, kind: input, shape index: {}]
  %s9 = inlined_call_operand.hbm [shape: f32[2,128], index: 9, kind: output, shape index: {}]
  %s10 = sld [smem:[#allocation0]]
  $region46: #{bilstm_atten_forward.1} parent=0
    _
  %s12 = ssub.s32 1, %s10
  %s13 = scalar_select 0, %s12, %s10
  $region1: #{bilstm_atten_forward.1} parent=0
    #allocation4 [shape = 'u8[1024]{0}', space=vmem, size = 0x400, scoped, tag = 'output window, operand 0, single buffered']
    #allocation5 [shape = 's32[1]{0}', space=sflag, size = 0x4, scoped, tag = 'scoped memory for bilstm_atten_forward.1']
    %14 = vsyncpa [#allocation5], 0
    // Predicated region
    $region2: #{bilstm_atten_forward.1} parent=1 // pred_check
      _
    $region3: #{bilstm_atten_forward.1} parent=1 // pred_check_branch
      %16 = sbr.rel (0) target = $region5
    $region4: #{bilstm_atten_forward.1} parent=1 // pred_region
      _
    $region5: #{bilstm_atten_forward.1} parent=1 // pred_fallthru
      _
    // Predicated region
    $region6: #{bilstm_atten_forward.1} parent=1 // pred_check
      _
    $region7: #{bilstm_atten_forward.1} parent=1 // pred_check_branch
      %18 = sbr.rel (0) target = $region9
    $region8: #{bilstm_atten_forward.1} parent=1 // pred_region
      _
    $region9: #{bilstm_atten_forward.1} parent=1 // pred_fallthru
      _
    // Predicated region
    $region10: #{bilstm_atten_forward.1} parent=1 // pred_check
      _
    $region11: #{bilstm_atten_forward.1} parent=1 // pred_check_branch
      %20 = sbr.rel (0) target = $region13
    $region12: #{bilstm_atten_forward.1} parent=1 // pred_region
      _
    $region13: #{bilstm_atten_forward.1} parent=1 // pred_fallthru
      _
    // Predicated region
    $region14: #{bilstm_atten_forward.1} parent=1 // pred_check
      _
    $region15: #{bilstm_atten_forward.1} parent=1 // pred_check_branch
      %22 = sbr.rel (0) target = $region17
    $region16: #{bilstm_atten_forward.1} parent=1 // pred_region
      _
    $region17: #{bilstm_atten_forward.1} parent=1 // pred_fallthru
      _
    // Predicated region
    $region18: #{bilstm_atten_forward.1} parent=1 // pred_check
      _
    $region19: #{bilstm_atten_forward.1} parent=1 // pred_check_branch
      %24 = sbr.rel (0) target = $region21
    $region20: #{bilstm_atten_forward.1} parent=1 // pred_region
      _
    $region21: #{bilstm_atten_forward.1} parent=1 // pred_fallthru
      _
    // Predicated region
    $region22: #{bilstm_atten_forward.1} parent=1 // pred_check
      _
    $region23: #{bilstm_atten_forward.1} parent=1 // pred_check_branch
      %26 = sbr.rel (0) target = $region25
    $region24: #{bilstm_atten_forward.1} parent=1 // pred_region
      _
    $region25: #{bilstm_atten_forward.1} parent=1 // pred_fallthru
      _
    // Predicated region
    $region26: #{bilstm_atten_forward.1} parent=1 // pred_check
      _
    $region27: #{bilstm_atten_forward.1} parent=1 // pred_check_branch
      %28 = sbr.rel (0) target = $region29
    $region28: #{bilstm_atten_forward.1} parent=1 // pred_region
      _
    $region29: #{bilstm_atten_forward.1} parent=1 // pred_fallthru
      _
    // Predicated region
    $region30: #{bilstm_atten_forward.1} parent=1 // pred_check
      _
    $region31: #{bilstm_atten_forward.1} parent=1 // pred_check_branch
      %30 = sbr.rel (0) target = $region33
    $region32: #{bilstm_atten_forward.1} parent=1 // pred_region
      _
    $region33: #{bilstm_atten_forward.1} parent=1 // pred_fallthru
      _
    // Predicated region
    $region34: #{bilstm_atten_forward.1} parent=1 // pred_check
      _
    $region35: #{bilstm_atten_forward.1} parent=1 // pred_check_branch
      %32 = sbr.rel (0) target = $region37
    $region36: #{bilstm_atten_forward.1} parent=1 // pred_region
      _
    $region37: #{bilstm_atten_forward.1} parent=1 // pred_fallthru
      _
    %v33 = vld [vmem:[%s0] sm:$0xff]
    %v34 = vld [vmem:[%s0 + $0x8] sm:$0xff]
    %v35 = vld [vmem:[%s0 + $0x10] sm:$0xff]
    %v36 = vld [vmem:[%s0 + $0x18] sm:$0xff]
    %v37 = vld [vmem:[%s1] sm:$0xff]
    %v38 = vld [vmem:[%s1 + $0x8] sm:$0xff]
    %v39 = vld [vmem:[%s1 + $0x10] sm:$0xff]
    %v40 = vld [vmem:[%s1 + $0x18] sm:$0xff]
    %v41 = vld [vmem:[%s1 + $0x20] sm:$0xff]
    %v42 = vld [vmem:[%s1 + $0x28] sm:$0xff]
    %v43 = vld [vmem:[%s1 + $0x30] sm:$0xff]
    %v44 = vld [vmem:[%s1 + $0x38] sm:$0xff]
    %v45 = vld [vmem:[%s2] sm:$0x3]
    %v47 = vlaneseq
    %v48 = vshrl.u32 %v47, 7
    %v49 = vsub.s32 0, %v48
    %v50 = vrot.slane %v45, %v49
    %v51 = vlaneseq
    %v52 = vshrl.u32 %v51, 7
    %v53 = vsub.s32 1, %v52
    %v54 = vrot.slane %v45, %v53
    %vm57 = vcmask 261120
    %v59 = vsel %vm57, %v33, 0
    %v62 = vsel %vm57, %v34, 0
    %v65 = vsel %vm57, %v35, 0
    %v68 = vsel %vm57, %v36, 0
    %70 = vmatprep.subr.mxu0 %v38
    %71 = vmatpush1.msra.mxu0 %v37
    %72 = vmatprep.subr.mxu0 %v40
    %73 = vmatpush1.msra.mxu0 %v39
    %74 = vmatprep.subr.mxu0 %v42
    %75 = vmatpush1.msra.mxu0 %v41
    %76 = vmatprep.subr.mxu0 %v44
    %77 = vmatpush1.msra.mxu0 %v43
    %78 = vmatprep.subr.mxu0 0.0
    %79 = vmatpush1.msra.mxu0 0.0
    %80 = vmatprep.subr.mxu0 0.0
    %81 = vmatpush1.msra.mxu0 0.0
    %82 = vmatprep.subr.mxu0 0.0
    %83 = vmatpush1.msra.mxu0 0.0
    %84 = vmatprep.subr.mxu0 0.0
    %85 = vmatpush1.msra.mxu0 0.0
    %86 = vmatprep.subr.mxu0 0.0
    %87 = vmatpush1.msra.mxu0 0.0
    %88 = vmatprep.subr.mxu0 0.0
    %89 = vmatpush1.msra.mxu0 0.0
    %90 = vmatprep.subr.mxu0 0.0
    %91 = vmatpush1.msra.mxu0 0.0
    %92 = vmatprep.subr.mxu0 0.0
    %93 = vmatpush1.msra.mxu0 0.0
    %94 = vmatprep.subr.mxu0 0.0
    %95 = vmatpush1.msra.mxu0 0.0
    %96 = vmatprep.subr.mxu0 0.0
    %97 = vmatpush1.msra.mxu0 0.0
    %98 = vmatprep.subr.mxu0 0.0
    %99 = vmatpush1.msra.mxu0 0.0
    %100 = vmatprep.subr.mxu0 0.0
    %101 = vmatpush1.msra.mxu0 0.0
    %102 = vmatprep.subr.mxu0 0.0
    %103 = vmatpush1.msra.mxu0 0.0
    %104 = vmatprep.subr.mxu0 0.0
    %105 = vmatpush1.msra.mxu0 0.0
    %106 = vmatprep.subr.mxu0 0.0
    %107 = vmatpush1.msra.mxu0 0.0
    %108 = vmatprep.subr.mxu0 0.0
    %109 = vmatpush1.msra.mxu0 0.0
    %110 = vmatprep.subr.mxu0 0.0
    %111 = vmatpush1.msra.mxu0 0.0
    %112 = vmatprep.subr.mxu0 0.0
    %113 = vmatpush1.msra.mxu0 0.0
    %114 = vmatprep.subr.mxu0 0.0
    %115 = vmatpush1.msra.mxu0 0.0
    %116 = vmatprep.subr.mxu0 0.0
    %117 = vmatpush1.msra.mxu0 0.0
    %118 = vmatprep.subr.mxu0 0.0
    %119 = vmatpush1.msra.mxu0 0.0
    %120 = vmatprep.subr.mxu0 0.0
    %121 = vmatpush1.msra.mxu0 0.0
    %122 = vmatprep.subr.mxu0 0.0
    %123 = vmatpush1.msra.mxu0 0.0
    %124 = vmatprep.subr.mxu0 0.0
    %125 = vmatpush1.msra.mxu0 0.0
    %126 = vmatprep.subr.mxu0 0.0
    %127 = vmatpush1.msra.mxu0 0.0
    %128 = vmatprep.subr.mxu0 0.0
    %129 = vmatpush1.msra.mxu0 0.0
    %130 = vmatprep.subr.mxu0 0.0
    %131 = vmatpush1.msra.mxu0 0.0
    %132 = vmatprep.subr.mxu0 0.0
    %133 = vmatpush1.msra.mxu0 0.0
    %134 = vmatprep.mubr.f32.mxu0 0.0
    %135 = vmatmul.mubr.f32.gmra.mrb[0].mxu0 %v59
    %v136 = vpop.f32.mrb[0].mxu0
    %v137 = vadd.f32 %v50, %v136
    %v138 = vpop.f32.mrb[0].mxu0
    %v139 = vadd.f32 %v54, %v138
    %140 = vmatprep.mubr.f32.mxu0 0.0
    %141 = vmatmul.mubr.f32.gmra.mrb[0].mxu0 %v62
    %v142 = vpop.f32.mrb[0].mxu0
    %v143 = vadd.f32 %v50, %v142
    %v144 = vpop.f32.mrb[0].mxu0
    %v145 = vadd.f32 %v54, %v144
    %146 = vmatprep.mubr.f32.mxu0 0.0
    %147 = vmatmul.mubr.f32.gmra.mrb[0].mxu0 %v65
    %v148 = vpop.f32.mrb[0].mxu0
    %v149 = vadd.f32 %v50, %v148
    %v150 = vpop.f32.mrb[0].mxu0
    %v151 = vadd.f32 %v54, %v150
    %152 = vmatprep.mubr.f32.mxu0 0.0
    %153 = vmatmul.mubr.f32.gmra.mrb[0].mxu0 %v68
    %v154 = vpop.f32.mrb[0].mxu0
    %v155 = vadd.f32 %v50, %v154
    %v156 = vpop.f32.mrb[0].mxu0
    %v157 = vadd.f32 %v54, %v156
    %158 = vdwg.mxu0
    %159 = vst [vmem:[#allocation2] sm:$0xff] %v137
    %160 = vst [vmem:[#allocation2 + $0x8] sm:$0xff] %v139
    %161 = vst [vmem:[#allocation2 + $0x10] sm:$0xff] %v143
    %162 = vst [vmem:[#allocation2 + $0x18] sm:$0xff] %v145
    %163 = vst [vmem:[#allocation2 + $0x20] sm:$0xff] %v149
    %164 = vst [vmem:[#allocation2 + $0x28] sm:$0xff] %v151
    %165 = vst [vmem:[#allocation2 + $0x30] sm:$0xff] %v155
    %166 = vst [vmem:[#allocation2 + $0x38] sm:$0xff] %v157
    %v167 = vld [vmem:[%s3] sm:$0xff]
    %v168 = vld [vmem:[%s3 + $0x8] sm:$0xff]
    %v169 = vld [vmem:[%s3 + $0x10] sm:$0xff]
    %v170 = vld [vmem:[%s3 + $0x18] sm:$0xff]
    %v171 = vld [vmem:[%s4] sm:$0xff]
    %v172 = vld [vmem:[%s4 + $0x8] sm:$0xff]
    %v173 = vld [vmem:[%s4 + $0x10] sm:$0xff]
    %v174 = vld [vmem:[%s4 + $0x18] sm:$0xff]
    %v175 = vld [vmem:[#allocation2] sm:$0x3]
    %v177 = vsel %vm57, 0.0, 0
    %179 = vmatprep.subr.mxu0 0.0
    %180 = vmatpush1.msra.mxu0 %v167
    %181 = vmatprep.subr.mxu0 0.0
    %182 = vmatpush1.msra.mxu0 %v168
    %183 = vmatprep.subr.mxu0 0.0
    %184 = vmatpush1.msra.mxu0 %v169
    %185 = vmatprep.subr.mxu0 0.0
    %186 = vmatpush1.msra.mxu0 %v170
    %187 = vmatprep.subr.mxu0 0.0
    %188 = vmatpush1.msra.mxu0 0.0
    %189 = vmatprep.subr.mxu0 0.0
    %190 = vmatpush1.msra.mxu0 0.0
    %191 = vmatprep.subr.mxu0 0.0
    %192 = vmatpush1.msra.mxu0 0.0
    %193 = vmatprep.subr.mxu0 0.0
    %194 = vmatpush1.msra.mxu0 0.0
    %195 = vmatprep.subr.mxu0 0.0
    %196 = vmatpush1.msra.mxu0 0.0
    %197 = vmatprep.subr.mxu0 0.0
    %198 = vmatpush1.msra.mxu0 0.0
    %199 = vmatprep.subr.mxu0 0.0
    %200 = vmatpush1.msra.mxu0 0.0
    %201 = vmatprep.subr.mxu0 0.0
    %202 = vmatpush1.msra.mxu0 0.0
    %203 = vmatprep.subr.mxu0 0.0
    %204 = vmatpush1.msra.mxu0 0.0
    %205 = vmatprep.subr.mxu0 0.0
    %206 = vmatpush1.msra.mxu0 0.0
    %207 = vmatprep.subr.mxu0 0.0
    %208 = vmatpush1.msra.mxu0 0.0
    %209 = vmatprep.subr.mxu0 0.0
    %210 = vmatpush1.msra.mxu0 0.0
    %211 = vmatprep.subr.mxu0 0.0
    %212 = vmatpush1.msra.mxu0 0.0
    %213 = vmatprep.subr.mxu0 0.0
    %214 = vmatpush1.msra.mxu0 0.0
    %215 = vmatprep.subr.mxu0 0.0
    %216 = vmatpush1.msra.mxu0 0.0
    %217 = vmatprep.subr.mxu0 0.0
    %218 = vmatpush1.msra.mxu0 0.0
    %219 = vmatprep.subr.mxu0 0.0
    %220 = vmatpush1.msra.mxu0 0.0
    %221 = vmatprep.subr.mxu0 0.0
    %222 = vmatpush1.msra.mxu0 0.0
    %223 = vmatprep.subr.mxu0 0.0
    %224 = vmatpush1.msra.mxu0 0.0
    %225 = vmatprep.subr.mxu0 0.0
    %226 = vmatpush1.msra.mxu0 0.0
    %227 = vmatprep.subr.mxu0 0.0
    %228 = vmatpush1.msra.mxu0 0.0
    %229 = vmatprep.subr.mxu0 0.0
    %230 = vmatpush1.msra.mxu0 0.0
    %231 = vmatprep.subr.mxu0 0.0
    %232 = vmatpush1.msra.mxu0 0.0
    %233 = vmatprep.subr.mxu0 0.0
    %234 = vmatpush1.msra.mxu0 0.0
    %235 = vmatprep.subr.mxu0 0.0
    %236 = vmatpush1.msra.mxu0 0.0
    %237 = vmatprep.subr.mxu0 0.0
    %238 = vmatpush1.msra.mxu0 0.0
    %239 = vmatprep.subr.mxu0 0.0
    %240 = vmatpush1.msra.mxu0 0.0
    %241 = vmatprep.subr.mxu0 0.0
    %242 = vmatpush1.msra.mxu0 0.0
    %243 = vmatprep.mubr.f32.mxu0 0.0
    %244 = vmatmul.mubr.f32.gmra.mrb[0].mxu0 %v177
    %v245 = vpop.f32.mrb[0].mxu0
    %v246 = vadd.f32 0.0, %v245
    %v247 = vpop.f32.mrb[0].mxu0
    %248 = vdwg.mxu0
    %v249 = vadd.f32 %v175, %v246
    %v250 = vxor.u32 %v249, 2147483648
    %v251 = vmul.f32 %v250, 1.442695
    %v252 = vpow.pop %v251
    %v253 = vadd.f32 %v252, 1.0
    %v254 = vrcp.pop %v253
    %v255 = vmul.f32 1.0, %v254
    %v256 = vtanh.pop %v249
    %v257 = vmul.f32 %v255, 0.0
    %259 = vrot.lane.b32.xlu0 %v256, 64
    %v260 = vpop.permute.xlu0 %259
    %v262 = vmul.f32 %v255, %v260
    %264 = vrot.lane.b32.xlu0 %v262, 32
    %v265 = vpop.permute.xlu0 %264
    %v267 = vadd.f32 %v257, %v265
    %v268 = vtanh.pop %v267
    %270 = vrot.lane.b32.xlu0 %v268, 64
    %v271 = vpop.permute.xlu0 %270
    %v273 = vmul.f32 %v255, %v271
    %v274 = vld [vmem:[#allocation2 + $0x38] sm:$0xc0]
    %275 = vmatprep.subr.mxu0 0.0
    %276 = vmatpush1.msra.mxu0 %v171
    %277 = vmatprep.subr.mxu0 0.0
    %278 = vmatpush1.msra.mxu0 %v172
    %279 = vmatprep.subr.mxu0 0.0
    %280 = vmatpush1.msra.mxu0 %v173
    %281 = vmatprep.subr.mxu0 0.0
    %282 = vmatpush1.msra.mxu0 %v174
    %283 = vmatprep.subr.mxu0 0.0
    %284 = vmatpush1.msra.mxu0 0.0
    %285 = vmatprep.subr.mxu0 0.0
    %286 = vmatpush1.msra.mxu0 0.0
    %287 = vmatprep.subr.mxu0 0.0
    %288 = vmatpush1.msra.mxu0 0.0
    %289 = vmatprep.subr.mxu0 0.0
    %290 = vmatpush1.msra.mxu0 0.0
    %291 = vmatprep.subr.mxu0 0.0
    %292 = vmatpush1.msra.mxu0 0.0
    %293 = vmatprep.subr.mxu0 0.0
    %294 = vmatpush1.msra.mxu0 0.0
    %295 = vmatprep.subr.mxu0 0.0
    %296 = vmatpush1.msra.mxu0 0.0
    %297 = vmatprep.subr.mxu0 0.0
    %298 = vmatpush1.msra.mxu0 0.0
    %299 = vmatprep.subr.mxu0 0.0
    %300 = vmatpush1.msra.mxu0 0.0
    %301 = vmatprep.subr.mxu0 0.0
    %302 = vmatpush1.msra.mxu0 0.0
    %303 = vmatprep.subr.mxu0 0.0
    %304 = vmatpush1.msra.mxu0 0.0
    %305 = vmatprep.subr.mxu0 0.0
    %306 = vmatpush1.msra.mxu0 0.0
    %307 = vmatprep.subr.mxu0 0.0
    %308 = vmatpush1.msra.mxu0 0.0
    %309 = vmatprep.subr.mxu0 0.0
    %310 = vmatpush1.msra.mxu0 0.0
    %311 = vmatprep.subr.mxu0 0.0
    %312 = vmatpush1.msra.mxu0 0.0
    %313 = vmatprep.subr.mxu0 0.0
    %314 = vmatpush1.msra.mxu0 0.0
    %315 = vmatprep.subr.mxu0 0.0
    %316 = vmatpush1.msra.mxu0 0.0
    %317 = vmatprep.subr.mxu0 0.0
    %318 = vmatpush1.msra.mxu0 0.0
    %319 = vmatprep.subr.mxu0 0.0
    %320 = vmatpush1.msra.mxu0 0.0
    %321 = vmatprep.subr.mxu0 0.0
    %322 = vmatpush1.msra.mxu0 0.0
    %323 = vmatprep.subr.mxu0 0.0
    %324 = vmatpush1.msra.mxu0 0.0
    %325 = vmatprep.subr.mxu0 0.0
    %326 = vmatpush1.msra.mxu0 0.0
    %327 = vmatprep.subr.mxu0 0.0
    %328 = vmatpush1.msra.mxu0 0.0
    %329 = vmatprep.subr.mxu0 0.0
    %330 = vmatpush1.msra.mxu0 0.0
    %331 = vmatprep.subr.mxu0 0.0
    %332 = vmatpush1.msra.mxu0 0.0
    %333 = vmatprep.subr.mxu0 0.0
    %334 = vmatpush1.msra.mxu0 0.0
    %335 = vmatprep.subr.mxu0 0.0
    %336 = vmatpush1.msra.mxu0 0.0
    %337 = vmatprep.subr.mxu0 0.0
    %338 = vmatpush1.msra.mxu0 0.0
    %339 = vmatprep.mubr.f32.mxu0 0.0
    %340 = vmatmul.mubr.f32.gmra.mrb[0].mxu0 %v177
    %v341 = vpop.f32.mrb[0].mxu0
    %v342 = vadd.f32 0.0, %v341
    %v343 = vpop.f32.mrb[0].mxu0
    %344 = vdwg.mxu0
    %v346 = vrot.slane %v342, 2
    %v348 = vadd.f32 %v274, %v346
    %v349 = vxor.u32 %v348, 2147483648
    %v350 = vmul.f32 %v349, 1.442695
    %v351 = vpow.pop %v350
    %v352 = vadd.f32 %v351, 1.0
    %v353 = vrcp.pop %v352
    %v354 = vmul.f32 1.0, %v353
    %v355 = vtanh.pop %v348
    %v356 = vmul.f32 %v354, 0.0
    %358 = vrot.lane.b32.xlu0 %v355, 64
    %v359 = vpop.permute.xlu0 %358
    %v361 = vmul.f32 %v354, %v359
    %363 = vrot.lane.b32.xlu0 %v361, 32
    %v364 = vpop.permute.xlu0 %363
    %v366 = vadd.f32 %v356, %v364
    %v367 = vtanh.pop %v366
    %369 = vrot.lane.b32.xlu0 %v367, 64
    %v370 = vpop.permute.xlu0 %369
    %v372 = vmul.f32 %v354, %v370
    %374 = vrot.lane.b32.xlu0 %v273, 32
    %v375 = vpop.permute.xlu0 %374
    %vm377 = vcmask 253952
    %378 = vst.msk [vmem:[#allocation3] sm:$0x1] %vm377, %v375
    %380 = vrot.lane.b32.xlu0 %v372, 64
    %v381 = vpop.permute.xlu0 %380
    %vm383 = vcmask 522502
    %384 = vst.msk [vmem:[#allocation3 + $0x9] sm:$0x40] %vm383, %v381
    %vm385 = vcmask 254977
    %386 = vst.msk [vmem:[#allocation3 + $0xf] sm:$0x2] %vm385, %v375
    %vm387 = vcmask 523527
    %388 = vst.msk [vmem:[#allocation3 + $0x18] sm:$0x80] %vm387, %v381
    %v389 = vld [vmem:[#allocation2] sm:$0xc]
    %v390 = vsel %vm57, %v375, 0
    %392 = vmatprep.subr.mxu0 0.0
    %393 = vmatpush1.msra.mxu0 %v167
    %394 = vmatprep.subr.mxu0 0.0
    %395 = vmatpush1.msra.mxu0 %v168
    %396 = vmatprep.subr.mxu0 0.0
    %397 = vmatpush1.msra.mxu0 %v169
    %398 = vmatprep.subr.mxu0 0.0
    %399 = vmatpush1.msra.mxu0 %v170
    %400 = vmatprep.subr.mxu0 0.0
    %401 = vmatpush1.msra.mxu0 0.0
    %402 = vmatprep.subr.mxu0 0.0
    %403 = vmatpush1.msra.mxu0 0.0
    %404 = vmatprep.subr.mxu0 0.0
    %405 = vmatpush1.msra.mxu0 0.0
    %406 = vmatprep.subr.mxu0 0.0
    %407 = vmatpush1.msra.mxu0 0.0
    %408 = vmatprep.subr.mxu0 0.0
    %409 = vmatpush1.msra.mxu0 0.0
    %410 = vmatprep.subr.mxu0 0.0
    %411 = vmatpush1.msra.mxu0 0.0
    %412 = vmatprep.subr.mxu0 0.0
    %413 = vmatpush1.msra.mxu0 0.0
    %414 = vmatprep.subr.mxu0 0.0
    %415 = vmatpush1.msra.mxu0 0.0
    %416 = vmatprep.subr.mxu0 0.0
    %417 = vmatpush1.msra.mxu0 0.0
    %418 = vmatprep.subr.mxu0 0.0
    %419 = vmatpush1.msra.mxu0 0.0
    %420 = vmatprep.subr.mxu0 0.0
    %421 = vmatpush1.msra.mxu0 0.0
    %422 = vmatprep.subr.mxu0 0.0
    %423 = vmatpush1.msra.mxu0 0.0
    %424 = vmatprep.subr.mxu0 0.0
    %425 = vmatpush1.msra.mxu0 0.0
    %426 = vmatprep.subr.mxu0 0.0
    %427 = vmatpush1.msra.mxu0 0.0
    %428 = vmatprep.subr.mxu0 0.0
    %429 = vmatpush1.msra.mxu0 0.0
    %430 = vmatprep.subr.mxu0 0.0
    %431 = vmatpush1.msra.mxu0 0.0
    %432 = vmatprep.subr.mxu0 0.0
    %433 = vmatpush1.msra.mxu0 0.0
    %434 = vmatprep.subr.mxu0 0.0
    %435 = vmatpush1.msra.mxu0 0.0
    %436 = vmatprep.subr.mxu0 0.0
    %437 = vmatpush1.msra.mxu0 0.0
    %438 = vmatprep.subr.mxu0 0.0
    %439 = vmatpush1.msra.mxu0 0.0
    %440 = vmatprep.subr.mxu0 0.0
    %441 = vmatpush1.msra.mxu0 0.0
    %442 = vmatprep.subr.mxu0 0.0
    %443 = vmatpush1.msra.mxu0 0.0
    %444 = vmatprep.subr.mxu0 0.0
    %445 = vmatpush1.msra.mxu0 0.0
    %446 = vmatprep.subr.mxu0 0.0
    %447 = vmatpush1.msra.mxu0 0.0
    %448 = vmatprep.subr.mxu0 0.0
    %449 = vmatpush1.msra.mxu0 0.0
    %450 = vmatprep.subr.mxu0 0.0
    %451 = vmatpush1.msra.mxu0 0.0
    %452 = vmatprep.subr.mxu0 0.0
    %453 = vmatpush1.msra.mxu0 0.0
    %454 = vmatprep.subr.mxu0 0.0
    %455 = vmatpush1.msra.mxu0 0.0
    %456 = vmatprep.mubr.f32.mxu0 0.0
    %457 = vmatmul.mubr.f32.gmra.mrb[0].mxu0 %v390
    %v458 = vpop.f32.mrb[0].mxu0
    %v459 = vadd.f32 0.0, %v458
    %v460 = vpop.f32.mrb[0].mxu0
    %461 = vdwg.mxu0
    %v463 = vrot.slane %v459, 6
    %v465 = vadd.f32 %v389, %v463
    %v466 = vxor.u32 %v465, 2147483648
    %v467 = vmul.f32 %v466, 1.442695
    %v468 = vpow.pop %v467
    %v469 = vadd.f32 %v468, 1.0
    %v470 = vrcp.pop %v469
    %v471 = vmul.f32 1.0, %v470
    %v472 = vtanh.pop %v465
    %v474 = vrot.slane %v267, 6
    %v476 = vmul.f32 %v471, %v474
    %478 = vrot.lane.b32.xlu0 %v472, 64
    %v479 = vpop.permute.xlu0 %478
    %v481 = vmul.f32 %v471, %v479
    %483 = vrot.lane.b32.xlu0 %v481, 32
    %v484 = vpop.permute.xlu0 %483
    %v486 = vadd.f32 %v476, %v484
    %v487 = vtanh.pop %v486
    %489 = vrot.lane.b32.xlu0 %v487, 64
    %v490 = vpop.permute.xlu0 %489
    %v492 = vmul.f32 %v471, %v490
    %v493 = vld [vmem:[#allocation2 + $0x38] sm:$0x30]
    %v494 = vrot.slane %v372, 6
    %495 = vrot.lane.b32.xlu0 %v494, 32
    %v496 = vpop.permute.xlu0 %495
    %v497 = vsel %vm57, %v496, 0
    %499 = vmatprep.subr.mxu0 0.0
    %500 = vmatpush1.msra.mxu0 %v171
    %501 = vmatprep.subr.mxu0 0.0
    %502 = vmatpush1.msra.mxu0 %v172
    %503 = vmatprep.subr.mxu0 0.0
    %504 = vmatpush1.msra.mxu0 %v173
    %505 = vmatprep.subr.mxu0 0.0
    %506 = vmatpush1.msra.mxu0 %v174
    %507 = vmatprep.subr.mxu0 0.0
    %508 = vmatpush1.msra.mxu0 0.0
    %509 = vmatprep.subr.mxu0 0.0
    %510 = vmatpush1.msra.mxu0 0.0
    %511 = vmatprep.subr.mxu0 0.0
    %512 = vmatpush1.msra.mxu0 0.0
    %513 = vmatprep.subr.mxu0 0.0
    %514 = vmatpush1.msra.mxu0 0.0
    %515 = vmatprep.subr.mxu0 0.0
    %516 = vmatpush1.msra.mxu0 0.0
    %517 = vmatprep.subr.mxu0 0.0
    %518 = vmatpush1.msra.mxu0 0.0
    %519 = vmatprep.subr.mxu0 0.0
    %520 = vmatpush1.msra.mxu0 0.0
    %521 = vmatprep.subr.mxu0 0.0
    %522 = vmatpush1.msra.mxu0 0.0
    %523 = vmatprep.subr.mxu0 0.0
    %524 = vmatpush1.msra.mxu0 0.0
    %525 = vmatprep.subr.mxu0 0.0
    %526 = vmatpush1.msra.mxu0 0.0
    %527 = vmatprep.subr.mxu0 0.0
    %528 = vmatpush1.msra.mxu0 0.0
    %529 = vmatprep.subr.mxu0 0.0
    %530 = vmatpush1.msra.mxu0 0.0
    %531 = vmatprep.subr.mxu0 0.0
    %532 = vmatpush1.msra.mxu0 0.0
    %533 = vmatprep.subr.mxu0 0.0
    %534 = vmatpush1.msra.mxu0 0.0
    %535 = vmatprep.subr.mxu0 0.0
    %536 = vmatpush1.msra.mxu0 0.0
    %537 = vmatprep.subr.mxu0 0.0
    %538 = vmatpush1.msra.mxu0 0.0
    %539 = vmatprep.subr.mxu0 0.0
    %540 = vmatpush1.msra.mxu0 0.0
    %541 = vmatprep.subr.mxu0 0.0
    %542 = vmatpush1.msra.mxu0 0.0
    %543 = vmatprep.subr.mxu0 0.0
    %544 = vmatpush1.msra.mxu0 0.0
    %545 = vmatprep.subr.mxu0 0.0
    %546 = vmatpush1.msra.mxu0 0.0
    %547 = vmatprep.subr.mxu0 0.0
    %548 = vmatpush1.msra.mxu0 0.0
    %549 = vmatprep.subr.mxu0 0.0
    %550 = vmatpush1.msra.mxu0 0.0
    %551 = vmatprep.subr.mxu0 0.0
    %552 = vmatpush1.msra.mxu0 0.0
    %553 = vmatprep.subr.mxu0 0.0
    %554 = vmatpush1.msra.mxu0 0.0
    %555 = vmatprep.subr.mxu0 0.0
    %556 = vmatpush1.msra.mxu0 0.0
    %557 = vmatprep.subr.mxu0 0.0
    %558 = vmatpush1.msra.mxu0 0.0
    %559 = vmatprep.subr.mxu0 0.0
    %560 = vmatpush1.msra.mxu0 0.0
    %561 = vmatprep.subr.mxu0 0.0
    %562 = vmatpush1.msra.mxu0 0.0
    %563 = vmatprep.mubr.f32.mxu0 0.0
    %564 = vmatmul.mubr.f32.gmra.mrb[0].mxu0 %v497
    %v565 = vpop.f32.mrb[0].mxu0
    %v566 = vadd.f32 0.0, %v565
    %v567 = vpop.f32.mrb[0].mxu0
    %568 = vdwg.mxu0
    %v570 = vrot.slane %v566, 4
    %v572 = vadd.f32 %v493, %v570
    %v573 = vxor.u32 %v572, 2147483648
    %v574 = vmul.f32 %v573, 1.442695
    %v575 = vpow.pop %v574
    %v576 = vadd.f32 %v575, 1.0
    %v577 = vrcp.pop %v576
    %v578 = vmul.f32 1.0, %v577
    %v579 = vtanh.pop %v572
    %v581 = vrot.slane %v366, 2
    %v583 = vmul.f32 %v578, %v581
    %585 = vrot.lane.b32.xlu0 %v579, 64
    %v586 = vpop.permute.xlu0 %585
    %v588 = vmul.f32 %v578, %v586
    %590 = vrot.lane.b32.xlu0 %v588, 32
    %v591 = vpop.permute.xlu0 %590
    %v593 = vadd.f32 %v583, %v591
    %v594 = vtanh.pop %v593
    %596 = vrot.lane.b32.xlu0 %v594, 64
    %v597 = vpop.permute.xlu0 %596
    %v599 = vmul.f32 %v578, %v597
    %601 = vrot.lane.b32.xlu0 %v492, 32
    %v602 = vpop.permute.xlu0 %601
    %vm604 = vcmask 256002
    %605 = vst.msk [vmem:[#allocation3 - $0x1] sm:$0x4] %vm604, %v602
    %607 = vrot.lane.b32.xlu0 %v599, 64
    %v608 = vpop.permute.xlu0 %607
    %vm610 = vcmask 520452
    %611 = vst.msk [vmem:[#allocation3 + $0xa] sm:$0x10] %vm610, %v608
    %vm612 = vcmask 257027
    %613 = vst.msk [vmem:[#allocation3 + $0xe] sm:$0x8] %vm612, %v602
    %vm614 = vcmask 521477
    %615 = vst.msk [vmem:[#allocation3 + $0x19] sm:$0x20] %vm614, %v608
    %v616 = vld [vmem:[#allocation2] sm:$0x30]
    %v617 = vrot.slane %v492, 2
    %618 = vrot.lane.b32.xlu0 %v617, 32
    %v619 = vpop.permute.xlu0 %618
    %v620 = vsel %vm57, %v619, 0
    %622 = vmatprep.subr.mxu0 0.0
    %623 = vmatpush1.msra.mxu0 %v167
    %624 = vmatprep.subr.mxu0 0.0
    %625 = vmatpush1.msra.mxu0 %v168
    %626 = vmatprep.subr.mxu0 0.0
    %627 = vmatpush1.msra.mxu0 %v169
    %628 = vmatprep.subr.mxu0 0.0
    %629 = vmatpush1.msra.mxu0 %v170
    %630 = vmatprep.subr.mxu0 0.0
    %631 = vmatpush1.msra.mxu0 0.0
    %632 = vmatprep.subr.mxu0 0.0
    %633 = vmatpush1.msra.mxu0 0.0
    %634 = vmatprep.subr.mxu0 0.0
    %635 = vmatpush1.msra.mxu0 0.0
    %636 = vmatprep.subr.mxu0 0.0
    %637 = vmatpush1.msra.mxu0 0.0
    %638 = vmatprep.subr.mxu0 0.0
    %639 = vmatpush1.msra.mxu0 0.0
    %640 = vmatprep.subr.mxu0 0.0
    %641 = vmatpush1.msra.mxu0 0.0
    %642 = vmatprep.subr.mxu0 0.0
    %643 = vmatpush1.msra.mxu0 0.0
    %644 = vmatprep.subr.mxu0 0.0
    %645 = vmatpush1.msra.mxu0 0.0
    %646 = vmatprep.subr.mxu0 0.0
    %647 = vmatpush1.msra.mxu0 0.0
    %648 = vmatprep.subr.mxu0 0.0
    %649 = vmatpush1.msra.mxu0 0.0
    %650 = vmatprep.subr.mxu0 0.0
    %651 = vmatpush1.msra.mxu0 0.0
    %652 = vmatprep.subr.mxu0 0.0
    %653 = vmatpush1.msra.mxu0 0.0
    %654 = vmatprep.subr.mxu0 0.0
    %655 = vmatpush1.msra.mxu0 0.0
    %656 = vmatprep.subr.mxu0 0.0
    %657 = vmatpush1.msra.mxu0 0.0
    %658 = vmatprep.subr.mxu0 0.0
    %659 = vmatpush1.msra.mxu0 0.0
    %660 = vmatprep.subr.mxu0 0.0
    %661 = vmatpush1.msra.mxu0 0.0
    %662 = vmatprep.subr.mxu0 0.0
    %663 = vmatpush1.msra.mxu0 0.0
    %664 = vmatprep.subr.mxu0 0.0
    %665 = vmatpush1.msra.mxu0 0.0
    %666 = vmatprep.subr.mxu0 0.0
    %667 = vmatpush1.msra.mxu0 0.0
    %668 = vmatprep.subr.mxu0 0.0
    %669 = vmatpush1.msra.mxu0 0.0
    %670 = vmatprep.subr.mxu0 0.0
    %671 = vmatpush1.msra.mxu0 0.0
    %672 = vmatprep.subr.mxu0 0.0
    %673 = vmatpush1.msra.mxu0 0.0
    %674 = vmatprep.subr.mxu0 0.0
    %675 = vmatpush1.msra.mxu0 0.0
    %676 = vmatprep.subr.mxu0 0.0
    %677 = vmatpush1.msra.mxu0 0.0
    %678 = vmatprep.subr.mxu0 0.0
    %679 = vmatpush1.msra.mxu0 0.0
    %680 = vmatprep.subr.mxu0 0.0
    %681 = vmatpush1.msra.mxu0 0.0
    %682 = vmatprep.subr.mxu0 0.0
    %683 = vmatpush1.msra.mxu0 0.0
    %684 = vmatprep.subr.mxu0 0.0
    %685 = vmatpush1.msra.mxu0 0.0
    %686 = vmatprep.mubr.f32.mxu0 0.0
    %687 = vmatmul.mubr.f32.gmra.mrb[0].mxu0 %v620
    %v688 = vpop.f32.mrb[0].mxu0
    %v689 = vadd.f32 0.0, %v688
    %v690 = vpop.f32.mrb[0].mxu0
    %691 = vdwg.mxu0
    %v693 = vrot.slane %v689, 4
    %v695 = vadd.f32 %v616, %v693
    %v696 = vxor.u32 %v695, 2147483648
    %v697 = vmul.f32 %v696, 1.442695
    %v698 = vpow.pop %v697
    %v699 = vadd.f32 %v698, 1.0
    %v700 = vrcp.pop %v699
    %v701 = vmul.f32 1.0, %v700
    %v702 = vtanh.pop %v695
    %v704 = vrot.slane %v486, 6
    %v706 = vmul.f32 %v701, %v704
    %708 = vrot.lane.b32.xlu0 %v702, 64
    %v709 = vpop.permute.xlu0 %708
    %v711 = vmul.f32 %v701, %v709
    %713 = vrot.lane.b32.xlu0 %v711, 32
    %v714 = vpop.permute.xlu0 %713
    %v716 = vadd.f32 %v706, %v714
    %v717 = vtanh.pop %v716
    %719 = vrot.lane.b32.xlu0 %v717, 64
    %v720 = vpop.permute.xlu0 %719
    %v722 = vmul.f32 %v701, %v720
    %v723 = vld [vmem:[#allocation2 + $0x38] sm:$0xc]
    %v724 = vrot.slane %v599, 4
    %725 = vrot.lane.b32.xlu0 %v724, 32
    %v726 = vpop.permute.xlu0 %725
    %v727 = vsel %vm57, %v726, 0
    %729 = vmatprep.subr.mxu0 0.0
    %730 = vmatpush1.msra.mxu0 %v171
    %731 = vmatprep.subr.mxu0 0.0
    %732 = vmatpush1.msra.mxu0 %v172
    %733 = vmatprep.subr.mxu0 0.0
    %734 = vmatpush1.msra.mxu0 %v173
    %735 = vmatprep.subr.mxu0 0.0
    %736 = vmatpush1.msra.mxu0 %v174
    %737 = vmatprep.subr.mxu0 0.0
    %738 = vmatpush1.msra.mxu0 0.0
    %739 = vmatprep.subr.mxu0 0.0
    %740 = vmatpush1.msra.mxu0 0.0
    %741 = vmatprep.subr.mxu0 0.0
    %742 = vmatpush1.msra.mxu0 0.0
    %743 = vmatprep.subr.mxu0 0.0
    %744 = vmatpush1.msra.mxu0 0.0
    %745 = vmatprep.subr.mxu0 0.0
    %746 = vmatpush1.msra.mxu0 0.0
    %747 = vmatprep.subr.mxu0 0.0
    %748 = vmatpush1.msra.mxu0 0.0
    %749 = vmatprep.subr.mxu0 0.0
    %750 = vmatpush1.msra.mxu0 0.0
    %751 = vmatprep.subr.mxu0 0.0
    %752 = vmatpush1.msra.mxu0 0.0
    %753 = vmatprep.subr.mxu0 0.0
    %754 = vmatpush1.msra.mxu0 0.0
    %755 = vmatprep.subr.mxu0 0.0
    %756 = vmatpush1.msra.mxu0 0.0
    %757 = vmatprep.subr.mxu0 0.0
    %758 = vmatpush1.msra.mxu0 0.0
    %759 = vmatprep.subr.mxu0 0.0
    %760 = vmatpush1.msra.mxu0 0.0
    %761 = vmatprep.subr.mxu0 0.0
    %762 = vmatpush1.msra.mxu0 0.0
    %763 = vmatprep.subr.mxu0 0.0
    %764 = vmatpush1.msra.mxu0 0.0
    %765 = vmatprep.subr.mxu0 0.0
    %766 = vmatpush1.msra.mxu0 0.0
    %767 = vmatprep.subr.mxu0 0.0
    %768 = vmatpush1.msra.mxu0 0.0
    %769 = vmatprep.subr.mxu0 0.0
    %770 = vmatpush1.msra.mxu0 0.0
    %771 = vmatprep.subr.mxu0 0.0
    %772 = vmatpush1.msra.mxu0 0.0
    %773 = vmatprep.subr.mxu0 0.0
    %774 = vmatpush1.msra.mxu0 0.0
    %775 = vmatprep.subr.mxu0 0.0
    %776 = vmatpush1.msra.mxu0 0.0
    %777 = vmatprep.subr.mxu0 0.0
    %778 = vmatpush1.msra.mxu0 0.0
    %779 = vmatprep.subr.mxu0 0.0
    %780 = vmatpush1.msra.mxu0 0.0
    %781 = vmatprep.subr.mxu0 0.0
    %782 = vmatpush1.msra.mxu0 0.0
    %783 = vmatprep.subr.mxu0 0.0
    %784 = vmatpush1.msra.mxu0 0.0
    %785 = vmatprep.subr.mxu0 0.0
    %786 = vmatpush1.msra.mxu0 0.0
    %787 = vmatprep.subr.mxu0 0.0
    %788 = vmatpush1.msra.mxu0 0.0
    %789 = vmatprep.subr.mxu0 0.0
    %790 = vmatpush1.msra.mxu0 0.0
    %791 = vmatprep.subr.mxu0 0.0
    %792 = vmatpush1.msra.mxu0 0.0
    %793 = vmatprep.mubr.f32.mxu0 0.0
    %794 = vmatmul.mubr.f32.gmra.mrb[0].mxu0 %v727
    %v795 = vpop.f32.mrb[0].mxu0
    %v796 = vadd.f32 0.0, %v795
    %v797 = vpop.f32.mrb[0].mxu0
    %798 = vdwg.mxu0
    %v800 = vrot.slane %v796, 6
    %v802 = vadd.f32 %v723, %v800
    %v803 = vxor.u32 %v802, 2147483648
    %v804 = vmul.f32 %v803, 1.442695
    %v805 = vpow.pop %v804
    %v806 = vadd.f32 %v805, 1.0
    %v807 = vrcp.pop %v806
    %v808 = vmul.f32 1.0, %v807
    %v809 = vtanh.pop %v802
    %v811 = vrot.slane %v593, 2
    %v813 = vmul.f32 %v808, %v811
    %815 = vrot.lane.b32.xlu0 %v809, 64
    %v816 = vpop.permute.xlu0 %815
    %v818 = vmul.f32 %v808, %v816
    %820 = vrot.lane.b32.xlu0 %v818, 32
    %v821 = vpop.permute.xlu0 %820
    %v823 = vadd.f32 %v813, %v821
    %v824 = vtanh.pop %v823
    %826 = vrot.lane.b32.xlu0 %v824, 64
    %v827 = vpop.permute.xlu0 %826
    %v829 = vmul.f32 %v808, %v827
    %831 = vrot.lane.b32.xlu0 %v722, 32
    %v832 = vpop.permute.xlu0 %831
    %vm834 = vcmask 258052
    %835 = vst.msk [vmem:[#allocation3 - $0x2] sm:$0x10] %vm834, %v832
    %837 = vrot.lane.b32.xlu0 %v829, 64
    %v838 = vpop.permute.xlu0 %837
    %vm840 = vcmask 518402
    %841 = vst.msk [vmem:[#allocation3 + $0xb] sm:$0x4] %vm840, %v838
    %vm842 = vcmask 259077
    %843 = vst.msk [vmem:[#allocation3 + $0xd] sm:$0x20] %vm842, %v832
    %vm844 = vcmask 519427
    %845 = vst.msk [vmem:[#allocation3 + $0x1a] sm:$0x8] %vm844, %v838
    %v846 = vld [vmem:[#allocation2] sm:$0xc0]
    %v847 = vrot.slane %v722, 4
    %848 = vrot.lane.b32.xlu0 %v847, 32
    %v849 = vpop.permute.xlu0 %848
    %v850 = vsel %vm57, %v849, 0
    %852 = vmatprep.subr.mxu0 0.0
    %853 = vmatpush1.msra.mxu0 %v167
    %854 = vmatprep.subr.mxu0 0.0
    %855 = vmatpush1.msra.mxu0 %v168
    %856 = vmatprep.subr.mxu0 0.0
    %857 = vmatpush1.msra.mxu0 %v169
    %858 = vmatprep.subr.mxu0 0.0
    %859 = vmatpush1.msra.mxu0 %v170
    %860 = vmatprep.subr.mxu0 0.0
    %861 = vmatpush1.msra.mxu0 0.0
    %862 = vmatprep.subr.mxu0 0.0
    %863 = vmatpush1.msra.mxu0 0.0
    %864 = vmatprep.subr.mxu0 0.0
    %865 = vmatpush1.msra.mxu0 0.0
    %866 = vmatprep.subr.mxu0 0.0
    %867 = vmatpush1.msra.mxu0 0.0
    %868 = vmatprep.subr.mxu0 0.0
    %869 = vmatpush1.msra.mxu0 0.0
    %870 = vmatprep.subr.mxu0 0.0
    %871 = vmatpush1.msra.mxu0 0.0
    %872 = vmatprep.subr.mxu0 0.0
    %873 = vmatpush1.msra.mxu0 0.0
    %874 = vmatprep.subr.mxu0 0.0
    %875 = vmatpush1.msra.mxu0 0.0
    %876 = vmatprep.subr.mxu0 0.0
    %877 = vmatpush1.msra.mxu0 0.0
    %878 = vmatprep.subr.mxu0 0.0
    %879 = vmatpush1.msra.mxu0 0.0
    %880 = vmatprep.subr.mxu0 0.0
    %881 = vmatpush1.msra.mxu0 0.0
    %882 = vmatprep.subr.mxu0 0.0
    %883 = vmatpush1.msra.mxu0 0.0
    %884 = vmatprep.subr.mxu0 0.0
    %885 = vmatpush1.msra.mxu0 0.0
    %886 = vmatprep.subr.mxu0 0.0
    %887 = vmatpush1.msra.mxu0 0.0
    %888 = vmatprep.subr.mxu0 0.0
    %889 = vmatpush1.msra.mxu0 0.0
    %890 = vmatprep.subr.mxu0 0.0
    %891 = vmatpush1.msra.mxu0 0.0
    %892 = vmatprep.subr.mxu0 0.0
    %893 = vmatpush1.msra.mxu0 0.0
    %894 = vmatprep.subr.mxu0 0.0
    %895 = vmatpush1.msra.mxu0 0.0
    %896 = vmatprep.subr.mxu0 0.0
    %897 = vmatpush1.msra.mxu0 0.0
    %898 = vmatprep.subr.mxu0 0.0
    %899 = vmatpush1.msra.mxu0 0.0
    %900 = vmatprep.subr.mxu0 0.0
    %901 = vmatpush1.msra.mxu0 0.0
    %902 = vmatprep.subr.mxu0 0.0
    %903 = vmatpush1.msra.mxu0 0.0
    %904 = vmatprep.subr.mxu0 0.0
    %905 = vmatpush1.msra.mxu0 0.0
    %906 = vmatprep.subr.mxu0 0.0
    %907 = vmatpush1.msra.mxu0 0.0
    %908 = vmatprep.subr.mxu0 0.0
    %909 = vmatpush1.msra.mxu0 0.0
    %910 = vmatprep.subr.mxu0 0.0
    %911 = vmatpush1.msra.mxu0 0.0
    %912 = vmatprep.subr.mxu0 0.0
    %913 = vmatpush1.msra.mxu0 0.0
    %914 = vmatprep.subr.mxu0 0.0
    %915 = vmatpush1.msra.mxu0 0.0
    %916 = vmatprep.mubr.f32.mxu0 0.0
    %917 = vmatmul.mubr.f32.gmra.mrb[0].mxu0 %v850
    %v918 = vpop.f32.mrb[0].mxu0
    %v919 = vadd.f32 0.0, %v918
    %v920 = vpop.f32.mrb[0].mxu0
    %921 = vdwg.mxu0
    %v923 = vrot.slane %v919, 2
    %v925 = vadd.f32 %v846, %v923
    %v926 = vxor.u32 %v925, 2147483648
    %v927 = vmul.f32 %v926, 1.442695
    %v928 = vpow.pop %v927
    %v929 = vadd.f32 %v928, 1.0
    %v930 = vrcp.pop %v929
    %v931 = vmul.f32 1.0, %v930
    %v932 = vtanh.pop %v925
    %v934 = vrot.slane %v716, 6
    %v936 = vmul.f32 %v931, %v934
    %938 = vrot.lane.b32.xlu0 %v932, 64
    %v939 = vpop.permute.xlu0 %938
    %v941 = vmul.f32 %v931, %v939
    %943 = vrot.lane.b32.xlu0 %v941, 32
    %v944 = vpop.permute.xlu0 %943
    %v946 = vadd.f32 %v936, %v944
    %v947 = vtanh.pop %v946
    %949 = vrot.lane.b32.xlu0 %v947, 64
    %v950 = vpop.permute.xlu0 %949
    %v952 = vmul.f32 %v931, %v950
    %v953 = vld [vmem:[#allocation2 + $0x38] sm:$0x3]
    %v954 = vrot.slane %v829, 2
    %955 = vrot.lane.b32.xlu0 %v954, 32
    %v956 = vpop.permute.xlu0 %955
    %v957 = vsel %vm57, %v956, 0
    %959 = vmatprep.subr.mxu0 0.0
    %960 = vmatpush1.msra.mxu0 %v171
    %961 = vmatprep.subr.mxu0 0.0
    %962 = vmatpush1.msra.mxu0 %v172
    %963 = vmatprep.subr.mxu0 0.0
    %964 = vmatpush1.msra.mxu0 %v173
    %965 = vmatprep.subr.mxu0 0.0
    %966 = vmatpush1.msra.mxu0 %v174
    %967 = vmatprep.subr.mxu0 0.0
    %968 = vmatpush1.msra.mxu0 0.0
    %969 = vmatprep.subr.mxu0 0.0
    %970 = vmatpush1.msra.mxu0 0.0
    %971 = vmatprep.subr.mxu0 0.0
    %972 = vmatpush1.msra.mxu0 0.0
    %973 = vmatprep.subr.mxu0 0.0
    %974 = vmatpush1.msra.mxu0 0.0
    %975 = vmatprep.subr.mxu0 0.0
    %976 = vmatpush1.msra.mxu0 0.0
    %977 = vmatprep.subr.mxu0 0.0
    %978 = vmatpush1.msra.mxu0 0.0
    %979 = vmatprep.subr.mxu0 0.0
    %980 = vmatpush1.msra.mxu0 0.0
    %981 = vmatprep.subr.mxu0 0.0
    %982 = vmatpush1.msra.mxu0 0.0
    %983 = vmatprep.subr.mxu0 0.0
    %984 = vmatpush1.msra.mxu0 0.0
    %985 = vmatprep.subr.mxu0 0.0
    %986 = vmatpush1.msra.mxu0 0.0
    %987 = vmatprep.subr.mxu0 0.0
    %988 = vmatpush1.msra.mxu0 0.0
    %989 = vmatprep.subr.mxu0 0.0
    %990 = vmatpush1.msra.mxu0 0.0
    %991 = vmatprep.subr.mxu0 0.0
    %992 = vmatpush1.msra.mxu0 0.0
    %993 = vmatprep.subr.mxu0 0.0
    %994 = vmatpush1.msra.mxu0 0.0
    %995 = vmatprep.subr.mxu0 0.0
    %996 = vmatpush1.msra.mxu0 0.0
    %997 = vmatprep.subr.mxu0 0.0
    %998 = vmatpush1.msra.mxu0 0.0
    %999 = vmatprep.subr.mxu0 0.0
    %1000 = vmatpush1.msra.mxu0 0.0
    %1001 = vmatprep.subr.mxu0 0.0
    %1002 = vmatpush1.msra.mxu0 0.0
    %1003 = vmatprep.subr.mxu0 0.0
    %1004 = vmatpush1.msra.mxu0 0.0
    %1005 = vmatprep.subr.mxu0 0.0
    %1006 = vmatpush1.msra.mxu0 0.0
    %1007 = vmatprep.subr.mxu0 0.0
    %1008 = vmatpush1.msra.mxu0 0.0
    %1009 = vmatprep.subr.mxu0 0.0
    %1010 = vmatpush1.msra.mxu0 0.0
    %1011 = vmatprep.subr.mxu0 0.0
    %1012 = vmatpush1.msra.mxu0 0.0
    %1013 = vmatprep.subr.mxu0 0.0
    %1014 = vmatpush1.msra.mxu0 0.0
    %1015 = vmatprep.subr.mxu0 0.0
    %1016 = vmatpush1.msra.mxu0 0.0
    %1017 = vmatprep.subr.mxu0 0.0
    %1018 = vmatpush1.msra.mxu0 0.0
    %1019 = vmatprep.subr.mxu0 0.0
    %1020 = vmatpush1.msra.mxu0 0.0
    %1021 = vmatprep.subr.mxu0 0.0
    %1022 = vmatpush1.msra.mxu0 0.0
    %1023 = vmatprep.mubr.f32.mxu0 0.0
    %1024 = vmatmul.mubr.f32.gmra.mrb[0].mxu0 %v957
    %v1025 = vpop.f32.mrb[0].mxu0
    %v1026 = vadd.f32 0.0, %v1025
    %v1027 = vpop.f32.mrb[0].mxu0
    %1028 = vdwg.mxu0
    %v1029 = vadd.f32 %v953, %v1026
    %v1030 = vxor.u32 %v1029, 2147483648
    %v1031 = vmul.f32 %v1030, 1.442695
    %v1032 = vpow.pop %v1031
    %v1033 = vadd.f32 %v1032, 1.0
    %v1034 = vrcp.pop %v1033
    %v1035 = vmul.f32 1.0, %v1034
    %v1036 = vtanh.pop %v1029
    %v1038 = vrot.slane %v823, 2
    %v1040 = vmul.f32 %v1035, %v1038
    %1042 = vrot.lane.b32.xlu0 %v1036, 64
    %v1043 = vpop.permute.xlu0 %1042
    %v1045 = vmul.f32 %v1035, %v1043
    %1047 = vrot.lane.b32.xlu0 %v1045, 32
    %v1048 = vpop.permute.xlu0 %1047
    %v1050 = vadd.f32 %v1040, %v1048
    %v1051 = vtanh.pop %v1050
    %1053 = vrot.lane.b32.xlu0 %v1051, 64
    %v1054 = vpop.permute.xlu0 %1053
    %v1056 = vmul.f32 %v1035, %v1054
    %1058 = vrot.lane.b32.xlu0 %v952, 32
    %v1059 = vpop.permute.xlu0 %1058
    %vm1061 = vcmask 260102
    %1062 = vst.msk [vmem:[#allocation3 - $0x3] sm:$0x40] %vm1061, %v1059
    %1064 = vrot.lane.b32.xlu0 %v1056, 64
    %v1065 = vpop.permute.xlu0 %1064
    %vm1067 = vcmask 516352
    %1068 = vst.msk [vmem:[#allocation3 + $0xc] sm:$0x1] %vm1067, %v1065
    %vm1069 = vcmask 261127
    %1070 = vst.msk [vmem:[#allocation3 + $0xc] sm:$0x80] %vm1069, %v1059
    %vm1071 = vcmask 517377
    %1072 = vst.msk [vmem:[#allocation3 + $0x1b] sm:$0x2] %vm1071, %v1065
    %v1073 = vld [vmem:[#allocation2 + $0x10] sm:$0x3]
    %v1074 = vrot.slane %v952, 6
    %1075 = vrot.lane.b32.xlu0 %v1074, 32
    %v1076 = vpop.permute.xlu0 %1075
    %v1077 = vsel %vm57, %v1076, 0
    %1079 = vmatprep.subr.mxu0 0.0
    %1080 = vmatpush1.msra.mxu0 %v167
    %1081 = vmatprep.subr.mxu0 0.0
    %1082 = vmatpush1.msra.mxu0 %v168
    %1083 = vmatprep.subr.mxu0 0.0
    %1084 = vmatpush1.msra.mxu0 %v169
    %1085 = vmatprep.subr.mxu0 0.0
    %1086 = vmatpush1.msra.mxu0 %v170
    %1087 = vmatprep.subr.mxu0 0.0
    %1088 = vmatpush1.msra.mxu0 0.0
    %1089 = vmatprep.subr.mxu0 0.0
    %1090 = vmatpush1.msra.mxu0 0.0
    %1091 = vmatprep.subr.mxu0 0.0
    %1092 = vmatpush1.msra.mxu0 0.0
    %1093 = vmatprep.subr.mxu0 0.0
    %1094 = vmatpush1.msra.mxu0 0.0
    %1095 = vmatprep.subr.mxu0 0.0
    %1096 = vmatpush1.msra.mxu0 0.0
    %1097 = vmatprep.subr.mxu0 0.0
    %1098 = vmatpush1.msra.mxu0 0.0
    %1099 = vmatprep.subr.mxu0 0.0
    %1100 = vmatpush1.msra.mxu0 0.0
    %1101 = vmatprep.subr.mxu0 0.0
    %1102 = vmatpush1.msra.mxu0 0.0
    %1103 = vmatprep.subr.mxu0 0.0
    %1104 = vmatpush1.msra.mxu0 0.0
    %1105 = vmatprep.subr.mxu0 0.0
    %1106 = vmatpush1.msra.mxu0 0.0
    %1107 = vmatprep.subr.mxu0 0.0
    %1108 = vmatpush1.msra.mxu0 0.0
    %1109 = vmatprep.subr.mxu0 0.0
    %1110 = vmatpush1.msra.mxu0 0.0
    %1111 = vmatprep.subr.mxu0 0.0
    %1112 = vmatpush1.msra.mxu0 0.0
    %1113 = vmatprep.subr.mxu0 0.0
    %1114 = vmatpush1.msra.mxu0 0.0
    %1115 = vmatprep.subr.mxu0 0.0
    %1116 = vmatpush1.msra.mxu0 0.0
    %1117 = vmatprep.subr.mxu0 0.0
    %1118 = vmatpush1.msra.mxu0 0.0
    %1119 = vmatprep.subr.mxu0 0.0
    %1120 = vmatpush1.msra.mxu0 0.0
    %1121 = vmatprep.subr.mxu0 0.0
    %1122 = vmatpush1.msra.mxu0 0.0
    %1123 = vmatprep.subr.mxu0 0.0
    %1124 = vmatpush1.msra.mxu0 0.0
    %1125 = vmatprep.subr.mxu0 0.0
    %1126 = vmatpush1.msra.mxu0 0.0
    %1127 = vmatprep.subr.mxu0 0.0
    %1128 = vmatpush1.msra.mxu0 0.0
    %1129 = vmatprep.subr.mxu0 0.0
    %1130 = vmatpush1.msra.mxu0 0.0
    %1131 = vmatprep.subr.mxu0 0.0
    %1132 = vmatpush1.msra.mxu0 0.0
    %1133 = vmatprep.subr.mxu0 0.0
    %1134 = vmatpush1.msra.mxu0 0.0
    %1135 = vmatprep.subr.mxu0 0.0
    %1136 = vmatpush1.msra.mxu0 0.0
    %1137 = vmatprep.subr.mxu0 0.0
    %1138 = vmatpush1.msra.mxu0 0.0
    %1139 = vmatprep.subr.mxu0 0.0
    %1140 = vmatpush1.msra.mxu0 0.0
    %1141 = vmatprep.subr.mxu0 0.0
    %1142 = vmatpush1.msra.mxu0 0.0
    %1143 = vmatprep.mubr.f32.mxu0 0.0
    %1144 = vmatmul.mubr.f32.gmra.mrb[0].mxu0 %v1077
    %v1145 = vpop.f32.mrb[0].mxu0
    %v1146 = vadd.f32 0.0, %v1145
    %v1147 = vpop.f32.mrb[0].mxu0
    %1148 = vdwg.mxu0
    %v1149 = vadd.f32 %v1073, %v1146
    %v1150 = vxor.u32 %v1149, 2147483648
    %v1151 = vmul.f32 %v1150, 1.442695
    %v1152 = vpow.pop %v1151
    %v1153 = vadd.f32 %v1152, 1.0
    %v1154 = vrcp.pop %v1153
    %v1155 = vmul.f32 1.0, %v1154
    %v1156 = vtanh.pop %v1149
    %v1158 = vrot.slane %v946, 6
    %v1160 = vmul.f32 %v1155, %v1158
    %1162 = vrot.lane.b32.xlu0 %v1156, 64
    %v1163 = vpop.permute.xlu0 %1162
    %v1165 = vmul.f32 %v1155, %v1163
    %1167 = vrot.lane.b32.xlu0 %v1165, 32
    %v1168 = vpop.permute.xlu0 %1167
    %v1170 = vadd.f32 %v1160, %v1168
    %v1171 = vtanh.pop %v1170
    %1173 = vrot.lane.b32.xlu0 %v1171, 64
    %v1174 = vpop.permute.xlu0 %1173
    %v1176 = vmul.f32 %v1155, %v1174
    %v1177 = vld [vmem:[#allocation2 + $0x28] sm:$0xc0]
    %1178 = vrot.lane.b32.xlu0 %v1056, 32
    %v1179 = vpop.permute.xlu0 %1178
    %v1180 = vsel %vm57, %v1179, 0
    %1182 = vmatprep.subr.mxu0 0.0
    %1183 = vmatpush1.msra.mxu0 %v171
    %1184 = vmatprep.subr.mxu0 0.0
    %1185 = vmatpush1.msra.mxu0 %v172
    %1186 = vmatprep.subr.mxu0 0.0
    %1187 = vmatpush1.msra.mxu0 %v173
    %1188 = vmatprep.subr.mxu0 0.0
    %1189 = vmatpush1.msra.mxu0 %v174
    %1190 = vmatprep.subr.mxu0 0.0
    %1191 = vmatpush1.msra.mxu0 0.0
    %1192 = vmatprep.subr.mxu0 0.0
    %1193 = vmatpush1.msra.mxu0 0.0
    %1194 = vmatprep.subr.mxu0 0.0
    %1195 = vmatpush1.msra.mxu0 0.0
    %1196 = vmatprep.subr.mxu0 0.0
    %1197 = vmatpush1.msra.mxu0 0.0
    %1198 = vmatprep.subr.mxu0 0.0
    %1199 = vmatpush1.msra.mxu0 0.0
    %1200 = vmatprep.subr.mxu0 0.0
    %1201 = vmatpush1.msra.mxu0 0.0
    %1202 = vmatprep.subr.mxu0 0.0
    %1203 = vmatpush1.msra.mxu0 0.0
    %1204 = vmatprep.subr.mxu0 0.0
    %1205 = vmatpush1.msra.mxu0 0.0
    %1206 = vmatprep.subr.mxu0 0.0
    %1207 = vmatpush1.msra.mxu0 0.0
    %1208 = vmatprep.subr.mxu0 0.0
    %1209 = vmatpush1.msra.mxu0 0.0
    %1210 = vmatprep.subr.mxu0 0.0
    %1211 = vmatpush1.msra.mxu0 0.0
    %1212 = vmatprep.subr.mxu0 0.0
    %1213 = vmatpush1.msra.mxu0 0.0
    %1214 = vmatprep.subr.mxu0 0.0
    %1215 = vmatpush1.msra.mxu0 0.0
    %1216 = vmatprep.subr.mxu0 0.0
    %1217 = vmatpush1.msra.mxu0 0.0
    %1218 = vmatprep.subr.mxu0 0.0
    %1219 = vmatpush1.msra.mxu0 0.0
    %1220 = vmatprep.subr.mxu0 0.0
    %1221 = vmatpush1.msra.mxu0 0.0
    %1222 = vmatprep.subr.mxu0 0.0
    %1223 = vmatpush1.msra.mxu0 0.0
    %1224 = vmatprep.subr.mxu0 0.0
    %1225 = vmatpush1.msra.mxu0 0.0
    %1226 = vmatprep.subr.mxu0 0.0
    %1227 = vmatpush1.msra.mxu0 0.0
    %1228 = vmatprep.subr.mxu0 0.0
    %1229 = vmatpush1.msra.mxu0 0.0
    %1230 = vmatprep.subr.mxu0 0.0
    %1231 = vmatpush1.msra.mxu0 0.0
    %1232 = vmatprep.subr.mxu0 0.0
    %1233 = vmatpush1.msra.mxu0 0.0
    %1234 = vmatprep.subr.mxu0 0.0
    %1235 = vmatpush1.msra.mxu0 0.0
    %1236 = vmatprep.subr.mxu0 0.0
    %1237 = vmatpush1.msra.mxu0 0.0
    %1238 = vmatprep.subr.mxu0 0.0
    %1239 = vmatpush1.msra.mxu0 0.0
    %1240 = vmatprep.subr.mxu0 0.0
    %1241 = vmatpush1.msra.mxu0 0.0
    %1242 = vmatprep.subr.mxu0 0.0
    %1243 = vmatpush1.msra.mxu0 0.0
    %1244 = vmatprep.subr.mxu0 0.0
    %1245 = vmatpush1.msra.mxu0 0.0
    %1246 = vmatprep.mubr.f32.mxu0 0.0
    %1247 = vmatmul.mubr.f32.gmra.mrb[0].mxu0 %v1180
    %v1248 = vpop.f32.mrb[0].mxu0
    %v1249 = vadd.f32 0.0, %v1248
    %v1250 = vpop.f32.mrb[0].mxu0
    %1251 = vdwg.mxu0
    %v1253 = vrot.slane %v1249, 2
    %v1255 = vadd.f32 %v1177, %v1253
    %v1256 = vxor.u32 %v1255, 2147483648
    %v1257 = vmul.f32 %v1256, 1.442695
    %v1258 = vpow.pop %v1257
    %v1259 = vadd.f32 %v1258, 1.0
    %v1260 = vrcp.pop %v1259
    %v1261 = vmul.f32 1.0, %v1260
    %v1262 = vtanh.pop %v1255
    %v1264 = vrot.slane %v1050, 2
    %v1266 = vmul.f32 %v1261, %v1264
    %1268 = vrot.lane.b32.xlu0 %v1262, 64
    %v1269 = vpop.permute.xlu0 %1268
    %v1271 = vmul.f32 %v1261, %v1269
    %1273 = vrot.lane.b32.xlu0 %v1271, 32
    %v1274 = vpop.permute.xlu0 %1273
    %v1276 = vadd.f32 %v1266, %v1274
    %v1277 = vtanh.pop %v1276
    %1279 = vrot.lane.b32.xlu0 %v1277, 64
    %v1280 = vpop.permute.xlu0 %1279
    %v1282 = vmul.f32 %v1261, %v1280
    %1284 = vrot.lane.b32.xlu0 %v1176, 32
    %v1285 = vpop.permute.xlu0 %1284
    %1287 = vst.msk [vmem:[#allocation3 + $0x4] sm:$0x1] %vm377, %v1285
    %1289 = vrot.lane.b32.xlu0 %v1282, 64
    %v1290 = vpop.permute.xlu0 %1289
    %1292 = vst.msk [vmem:[#allocation3 + $0x5] sm:$0x40] %vm383, %v1290
    %1293 = vst.msk [vmem:[#allocation3 + $0x13] sm:$0x2] %vm385, %v1285
    %1294 = vst.msk [vmem:[#allocation3 + $0x14] sm:$0x80] %vm387, %v1290
    %v1295 = vld [vmem:[#allocation2 + $0x10] sm:$0xc]
    %v1296 = vsel %vm57, %v1285, 0
    %1298 = vmatprep.subr.mxu0 0.0
    %1299 = vmatpush1.msra.mxu0 %v167
    %1300 = vmatprep.subr.mxu0 0.0
    %1301 = vmatpush1.msra.mxu0 %v168
    %1302 = vmatprep.subr.mxu0 0.0
    %1303 = vmatpush1.msra.mxu0 %v169
    %1304 = vmatprep.subr.mxu0 0.0
    %1305 = vmatpush1.msra.mxu0 %v170
    %1306 = vmatprep.subr.mxu0 0.0
    %1307 = vmatpush1.msra.mxu0 0.0
    %1308 = vmatprep.subr.mxu0 0.0
    %1309 = vmatpush1.msra.mxu0 0.0
    %1310 = vmatprep.subr.mxu0 0.0
    %1311 = vmatpush1.msra.mxu0 0.0
    %1312 = vmatprep.subr.mxu0 0.0
    %1313 = vmatpush1.msra.mxu0 0.0
    %1314 = vmatprep.subr.mxu0 0.0
    %1315 = vmatpush1.msra.mxu0 0.0
    %1316 = vmatprep.subr.mxu0 0.0
    %1317 = vmatpush1.msra.mxu0 0.0
    %1318 = vmatprep.subr.mxu0 0.0
    %1319 = vmatpush1.msra.mxu0 0.0
    %1320 = vmatprep.subr.mxu0 0.0
    %1321 = vmatpush1.msra.mxu0 0.0
    %1322 = vmatprep.subr.mxu0 0.0
    %1323 = vmatpush1.msra.mxu0 0.0
    %1324 = vmatprep.subr.mxu0 0.0
    %1325 = vmatpush1.msra.mxu0 0.0
    %1326 = vmatprep.subr.mxu0 0.0
    %1327 = vmatpush1.msra.mxu0 0.0
    %1328 = vmatprep.subr.mxu0 0.0
    %1329 = vmatpush1.msra.mxu0 0.0
    %1330 = vmatprep.subr.mxu0 0.0
    %1331 = vmatpush1.msra.mxu0 0.0
    %1332 = vmatprep.subr.mxu0 0.0
    %1333 = vmatpush1.msra.mxu0 0.0
    %1334 = vmatprep.subr.mxu0 0.0
    %1335 = vmatpush1.msra.mxu0 0.0
    %1336 = vmatprep.subr.mxu0 0.0
    %1337 = vmatpush1.msra.mxu0 0.0
    %1338 = vmatprep.subr.mxu0 0.0
    %1339 = vmatpush1.msra.mxu0 0.0
    %1340 = vmatprep.subr.mxu0 0.0
    %1341 = vmatpush1.msra.mxu0 0.0
    %1342 = vmatprep.subr.mxu0 0.0
    %1343 = vmatpush1.msra.mxu0 0.0
    %1344 = vmatprep.subr.mxu0 0.0
    %1345 = vmatpush1.msra.mxu0 0.0
    %1346 = vmatprep.subr.mxu0 0.0
    %1347 = vmatpush1.msra.mxu0 0.0
    %1348 = vmatprep.subr.mxu0 0.0
    %1349 = vmatpush1.msra.mxu0 0.0
    %1350 = vmatprep.subr.mxu0 0.0
    %1351 = vmatpush1.msra.mxu0 0.0
    %1352 = vmatprep.subr.mxu0 0.0
    %1353 = vmatpush1.msra.mxu0 0.0
    %1354 = vmatprep.subr.mxu0 0.0
    %1355 = vmatpush1.msra.mxu0 0.0
    %1356 = vmatprep.subr.mxu0 0.0
    %1357 = vmatpush1.msra.mxu0 0.0
    %1358 = vmatprep.subr.mxu0 0.0
    %1359 = vmatpush1.msra.mxu0 0.0
    %1360 = vmatprep.subr.mxu0 0.0
    %1361 = vmatpush1.msra.mxu0 0.0
    %1362 = vmatprep.mubr.f32.mxu0 0.0
    %1363 = vmatmul.mubr.f32.gmra.mrb[0].mxu0 %v1296
    %v1364 = vpop.f32.mrb[0].mxu0
    %v1365 = vadd.f32 0.0, %v1364
    %v1366 = vpop.f32.mrb[0].mxu0
    %1367 = vdwg.mxu0
    %v1369 = vrot.slane %v1365, 6
    %v1371 = vadd.f32 %v1295, %v1369
    %v1372 = vxor.u32 %v1371, 2147483648
    %v1373 = vmul.f32 %v1372, 1.442695
    %v1374 = vpow.pop %v1373
    %v1375 = vadd.f32 %v1374, 1.0
    %v1376 = vrcp.pop %v1375
    %v1377 = vmul.f32 1.0, %v1376
    %v1378 = vtanh.pop %v1371
    %v1380 = vrot.slane %v1170, 6
    %v1382 = vmul.f32 %v1377, %v1380
    %1384 = vrot.lane.b32.xlu0 %v1378, 64
    %v1385 = vpop.permute.xlu0 %1384
    %v1387 = vmul.f32 %v1377, %v1385
    %1389 = vrot.lane.b32.xlu0 %v1387, 32
    %v1390 = vpop.permute.xlu0 %1389
    %v1392 = vadd.f32 %v1382, %v1390
    %v1393 = vtanh.pop %v1392
    %1395 = vrot.lane.b32.xlu0 %v1393, 64
    %v1396 = vpop.permute.xlu0 %1395
    %v1398 = vmul.f32 %v1377, %v1396
    %v1399 = vld [vmem:[#allocation2 + $0x28] sm:$0x30]
    %v1400 = vrot.slane %v1282, 6
    %1401 = vrot.lane.b32.xlu0 %v1400, 32
    %v1402 = vpop.permute.xlu0 %1401
    %v1403 = vsel %vm57, %v1402, 0
    %1405 = vmatprep.subr.mxu0 0.0
    %1406 = vmatpush1.msra.mxu0 %v171
    %1407 = vmatprep.subr.mxu0 0.0
    %1408 = vmatpush1.msra.mxu0 %v172
    %1409 = vmatprep.subr.mxu0 0.0
    %1410 = vmatpush1.msra.mxu0 %v173
    %1411 = vmatprep.subr.mxu0 0.0
    %1412 = vmatpush1.msra.mxu0 %v174
    %1413 = vmatprep.subr.mxu0 0.0
    %1414 = vmatpush1.msra.mxu0 0.0
    %1415 = vmatprep.subr.mxu0 0.0
    %1416 = vmatpush1.msra.mxu0 0.0
    %1417 = vmatprep.subr.mxu0 0.0
    %1418 = vmatpush1.msra.mxu0 0.0
    %1419 = vmatprep.subr.mxu0 0.0
    %1420 = vmatpush1.msra.mxu0 0.0
    %1421 = vmatprep.subr.mxu0 0.0
    %1422 = vmatpush1.msra.mxu0 0.0
    %1423 = vmatprep.subr.mxu0 0.0
    %1424 = vmatpush1.msra.mxu0 0.0
    %1425 = vmatprep.subr.mxu0 0.0
    %1426 = vmatpush1.msra.mxu0 0.0
    %1427 = vmatprep.subr.mxu0 0.0
    %1428 = vmatpush1.msra.mxu0 0.0
    %1429 = vmatprep.subr.mxu0 0.0
    %1430 = vmatpush1.msra.mxu0 0.0
    %1431 = vmatprep.subr.mxu0 0.0
    %1432 = vmatpush1.msra.mxu0 0.0
    %1433 = vmatprep.subr.mxu0 0.0
    %1434 = vmatpush1.msra.mxu0 0.0
    %1435 = vmatprep.subr.mxu0 0.0
    %1436 = vmatpush1.msra.mxu0 0.0
    %1437 = vmatprep.subr.mxu0 0.0
    %1438 = vmatpush1.msra.mxu0 0.0
    %1439 = vmatprep.subr.mxu0 0.0
    %1440 = vmatpush1.msra.mxu0 0.0
    %1441 = vmatprep.subr.mxu0 0.0
    %1442 = vmatpush1.msra.mxu0 0.0
    %1443 = vmatprep.subr.mxu0 0.0
    %1444 = vmatpush1.msra.mxu0 0.0
    %1445 = vmatprep.subr.mxu0 0.0
    %1446 = vmatpush1.msra.mxu0 0.0
    %1447 = vmatprep.subr.mxu0 0.0
    %1448 = vmatpush1.msra.mxu0 0.0
    %1449 = vmatprep.subr.mxu0 0.0
    %1450 = vmatpush1.msra.mxu0 0.0
    %1451 = vmatprep.subr.mxu0 0.0
    %1452 = vmatpush1.msra.mxu0 0.0
    %1453 = vmatprep.subr.mxu0 0.0
    %1454 = vmatpush1.msra.mxu0 0.0
    %1455 = vmatprep.subr.mxu0 0.0
    %1456 = vmatpush1.msra.mxu0 0.0
    %1457 = vmatprep.subr.mxu0 0.0
    %1458 = vmatpush1.msra.mxu0 0.0
    %1459 = vmatprep.subr.mxu0 0.0
    %1460 = vmatpush1.msra.mxu0 0.0
    %1461 = vmatprep.subr.mxu0 0.0
    %1462 = vmatpush1.msra.mxu0 0.0
    %1463 = vmatprep.subr.mxu0 0.0
    %1464 = vmatpush1.msra.mxu0 0.0
    %1465 = vmatprep.subr.mxu0 0.0
    %1466 = vmatpush1.msra.mxu0 0.0
    %1467 = vmatprep.subr.mxu0 0.0
    %1468 = vmatpush1.msra.mxu0 0.0
    %1469 = vmatprep.mubr.f32.mxu0 0.0
    %1470 = vmatmul.mubr.f32.gmra.mrb[0].mxu0 %v1403
    %v1471 = vpop.f32.mrb[0].mxu0
    %v1472 = vadd.f32 0.0, %v1471
    %v1473 = vpop.f32.mrb[0].mxu0
    %1474 = vdwg.mxu0
    %v1476 = vrot.slane %v1472, 4
    %v1478 = vadd.f32 %v1399, %v1476
    %v1479 = vxor.u32 %v1478, 2147483648
    %v1480 = vmul.f32 %v1479, 1.442695
    %v1481 = vpow.pop %v1480
    %v1482 = vadd.f32 %v1481, 1.0
    %v1483 = vrcp.pop %v1482
    %v1484 = vmul.f32 1.0, %v1483
    %v1485 = vtanh.pop %v1478
    %v1487 = vrot.slane %v1276, 2
    %v1489 = vmul.f32 %v1484, %v1487
    %1491 = vrot.lane.b32.xlu0 %v1485, 64
    %v1492 = vpop.permute.xlu0 %1491
    %v1494 = vmul.f32 %v1484, %v1492
    %1496 = vrot.lane.b32.xlu0 %v1494, 32
    %v1497 = vpop.permute.xlu0 %1496
    %v1499 = vadd.f32 %v1489, %v1497
    %v1500 = vtanh.pop %v1499
    %1502 = vrot.lane.b32.xlu0 %v1500, 64
    %v1503 = vpop.permute.xlu0 %1502
    %v1505 = vmul.f32 %v1484, %v1503
    %1507 = vrot.lane.b32.xlu0 %v1398, 32
    %v1508 = vpop.permute.xlu0 %1507
    %1510 = vst.msk [vmem:[#allocation3 + $0x3] sm:$0x4] %vm604, %v1508
    %1512 = vrot.lane.b32.xlu0 %v1505, 64
    %v1513 = vpop.permute.xlu0 %1512
    %1515 = vst.msk [vmem:[#allocation3 + $0x6] sm:$0x10] %vm610, %v1513
    %1516 = vst.msk [vmem:[#allocation3 + $0x12] sm:$0x8] %vm612, %v1508
    %1517 = vst.msk [vmem:[#allocation3 + $0x15] sm:$0x20] %vm614, %v1513
    %v1518 = vld [vmem:[#allocation2 + $0x10] sm:$0x30]
    %v1519 = vrot.slane %v1398, 2
    %1520 = vrot.lane.b32.xlu0 %v1519, 32
    %v1521 = vpop.permute.xlu0 %1520
    %v1522 = vsel %vm57, %v1521, 0
    %1524 = vmatprep.subr.mxu0 0.0
    %1525 = vmatpush1.msra.mxu0 %v167
    %1526 = vmatprep.subr.mxu0 0.0
    %1527 = vmatpush1.msra.mxu0 %v168
    %1528 = vmatprep.subr.mxu0 0.0
    %1529 = vmatpush1.msra.mxu0 %v169
    %1530 = vmatprep.subr.mxu0 0.0
    %1531 = vmatpush1.msra.mxu0 %v170
    %1532 = vmatprep.subr.mxu0 0.0
    %1533 = vmatpush1.msra.mxu0 0.0
    %1534 = vmatprep.subr.mxu0 0.0
    %1535 = vmatpush1.msra.mxu0 0.0
    %1536 = vmatprep.subr.mxu0 0.0
    %1537 = vmatpush1.msra.mxu0 0.0
    %1538 = vmatprep.subr.mxu0 0.0
    %1539 = vmatpush1.msra.mxu0 0.0
    %1540 = vmatprep.subr.mxu0 0.0
    %1541 = vmatpush1.msra.mxu0 0.0
    %1542 = vmatprep.subr.mxu0 0.0
    %1543 = vmatpush1.msra.mxu0 0.0
    %1544 = vmatprep.subr.mxu0 0.0
    %1545 = vmatpush1.msra.mxu0 0.0
    %1546 = vmatprep.subr.mxu0 0.0
    %1547 = vmatpush1.msra.mxu0 0.0
    %1548 = vmatprep.subr.mxu0 0.0
    %1549 = vmatpush1.msra.mxu0 0.0
    %1550 = vmatprep.subr.mxu0 0.0
    %1551 = vmatpush1.msra.mxu0 0.0
    %1552 = vmatprep.subr.mxu0 0.0
    %1553 = vmatpush1.msra.mxu0 0.0
    %1554 = vmatprep.subr.mxu0 0.0
    %1555 = vmatpush1.msra.mxu0 0.0
    %1556 = vmatprep.subr.mxu0 0.0
    %1557 = vmatpush1.msra.mxu0 0.0
    %1558 = vmatprep.subr.mxu0 0.0
    %1559 = vmatpush1.msra.mxu0 0.0
    %1560 = vmatprep.subr.mxu0 0.0
    %1561 = vmatpush1.msra.mxu0 0.0
    %1562 = vmatprep.subr.mxu0 0.0
    %1563 = vmatpush1.msra.mxu0 0.0
    %1564 = vmatprep.subr.mxu0 0.0
    %1565 = vmatpush1.msra.mxu0 0.0
    %1566 = vmatprep.subr.mxu0 0.0
    %1567 = vmatpush1.msra.mxu0 0.0
    %1568 = vmatprep.subr.mxu0 0.0
    %1569 = vmatpush1.msra.mxu0 0.0
    %1570 = vmatprep.subr.mxu0 0.0
    %1571 = vmatpush1.msra.mxu0 0.0
    %1572 = vmatprep.subr.mxu0 0.0
    %1573 = vmatpush1.msra.mxu0 0.0
    %1574 = vmatprep.subr.mxu0 0.0
    %1575 = vmatpush1.msra.mxu0 0.0
    %1576 = vmatprep.subr.mxu0 0.0
    %1577 = vmatpush1.msra.mxu0 0.0
    %1578 = vmatprep.subr.mxu0 0.0
    %1579 = vmatpush1.msra.mxu0 0.0
    %1580 = vmatprep.subr.mxu0 0.0
    %1581 = vmatpush1.msra.mxu0 0.0
    %1582 = vmatprep.subr.mxu0 0.0
    %1583 = vmatpush1.msra.mxu0 0.0
    %1584 = vmatprep.subr.mxu0 0.0
    %1585 = vmatpush1.msra.mxu0 0.0
    %1586 = vmatprep.subr.mxu0 0.0
    %1587 = vmatpush1.msra.mxu0 0.0
    %1588 = vmatprep.mubr.f32.mxu0 0.0
    %1589 = vmatmul.mubr.f32.gmra.mrb[0].mxu0 %v1522
    %v1590 = vpop.f32.mrb[0].mxu0
    %v1591 = vadd.f32 0.0, %v1590
    %v1592 = vpop.f32.mrb[0].mxu0
    %1593 = vdwg.mxu0
    %v1595 = vrot.slane %v1591, 4
    %v1597 = vadd.f32 %v1518, %v1595
    %v1598 = vxor.u32 %v1597, 2147483648
    %v1599 = vmul.f32 %v1598, 1.442695
    %v1600 = vpow.pop %v1599
    %v1601 = vadd.f32 %v1600, 1.0
    %v1602 = vrcp.pop %v1601
    %v1603 = vmul.f32 1.0, %v1602
    %v1604 = vtanh.pop %v1597
    %v1606 = vrot.slane %v1392, 6
    %v1608 = vmul.f32 %v1603, %v1606
    %1610 = vrot.lane.b32.xlu0 %v1604, 64
    %v1611 = vpop.permute.xlu0 %1610
    %v1613 = vmul.f32 %v1603, %v1611
    %1615 = vrot.lane.b32.xlu0 %v1613, 32
    %v1616 = vpop.permute.xlu0 %1615
    %v1618 = vadd.f32 %v1608, %v1616
    %v1619 = vtanh.pop %v1618
    %1621 = vrot.lane.b32.xlu0 %v1619, 64
    %v1622 = vpop.permute.xlu0 %1621
    %v1624 = vmul.f32 %v1603, %v1622
    %v1625 = vld [vmem:[#allocation2 + $0x28] sm:$0xc]
    %v1626 = vrot.slane %v1505, 4
    %1627 = vrot.lane.b32.xlu0 %v1626, 32
    %v1628 = vpop.permute.xlu0 %1627
    %v1629 = vsel %vm57, %v1628, 0
    %1631 = vmatprep.subr.mxu0 0.0
    %1632 = vmatpush1.msra.mxu0 %v171
    %1633 = vmatprep.subr.mxu0 0.0
    %1634 = vmatpush1.msra.mxu0 %v172
    %1635 = vmatprep.subr.mxu0 0.0
    %1636 = vmatpush1.msra.mxu0 %v173
    %1637 = vmatprep.subr.mxu0 0.0
    %1638 = vmatpush1.msra.mxu0 %v174
    %1639 = vmatprep.subr.mxu0 0.0
    %1640 = vmatpush1.msra.mxu0 0.0
    %1641 = vmatprep.subr.mxu0 0.0
    %1642 = vmatpush1.msra.mxu0 0.0
    %1643 = vmatprep.subr.mxu0 0.0
    %1644 = vmatpush1.msra.mxu0 0.0
    %1645 = vmatprep.subr.mxu0 0.0
    %1646 = vmatpush1.msra.mxu0 0.0
    %1647 = vmatprep.subr.mxu0 0.0
    %1648 = vmatpush1.msra.mxu0 0.0
    %1649 = vmatprep.subr.mxu0 0.0
    %1650 = vmatpush1.msra.mxu0 0.0
    %1651 = vmatprep.subr.mxu0 0.0
    %1652 = vmatpush1.msra.mxu0 0.0
    %1653 = vmatprep.subr.mxu0 0.0
    %1654 = vmatpush1.msra.mxu0 0.0
    %1655 = vmatprep.subr.mxu0 0.0
    %1656 = vmatpush1.msra.mxu0 0.0
    %1657 = vmatprep.subr.mxu0 0.0
    %1658 = vmatpush1.msra.mxu0 0.0
    %1659 = vmatprep.subr.mxu0 0.0
    %1660 = vmatpush1.msra.mxu0 0.0
    %1661 = vmatprep.subr.mxu0 0.0
    %1662 = vmatpush1.msra.mxu0 0.0
    %1663 = vmatprep.subr.mxu0 0.0
    %1664 = vmatpush1.msra.mxu0 0.0
    %1665 = vmatprep.subr.mxu0 0.0
    %1666 = vmatpush1.msra.mxu0 0.0
    %1667 = vmatprep.subr.mxu0 0.0
    %1668 = vmatpush1.msra.mxu0 0.0
    %1669 = vmatprep.subr.mxu0 0.0
    %1670 = vmatpush1.msra.mxu0 0.0
    %1671 = vmatprep.subr.mxu0 0.0
    %1672 = vmatpush1.msra.mxu0 0.0
    %1673 = vmatprep.subr.mxu0 0.0
    %1674 = vmatpush1.msra.mxu0 0.0
    %1675 = vmatprep.subr.mxu0 0.0
    %1676 = vmatpush1.msra.mxu0 0.0
    %1677 = vmatprep.subr.mxu0 0.0
    %1678 = vmatpush1.msra.mxu0 0.0
    %1679 = vmatprep.subr.mxu0 0.0
    %1680 = vmatpush1.msra.mxu0 0.0
    %1681 = vmatprep.subr.mxu0 0.0
    %1682 = vmatpush1.msra.mxu0 0.0
    %1683 = vmatprep.subr.mxu0 0.0
    %1684 = vmatpush1.msra.mxu0 0.0
    %1685 = vmatprep.subr.mxu0 0.0
    %1686 = vmatpush1.msra.mxu0 0.0
    %1687 = vmatprep.subr.mxu0 0.0
    %1688 = vmatpush1.msra.mxu0 0.0
    %1689 = vmatprep.subr.mxu0 0.0
    %1690 = vmatpush1.msra.mxu0 0.0
    %1691 = vmatprep.subr.mxu0 0.0
    %1692 = vmatpush1.msra.mxu0 0.0
    %1693 = vmatprep.subr.mxu0 0.0
    %1694 = vmatpush1.msra.mxu0 0.0
    %1695 = vmatprep.mubr.f32.mxu0 0.0
    %1696 = vmatmul.mubr.f32.gmra.mrb[0].mxu0 %v1629
    %v1697 = vpop.f32.mrb[0].mxu0
    %v1698 = vadd.f32 0.0, %v1697
    %v1699 = vpop.f32.mrb[0].mxu0
    %1700 = vdwg.mxu0
    %v1702 = vrot.slane %v1698, 6
    %v1704 = vadd.f32 %v1625, %v1702
    %v1705 = vxor.u32 %v1704, 2147483648
    %v1706 = vmul.f32 %v1705, 1.442695
    %v1707 = vpow.pop %v1706
    %v1708 = vadd.f32 %v1707, 1.0
    %v1709 = vrcp.pop %v1708
    %v1710 = vmul.f32 1.0, %v1709
    %v1711 = vtanh.pop %v1704
    %v1713 = vrot.slane %v1499, 2
    %v1715 = vmul.f32 %v1710, %v1713
    %1717 = vrot.lane.b32.xlu0 %v1711, 64
    %v1718 = vpop.permute.xlu0 %1717
    %v1720 = vmul.f32 %v1710, %v1718
    %1722 = vrot.lane.b32.xlu0 %v1720, 32
    %v1723 = vpop.permute.xlu0 %1722
    %v1725 = vadd.f32 %v1715, %v1723
    %v1726 = vtanh.pop %v1725
    %1728 = vrot.lane.b32.xlu0 %v1726, 64
    %v1729 = vpop.permute.xlu0 %1728
    %v1731 = vmul.f32 %v1710, %v1729
    %1733 = vrot.lane.b32.xlu0 %v1624, 32
    %v1734 = vpop.permute.xlu0 %1733
    %1736 = vst.msk [vmem:[#allocation3 + $0x2] sm:$0x10] %vm834, %v1734
    %1738 = vrot.lane.b32.xlu0 %v1731, 64
    %v1739 = vpop.permute.xlu0 %1738
    %1741 = vst.msk [vmem:[#allocation3 + $0x7] sm:$0x4] %vm840, %v1739
    %1742 = vst.msk [vmem:[#allocation3 + $0x11] sm:$0x20] %vm842, %v1734
    %1743 = vst.msk [vmem:[#allocation3 + $0x16] sm:$0x8] %vm844, %v1739
    %v1744 = vld [vmem:[#allocation2 + $0x10] sm:$0xc0]
    %v1745 = vrot.slane %v1624, 4
    %1746 = vrot.lane.b32.xlu0 %v1745, 32
    %v1747 = vpop.permute.xlu0 %1746
    %v1748 = vsel %vm57, %v1747, 0
    %1750 = vmatprep.subr.mxu0 0.0
    %1751 = vmatpush1.msra.mxu0 %v167
    %1752 = vmatprep.subr.mxu0 0.0
    %1753 = vmatpush1.msra.mxu0 %v168
    %1754 = vmatprep.subr.mxu0 0.0
    %1755 = vmatpush1.msra.mxu0 %v169
    %1756 = vmatprep.subr.mxu0 0.0
    %1757 = vmatpush1.msra.mxu0 %v170
    %1758 = vmatprep.subr.mxu0 0.0
    %1759 = vmatpush1.msra.mxu0 0.0
    %1760 = vmatprep.subr.mxu0 0.0
    %1761 = vmatpush1.msra.mxu0 0.0
    %1762 = vmatprep.subr.mxu0 0.0
    %1763 = vmatpush1.msra.mxu0 0.0
    %1764 = vmatprep.subr.mxu0 0.0
    %1765 = vmatpush1.msra.mxu0 0.0
    %1766 = vmatprep.subr.mxu0 0.0
    %1767 = vmatpush1.msra.mxu0 0.0
    %1768 = vmatprep.subr.mxu0 0.0
    %1769 = vmatpush1.msra.mxu0 0.0
    %1770 = vmatprep.subr.mxu0 0.0
    %1771 = vmatpush1.msra.mxu0 0.0
    %1772 = vmatprep.subr.mxu0 0.0
    %1773 = vmatpush1.msra.mxu0 0.0
    %1774 = vmatprep.subr.mxu0 0.0
    %1775 = vmatpush1.msra.mxu0 0.0
    %1776 = vmatprep.subr.mxu0 0.0
    %1777 = vmatpush1.msra.mxu0 0.0
    %1778 = vmatprep.subr.mxu0 0.0
    %1779 = vmatpush1.msra.mxu0 0.0
    %1780 = vmatprep.subr.mxu0 0.0
    %1781 = vmatpush1.msra.mxu0 0.0
    %1782 = vmatprep.subr.mxu0 0.0
    %1783 = vmatpush1.msra.mxu0 0.0
    %1784 = vmatprep.subr.mxu0 0.0
    %1785 = vmatpush1.msra.mxu0 0.0
    %1786 = vmatprep.subr.mxu0 0.0
    %1787 = vmatpush1.msra.mxu0 0.0
    %1788 = vmatprep.subr.mxu0 0.0
    %1789 = vmatpush1.msra.mxu0 0.0
    %1790 = vmatprep.subr.mxu0 0.0
    %1791 = vmatpush1.msra.mxu0 0.0
    %1792 = vmatprep.subr.mxu0 0.0
    %1793 = vmatpush1.msra.mxu0 0.0
    %1794 = vmatprep.subr.mxu0 0.0
    %1795 = vmatpush1.msra.mxu0 0.0
    %1796 = vmatprep.subr.mxu0 0.0
    %1797 = vmatpush1.msra.mxu0 0.0
    %1798 = vmatprep.subr.mxu0 0.0
    %1799 = vmatpush1.msra.mxu0 0.0
    %1800 = vmatprep.subr.mxu0 0.0
    %1801 = vmatpush1.msra.mxu0 0.0
    %1802 = vmatprep.subr.mxu0 0.0
    %1803 = vmatpush1.msra.mxu0 0.0
    %1804 = vmatprep.subr.mxu0 0.0
    %1805 = vmatpush1.msra.mxu0 0.0
    %1806 = vmatprep.subr.mxu0 0.0
    %1807 = vmatpush1.msra.mxu0 0.0
    %1808 = vmatprep.subr.mxu0 0.0
    %1809 = vmatpush1.msra.mxu0 0.0
    %1810 = vmatprep.subr.mxu0 0.0
    %1811 = vmatpush1.msra.mxu0 0.0
    %1812 = vmatprep.subr.mxu0 0.0
    %1813 = vmatpush1.msra.mxu0 0.0
    %1814 = vmatprep.mubr.f32.mxu0 0.0
    %1815 = vmatmul.mubr.f32.gmra.mrb[0].mxu0 %v1748
    %v1816 = vpop.f32.mrb[0].mxu0
    %v1817 = vadd.f32 0.0, %v1816
    %v1818 = vpop.f32.mrb[0].mxu0
    %1819 = vdwg.mxu0
    %v1821 = vrot.slane %v1817, 2
    %v1823 = vadd.f32 %v1744, %v1821
    %v1824 = vxor.u32 %v1823, 2147483648
    %v1825 = vmul.f32 %v1824, 1.442695
    %v1826 = vpow.pop %v1825
    %v1827 = vadd.f32 %v1826, 1.0
    %v1828 = vrcp.pop %v1827
    %v1829 = vmul.f32 1.0, %v1828
    %v1830 = vtanh.pop %v1823
    %v1832 = vrot.slane %v1618, 6
    %v1834 = vmul.f32 %v1829, %v1832
    %1836 = vrot.lane.b32.xlu0 %v1830, 64
    %v1837 = vpop.permute.xlu0 %1836
    %v1839 = vmul.f32 %v1829, %v1837
    %1841 = vrot.lane.b32.xlu0 %v1839, 32
    %v1842 = vpop.permute.xlu0 %1841
    %v1844 = vadd.f32 %v1834, %v1842
    %v1845 = vtanh.pop %v1844
    %1847 = vrot.lane.b32.xlu0 %v1845, 64
    %v1848 = vpop.permute.xlu0 %1847
    %v1850 = vmul.f32 %v1829, %v1848
    %v1851 = vld [vmem:[#allocation2 + $0x28] sm:$0x3]
    %v1852 = vrot.slane %v1731, 2
    %1853 = vrot.lane.b32.xlu0 %v1852, 32
    %v1854 = vpop.permute.xlu0 %1853
    %v1855 = vsel %vm57, %v1854, 0
    %1857 = vmatprep.subr.mxu0 0.0
    %1858 = vmatpush1.msra.mxu0 %v171
    %1859 = vmatprep.subr.mxu0 0.0
    %1860 = vmatpush1.msra.mxu0 %v172
    %1861 = vmatprep.subr.mxu0 0.0
    %1862 = vmatpush1.msra.mxu0 %v173
    %1863 = vmatprep.subr.mxu0 0.0
    %1864 = vmatpush1.msra.mxu0 %v174
    %1865 = vmatprep.subr.mxu0 0.0
    %1866 = vmatpush1.msra.mxu0 0.0
    %1867 = vmatprep.subr.mxu0 0.0
    %1868 = vmatpush1.msra.mxu0 0.0
    %1869 = vmatprep.subr.mxu0 0.0
    %1870 = vmatpush1.msra.mxu0 0.0
    %1871 = vmatprep.subr.mxu0 0.0
    %1872 = vmatpush1.msra.mxu0 0.0
    %1873 = vmatprep.subr.mxu0 0.0
    %1874 = vmatpush1.msra.mxu0 0.0
    %1875 = vmatprep.subr.mxu0 0.0
    %1876 = vmatpush1.msra.mxu0 0.0
    %1877 = vmatprep.subr.mxu0 0.0
    %1878 = vmatpush1.msra.mxu0 0.0
    %1879 = vmatprep.subr.mxu0 0.0
    %1880 = vmatpush1.msra.mxu0 0.0
    %1881 = vmatprep.subr.mxu0 0.0
    %1882 = vmatpush1.msra.mxu0 0.0
    %1883 = vmatprep.subr.mxu0 0.0
    %1884 = vmatpush1.msra.mxu0 0.0
    %1885 = vmatprep.subr.mxu0 0.0
    %1886 = vmatpush1.msra.mxu0 0.0
    %1887 = vmatprep.subr.mxu0 0.0
    %1888 = vmatpush1.msra.mxu0 0.0
    %1889 = vmatprep.subr.mxu0 0.0
    %1890 = vmatpush1.msra.mxu0 0.0
    %1891 = vmatprep.subr.mxu0 0.0
    %1892 = vmatpush1.msra.mxu0 0.0
    %1893 = vmatprep.subr.mxu0 0.0
    %1894 = vmatpush1.msra.mxu0 0.0
    %1895 = vmatprep.subr.mxu0 0.0
    %1896 = vmatpush1.msra.mxu0 0.0
    %1897 = vmatprep.subr.mxu0 0.0
    %1898 = vmatpush1.msra.mxu0 0.0
    %1899 = vmatprep.subr.mxu0 0.0
    %1900 = vmatpush1.msra.mxu0 0.0
    %1901 = vmatprep.subr.mxu0 0.0
    %1902 = vmatpush1.msra.mxu0 0.0
    %1903 = vmatprep.subr.mxu0 0.0
    %1904 = vmatpush1.msra.mxu0 0.0
    %1905 = vmatprep.subr.mxu0 0.0
    %1906 = vmatpush1.msra.mxu0 0.0
    %1907 = vmatprep.subr.mxu0 0.0
    %1908 = vmatpush1.msra.mxu0 0.0
    %1909 = vmatprep.subr.mxu0 0.0
    %1910 = vmatpush1.msra.mxu0 0.0
    %1911 = vmatprep.subr.mxu0 0.0
    %1912 = vmatpush1.msra.mxu0 0.0
    %1913 = vmatprep.subr.mxu0 0.0
    %1914 = vmatpush1.msra.mxu0 0.0
    %1915 = vmatprep.subr.mxu0 0.0
    %1916 = vmatpush1.msra.mxu0 0.0
    %1917 = vmatprep.subr.mxu0 0.0
    %1918 = vmatpush1.msra.mxu0 0.0
    %1919 = vmatprep.subr.mxu0 0.0
    %1920 = vmatpush1.msra.mxu0 0.0
    %1921 = vmatprep.mubr.f32.mxu0 0.0
    %1922 = vmatmul.mubr.f32.gmra.mrb[0].mxu0 %v1855
    %v1923 = vpop.f32.mrb[0].mxu0
    %v1924 = vadd.f32 0.0, %v1923
    %v1925 = vpop.f32.mrb[0].mxu0
    %1926 = vdwg.mxu0
    %v1927 = vadd.f32 %v1851, %v1924
    %v1928 = vxor.u32 %v1927, 2147483648
    %v1929 = vmul.f32 %v1928, 1.442695
    %v1930 = vpow.pop %v1929
    %v1931 = vadd.f32 %v1930, 1.0
    %v1932 = vrcp.pop %v1931
    %v1933 = vmul.f32 1.0, %v1932
    %v1934 = vtanh.pop %v1927
    %v1936 = vrot.slane %v1725, 2
    %v1938 = vmul.f32 %v1933, %v1936
    %1940 = vrot.lane.b32.xlu0 %v1934, 64
    %v1941 = vpop.permute.xlu0 %1940
    %v1943 = vmul.f32 %v1933, %v1941
    %1945 = vrot.lane.b32.xlu0 %v1943, 32
    %v1946 = vpop.permute.xlu0 %1945
    %v1948 = vadd.f32 %v1938, %v1946
    %v1949 = vtanh.pop %v1948
    %1951 = vrot.lane.b32.xlu0 %v1949, 64
    %v1952 = vpop.permute.xlu0 %1951
    %v1954 = vmul.f32 %v1933, %v1952
    %1956 = vrot.lane.b32.xlu0 %v1850, 32
    %v1957 = vpop.permute.xlu0 %1956
    %1959 = vst.msk [vmem:[#allocation3 + $0x1] sm:$0x40] %vm1061, %v1957
    %1961 = vrot.lane.b32.xlu0 %v1954, 64
    %v1962 = vpop.permute.xlu0 %1961
    %1964 = vst.msk [vmem:[#allocation3 + $0x8] sm:$0x1] %vm1067, %v1962
    %1965 = vst.msk [vmem:[#allocation3 + $0x10] sm:$0x80] %vm1069, %v1957
    %1966 = vst.msk [vmem:[#allocation3 + $0x17] sm:$0x2] %vm1071, %v1962
    %v1967 = vld [vmem:[#allocation2 + $0x20] sm:$0x3]
    %v1968 = vrot.slane %v1850, 6
    %1969 = vrot.lane.b32.xlu0 %v1968, 32
    %v1970 = vpop.permute.xlu0 %1969
    %v1971 = vsel %vm57, %v1970, 0
    %1973 = vmatprep.subr.mxu0 0.0
    %1974 = vmatpush1.msra.mxu0 %v167
    %1975 = vmatprep.subr.mxu0 0.0
    %1976 = vmatpush1.msra.mxu0 %v168
    %1977 = vmatprep.subr.mxu0 0.0
    %1978 = vmatpush1.msra.mxu0 %v169
    %1979 = vmatprep.subr.mxu0 0.0
    %1980 = vmatpush1.msra.mxu0 %v170
    %1981 = vmatprep.subr.mxu0 0.0
    %1982 = vmatpush1.msra.mxu0 0.0
    %1983 = vmatprep.subr.mxu0 0.0
    %1984 = vmatpush1.msra.mxu0 0.0
    %1985 = vmatprep.subr.mxu0 0.0
    %1986 = vmatpush1.msra.mxu0 0.0
    %1987 = vmatprep.subr.mxu0 0.0
    %1988 = vmatpush1.msra.mxu0 0.0
    %1989 = vmatprep.subr.mxu0 0.0
    %1990 = vmatpush1.msra.mxu0 0.0
    %1991 = vmatprep.subr.mxu0 0.0
    %1992 = vmatpush1.msra.mxu0 0.0
    %1993 = vmatprep.subr.mxu0 0.0
    %1994 = vmatpush1.msra.mxu0 0.0
    %1995 = vmatprep.subr.mxu0 0.0
    %1996 = vmatpush1.msra.mxu0 0.0
    %1997 = vmatprep.subr.mxu0 0.0
    %1998 = vmatpush1.msra.mxu0 0.0
    %1999 = vmatprep.subr.mxu0 0.0
    %2000 = vmatpush1.msra.mxu0 0.0
    %2001 = vmatprep.subr.mxu0 0.0
    %2002 = vmatpush1.msra.mxu0 0.0
    %2003 = vmatprep.subr.mxu0 0.0
    %2004 = vmatpush1.msra.mxu0 0.0
    %2005 = vmatprep.subr.mxu0 0.0
    %2006 = vmatpush1.msra.mxu0 0.0
    %2007 = vmatprep.subr.mxu0 0.0
    %2008 = vmatpush1.msra.mxu0 0.0
    %2009 = vmatprep.subr.mxu0 0.0
    %2010 = vmatpush1.msra.mxu0 0.0
    %2011 = vmatprep.subr.mxu0 0.0
    %2012 = vmatpush1.msra.mxu0 0.0
    %2013 = vmatprep.subr.mxu0 0.0
    %2014 = vmatpush1.msra.mxu0 0.0
    %2015 = vmatprep.subr.mxu0 0.0
    %2016 = vmatpush1.msra.mxu0 0.0
    %2017 = vmatprep.subr.mxu0 0.0
    %2018 = vmatpush1.msra.mxu0 0.0
    %2019 = vmatprep.subr.mxu0 0.0
    %2020 = vmatpush1.msra.mxu0 0.0
    %2021 = vmatprep.subr.mxu0 0.0
    %2022 = vmatpush1.msra.mxu0 0.0
    %2023 = vmatprep.subr.mxu0 0.0
    %2024 = vmatpush1.msra.mxu0 0.0
    %2025 = vmatprep.subr.mxu0 0.0
    %2026 = vmatpush1.msra.mxu0 0.0
    %2027 = vmatprep.subr.mxu0 0.0
    %2028 = vmatpush1.msra.mxu0 0.0
    %2029 = vmatprep.subr.mxu0 0.0
    %2030 = vmatpush1.msra.mxu0 0.0
    %2031 = vmatprep.subr.mxu0 0.0
    %2032 = vmatpush1.msra.mxu0 0.0
    %2033 = vmatprep.subr.mxu0 0.0
    %2034 = vmatpush1.msra.mxu0 0.0
    %2035 = vmatprep.subr.mxu0 0.0
    %2036 = vmatpush1.msra.mxu0 0.0
    %2037 = vmatprep.mubr.f32.mxu0 0.0
    %2038 = vmatmul.mubr.f32.gmra.mrb[0].mxu0 %v1971
    %v2039 = vpop.f32.mrb[0].mxu0
    %v2040 = vadd.f32 0.0, %v2039
    %v2041 = vpop.f32.mrb[0].mxu0
    %2042 = vdwg.mxu0
    %v2043 = vadd.f32 %v1967, %v2040
    %v2044 = vxor.u32 %v2043, 2147483648
    %v2045 = vmul.f32 %v2044, 1.442695
    %v2046 = vpow.pop %v2045
    %v2047 = vadd.f32 %v2046, 1.0
    %v2048 = vrcp.pop %v2047
    %v2049 = vmul.f32 1.0, %v2048
    %v2050 = vtanh.pop %v2043
    %v2052 = vrot.slane %v1844, 6
    %v2054 = vmul.f32 %v2049, %v2052
    %2056 = vrot.lane.b32.xlu0 %v2050, 64
    %v2057 = vpop.permute.xlu0 %2056
    %v2059 = vmul.f32 %v2049, %v2057
    %2061 = vrot.lane.b32.xlu0 %v2059, 32
    %v2062 = vpop.permute.xlu0 %2061
    %v2064 = vadd.f32 %v2054, %v2062
    %v2065 = vtanh.pop %v2064
    %2067 = vrot.lane.b32.xlu0 %v2065, 64
    %v2068 = vpop.permute.xlu0 %2067
    %v2070 = vmul.f32 %v2049, %v2068
    %v2071 = vld [vmem:[#allocation2 + $0x18] sm:$0xc0]
    %2072 = vrot.lane.b32.xlu0 %v1954, 32
    %v2073 = vpop.permute.xlu0 %2072
    %v2074 = vsel %vm57, %v2073, 0
    %2076 = vmatprep.subr.mxu0 0.0
    %2077 = vmatpush1.msra.mxu0 %v171
    %2078 = vmatprep.subr.mxu0 0.0
    %2079 = vmatpush1.msra.mxu0 %v172
    %2080 = vmatprep.subr.mxu0 0.0
    %2081 = vmatpush1.msra.mxu0 %v173
    %2082 = vmatprep.subr.mxu0 0.0
    %2083 = vmatpush1.msra.mxu0 %v174
    %2084 = vmatprep.subr.mxu0 0.0
    %2085 = vmatpush1.msra.mxu0 0.0
    %2086 = vmatprep.subr.mxu0 0.0
    %2087 = vmatpush1.msra.mxu0 0.0
    %2088 = vmatprep.subr.mxu0 0.0
    %2089 = vmatpush1.msra.mxu0 0.0
    %2090 = vmatprep.subr.mxu0 0.0
    %2091 = vmatpush1.msra.mxu0 0.0
    %2092 = vmatprep.subr.mxu0 0.0
    %2093 = vmatpush1.msra.mxu0 0.0
    %2094 = vmatprep.subr.mxu0 0.0
    %2095 = vmatpush1.msra.mxu0 0.0
    %2096 = vmatprep.subr.mxu0 0.0
    %2097 = vmatpush1.msra.mxu0 0.0
    %2098 = vmatprep.subr.mxu0 0.0
    %2099 = vmatpush1.msra.mxu0 0.0
    %2100 = vmatprep.subr.mxu0 0.0
    %2101 = vmatpush1.msra.mxu0 0.0
    %2102 = vmatprep.subr.mxu0 0.0
    %2103 = vmatpush1.msra.mxu0 0.0
    %2104 = vmatprep.subr.mxu0 0.0
    %2105 = vmatpush1.msra.mxu0 0.0
    %2106 = vmatprep.subr.mxu0 0.0
    %2107 = vmatpush1.msra.mxu0 0.0
    %2108 = vmatprep.subr.mxu0 0.0
    %2109 = vmatpush1.msra.mxu0 0.0
    %2110 = vmatprep.subr.mxu0 0.0
    %2111 = vmatpush1.msra.mxu0 0.0
    %2112 = vmatprep.subr.mxu0 0.0
    %2113 = vmatpush1.msra.mxu0 0.0
    %2114 = vmatprep.subr.mxu0 0.0
    %2115 = vmatpush1.msra.mxu0 0.0
    %2116 = vmatprep.subr.mxu0 0.0
    %2117 = vmatpush1.msra.mxu0 0.0
    %2118 = vmatprep.subr.mxu0 0.0
    %2119 = vmatpush1.msra.mxu0 0.0
    %2120 = vmatprep.subr.mxu0 0.0
    %2121 = vmatpush1.msra.mxu0 0.0
    %2122 = vmatprep.subr.mxu0 0.0
    %2123 = vmatpush1.msra.mxu0 0.0
    %2124 = vmatprep.subr.mxu0 0.0
    %2125 = vmatpush1.msra.mxu0 0.0
    %2126 = vmatprep.subr.mxu0 0.0
    %2127 = vmatpush1.msra.mxu0 0.0
    %2128 = vmatprep.subr.mxu0 0.0
    %2129 = vmatpush1.msra.mxu0 0.0
    %2130 = vmatprep.subr.mxu0 0.0
    %2131 = vmatpush1.msra.mxu0 0.0
    %2132 = vmatprep.subr.mxu0 0.0
    %2133 = vmatpush1.msra.mxu0 0.0
    %2134 = vmatprep.subr.mxu0 0.0
    %2135 = vmatpush1.msra.mxu0 0.0
    %2136 = vmatprep.subr.mxu0 0.0
    %2137 = vmatpush1.msra.mxu0 0.0
    %2138 = vmatprep.subr.mxu0 0.0
    %2139 = vmatpush1.msra.mxu0 0.0
    %2140 = vmatprep.mubr.f32.mxu0 0.0
    %2141 = vmatmul.mubr.f32.gmra.mrb[0].mxu0 %v2074
    %v2142 = vpop.f32.mrb[0].mxu0
    %v2143 = vadd.f32 0.0, %v2142
    %v2144 = vpop.f32.mrb[0].mxu0
    %2145 = vdwg.mxu0
    %v2147 = vrot.slane %v2143, 2
    %v2149 = vadd.f32 %v2071, %v2147
    %v2150 = vxor.u32 %v2149, 2147483648
    %v2151 = vmul.f32 %v2150, 1.442695
    %v2152 = vpow.pop %v2151
    %v2153 = vadd.f32 %v2152, 1.0
    %v2154 = vrcp.pop %v2153
    %v2155 = vmul.f32 1.0, %v2154
    %v2156 = vtanh.pop %v2149
    %v2158 = vrot.slane %v1948, 2
    %v2160 = vmul.f32 %v2155, %v2158
    %2162 = vrot.lane.b32.xlu0 %v2156, 64
    %v2163 = vpop.permute.xlu0 %2162
    %v2165 = vmul.f32 %v2155, %v2163
    %2167 = vrot.lane.b32.xlu0 %v2165, 32
    %v2168 = vpop.permute.xlu0 %2167
    %v2170 = vadd.f32 %v2160, %v2168
    %v2171 = vtanh.pop %v2170
    %2173 = vrot.lane.b32.xlu0 %v2171, 64
    %v2174 = vpop.permute.xlu0 %2173
    %v2176 = vmul.f32 %v2155, %v2174
    %2178 = vrot.lane.b32.xlu0 %v2070, 32
    %v2179 = vpop.permute.xlu0 %2178
    %2181 = vst.msk [vmem:[#allocation3 + $0x8] sm:$0x1] %vm377, %v2179
    %2183 = vrot.lane.b32.xlu0 %v2176, 64
    %v2184 = vpop.permute.xlu0 %2183
    %2186 = vst.msk [vmem:[#allocation3 + $0x1] sm:$0x40] %vm383, %v2184
    %2187 = vst.msk [vmem:[#allocation3 + $0x17] sm:$0x2] %vm385, %v2179
    %2188 = vst.msk [vmem:[#allocation3 + $0x10] sm:$0x80] %vm387, %v2184
    %v2189 = vld [vmem:[#allocation2 + $0x20] sm:$0xc]
    %v2190 = vsel %vm57, %v2179, 0
    %2192 = vmatprep.subr.mxu0 0.0
    %2193 = vmatpush1.msra.mxu0 %v167
    %2194 = vmatprep.subr.mxu0 0.0
    %2195 = vmatpush1.msra.mxu0 %v168
    %2196 = vmatprep.subr.mxu0 0.0
    %2197 = vmatpush1.msra.mxu0 %v169
    %2198 = vmatprep.subr.mxu0 0.0
    %2199 = vmatpush1.msra.mxu0 %v170
    %2200 = vmatprep.subr.mxu0 0.0
    %2201 = vmatpush1.msra.mxu0 0.0
    %2202 = vmatprep.subr.mxu0 0.0
    %2203 = vmatpush1.msra.mxu0 0.0
    %2204 = vmatprep.subr.mxu0 0.0
    %2205 = vmatpush1.msra.mxu0 0.0
    %2206 = vmatprep.subr.mxu0 0.0
    %2207 = vmatpush1.msra.mxu0 0.0
    %2208 = vmatprep.subr.mxu0 0.0
    %2209 = vmatpush1.msra.mxu0 0.0
    %2210 = vmatprep.subr.mxu0 0.0
    %2211 = vmatpush1.msra.mxu0 0.0
    %2212 = vmatprep.subr.mxu0 0.0
    %2213 = vmatpush1.msra.mxu0 0.0
    %2214 = vmatprep.subr.mxu0 0.0
    %2215 = vmatpush1.msra.mxu0 0.0
    %2216 = vmatprep.subr.mxu0 0.0
    %2217 = vmatpush1.msra.mxu0 0.0
    %2218 = vmatprep.subr.mxu0 0.0
    %2219 = vmatpush1.msra.mxu0 0.0
    %2220 = vmatprep.subr.mxu0 0.0
    %2221 = vmatpush1.msra.mxu0 0.0
    %2222 = vmatprep.subr.mxu0 0.0
    %2223 = vmatpush1.msra.mxu0 0.0
    %2224 = vmatprep.subr.mxu0 0.0
    %2225 = vmatpush1.msra.mxu0 0.0
    %2226 = vmatprep.subr.mxu0 0.0
    %2227 = vmatpush1.msra.mxu0 0.0
    %2228 = vmatprep.subr.mxu0 0.0
    %2229 = vmatpush1.msra.mxu0 0.0
    %2230 = vmatprep.subr.mxu0 0.0
    %2231 = vmatpush1.msra.mxu0 0.0
    %2232 = vmatprep.subr.mxu0 0.0
    %2233 = vmatpush1.msra.mxu0 0.0
    %2234 = vmatprep.subr.mxu0 0.0
    %2235 = vmatpush1.msra.mxu0 0.0
    %2236 = vmatprep.subr.mxu0 0.0
    %2237 = vmatpush1.msra.mxu0 0.0
    %2238 = vmatprep.subr.mxu0 0.0
    %2239 = vmatpush1.msra.mxu0 0.0
    %2240 = vmatprep.subr.mxu0 0.0
    %2241 = vmatpush1.msra.mxu0 0.0
    %2242 = vmatprep.subr.mxu0 0.0
    %2243 = vmatpush1.msra.mxu0 0.0
    %2244 = vmatprep.subr.mxu0 0.0
    %2245 = vmatpush1.msra.mxu0 0.0
    %2246 = vmatprep.subr.mxu0 0.0
    %2247 = vmatpush1.msra.mxu0 0.0
    %2248 = vmatprep.subr.mxu0 0.0
    %2249 = vmatpush1.msra.mxu0 0.0
    %2250 = vmatprep.subr.mxu0 0.0
    %2251 = vmatpush1.msra.mxu0 0.0
    %2252 = vmatprep.subr.mxu0 0.0
    %2253 = vmatpush1.msra.mxu0 0.0
    %2254 = vmatprep.subr.mxu0 0.0
    %2255 = vmatpush1.msra.mxu0 0.0
    %2256 = vmatprep.mubr.f32.mxu0 0.0
    %2257 = vmatmul.mubr.f32.gmra.mrb[0].mxu0 %v2190
    %v2258 = vpop.f32.mrb[0].mxu0
    %v2259 = vadd.f32 0.0, %v2258
    %v2260 = vpop.f32.mrb[0].mxu0
    %2261 = vdwg.mxu0
    %v2263 = vrot.slane %v2259, 6
    %v2265 = vadd.f32 %v2189, %v2263
    %v2266 = vxor.u32 %v2265, 2147483648
    %v2267 = vmul.f32 %v2266, 1.442695
    %v2268 = vpow.pop %v2267
    %v2269 = vadd.f32 %v2268, 1.0
    %v2270 = vrcp.pop %v2269
    %v2271 = vmul.f32 1.0, %v2270
    %v2272 = vtanh.pop %v2265
    %v2274 = vrot.slane %v2064, 6
    %v2276 = vmul.f32 %v2271, %v2274
    %2278 = vrot.lane.b32.xlu0 %v2272, 64
    %v2279 = vpop.permute.xlu0 %2278
    %v2281 = vmul.f32 %v2271, %v2279
    %2283 = vrot.lane.b32.xlu0 %v2281, 32
    %v2284 = vpop.permute.xlu0 %2283
    %v2286 = vadd.f32 %v2276, %v2284
    %v2287 = vtanh.pop %v2286
    %2289 = vrot.lane.b32.xlu0 %v2287, 64
    %v2290 = vpop.permute.xlu0 %2289
    %v2292 = vmul.f32 %v2271, %v2290
    %v2293 = vld [vmem:[#allocation2 + $0x18] sm:$0x30]
    %v2294 = vrot.slane %v2176, 6
    %2295 = vrot.lane.b32.xlu0 %v2294, 32
    %v2296 = vpop.permute.xlu0 %2295
    %v2297 = vsel %vm57, %v2296, 0
    %2299 = vmatprep.subr.mxu0 0.0
    %2300 = vmatpush1.msra.mxu0 %v171
    %2301 = vmatprep.subr.mxu0 0.0
    %2302 = vmatpush1.msra.mxu0 %v172
    %2303 = vmatprep.subr.mxu0 0.0
    %2304 = vmatpush1.msra.mxu0 %v173
    %2305 = vmatprep.subr.mxu0 0.0
    %2306 = vmatpush1.msra.mxu0 %v174
    %2307 = vmatprep.subr.mxu0 0.0
    %2308 = vmatpush1.msra.mxu0 0.0
    %2309 = vmatprep.subr.mxu0 0.0
    %2310 = vmatpush1.msra.mxu0 0.0
    %2311 = vmatprep.subr.mxu0 0.0
    %2312 = vmatpush1.msra.mxu0 0.0
    %2313 = vmatprep.subr.mxu0 0.0
    %2314 = vmatpush1.msra.mxu0 0.0
    %2315 = vmatprep.subr.mxu0 0.0
    %2316 = vmatpush1.msra.mxu0 0.0
    %2317 = vmatprep.subr.mxu0 0.0
    %2318 = vmatpush1.msra.mxu0 0.0
    %2319 = vmatprep.subr.mxu0 0.0
    %2320 = vmatpush1.msra.mxu0 0.0
    %2321 = vmatprep.subr.mxu0 0.0
    %2322 = vmatpush1.msra.mxu0 0.0
    %2323 = vmatprep.subr.mxu0 0.0
    %2324 = vmatpush1.msra.mxu0 0.0
    %2325 = vmatprep.subr.mxu0 0.0
    %2326 = vmatpush1.msra.mxu0 0.0
    %2327 = vmatprep.subr.mxu0 0.0
    %2328 = vmatpush1.msra.mxu0 0.0
    %2329 = vmatprep.subr.mxu0 0.0
    %2330 = vmatpush1.msra.mxu0 0.0
    %2331 = vmatprep.subr.mxu0 0.0
    %2332 = vmatpush1.msra.mxu0 0.0
    %2333 = vmatprep.subr.mxu0 0.0
    %2334 = vmatpush1.msra.mxu0 0.0
    %2335 = vmatprep.subr.mxu0 0.0
    %2336 = vmatpush1.msra.mxu0 0.0
    %2337 = vmatprep.subr.mxu0 0.0
    %2338 = vmatpush1.msra.mxu0 0.0
    %2339 = vmatprep.subr.mxu0 0.0
    %2340 = vmatpush1.msra.mxu0 0.0
    %2341 = vmatprep.subr.mxu0 0.0
    %2342 = vmatpush1.msra.mxu0 0.0
    %2343 = vmatprep.subr.mxu0 0.0
    %2344 = vmatpush1.msra.mxu0 0.0
    %2345 = vmatprep.subr.mxu0 0.0
    %2346 = vmatpush1.msra.mxu0 0.0
    %2347 = vmatprep.subr.mxu0 0.0
    %2348 = vmatpush1.msra.mxu0 0.0
    %2349 = vmatprep.subr.mxu0 0.0
    %2350 = vmatpush1.msra.mxu0 0.0
    %2351 = vmatprep.subr.mxu0 0.0
    %2352 = vmatpush1.msra.mxu0 0.0
    %2353 = vmatprep.subr.mxu0 0.0
    %2354 = vmatpush1.msra.mxu0 0.0
    %2355 = vmatprep.subr.mxu0 0.0
    %2356 = vmatpush1.msra.mxu0 0.0
    %2357 = vmatprep.subr.mxu0 0.0
    %2358 = vmatpush1.msra.mxu0 0.0
    %2359 = vmatprep.subr.mxu0 0.0
    %2360 = vmatpush1.msra.mxu0 0.0
    %2361 = vmatprep.subr.mxu0 0.0
    %2362 = vmatpush1.msra.mxu0 0.0
    %2363 = vmatprep.mubr.f32.mxu0 0.0
    %2364 = vmatmul.mubr.f32.gmra.mrb[0].mxu0 %v2297
    %v2365 = vpop.f32.mrb[0].mxu0
    %v2366 = vadd.f32 0.0, %v2365
    %v2367 = vpop.f32.mrb[0].mxu0
    %2368 = vdwg.mxu0
    %v2370 = vrot.slane %v2366, 4
    %v2372 = vadd.f32 %v2293, %v2370
    %v2373 = vxor.u32 %v2372, 2147483648
    %v2374 = vmul.f32 %v2373, 1.442695
    %v2375 = vpow.pop %v2374
    %v2376 = vadd.f32 %v2375, 1.0
    %v2377 = vrcp.pop %v2376
    %v2378 = vmul.f32 1.0, %v2377
    %v2379 = vtanh.pop %v2372
    %v2381 = vrot.slane %v2170, 2
    %v2383 = vmul.f32 %v2378, %v2381
    %2385 = vrot.lane.b32.xlu0 %v2379, 64
    %v2386 = vpop.permute.xlu0 %2385
    %v2388 = vmul.f32 %v2378, %v2386
    %2390 = vrot.lane.b32.xlu0 %v2388, 32
    %v2391 = vpop.permute.xlu0 %2390
    %v2393 = vadd.f32 %v2383, %v2391
    %v2394 = vtanh.pop %v2393
    %2396 = vrot.lane.b32.xlu0 %v2394, 64
    %v2397 = vpop.permute.xlu0 %2396
    %v2399 = vmul.f32 %v2378, %v2397
    %2401 = vrot.lane.b32.xlu0 %v2292, 32
    %v2402 = vpop.permute.xlu0 %2401
    %2404 = vst.msk [vmem:[#allocation3 + $0x7] sm:$0x4] %vm604, %v2402
    %2406 = vrot.lane.b32.xlu0 %v2399, 64
    %v2407 = vpop.permute.xlu0 %2406
    %2409 = vst.msk [vmem:[#allocation3 + $0x2] sm:$0x10] %vm610, %v2407
    %2410 = vst.msk [vmem:[#allocation3 + $0x16] sm:$0x8] %vm612, %v2402
    %2411 = vst.msk [vmem:[#allocation3 + $0x11] sm:$0x20] %vm614, %v2407
    %v2412 = vld [vmem:[#allocation2 + $0x20] sm:$0x30]
    %v2413 = vrot.slane %v2292, 2
    %2414 = vrot.lane.b32.xlu0 %v2413, 32
    %v2415 = vpop.permute.xlu0 %2414
    %v2416 = vsel %vm57, %v2415, 0
    %2418 = vmatprep.subr.mxu0 0.0
    %2419 = vmatpush1.msra.mxu0 %v167
    %2420 = vmatprep.subr.mxu0 0.0
    %2421 = vmatpush1.msra.mxu0 %v168
    %2422 = vmatprep.subr.mxu0 0.0
    %2423 = vmatpush1.msra.mxu0 %v169
    %2424 = vmatprep.subr.mxu0 0.0
    %2425 = vmatpush1.msra.mxu0 %v170
    %2426 = vmatprep.subr.mxu0 0.0
    %2427 = vmatpush1.msra.mxu0 0.0
    %2428 = vmatprep.subr.mxu0 0.0
    %2429 = vmatpush1.msra.mxu0 0.0
    %2430 = vmatprep.subr.mxu0 0.0
    %2431 = vmatpush1.msra.mxu0 0.0
    %2432 = vmatprep.subr.mxu0 0.0
    %2433 = vmatpush1.msra.mxu0 0.0
    %2434 = vmatprep.subr.mxu0 0.0
    %2435 = vmatpush1.msra.mxu0 0.0
    %2436 = vmatprep.subr.mxu0 0.0
    %2437 = vmatpush1.msra.mxu0 0.0
    %2438 = vmatprep.subr.mxu0 0.0
    %2439 = vmatpush1.msra.mxu0 0.0
    %2440 = vmatprep.subr.mxu0 0.0
    %2441 = vmatpush1.msra.mxu0 0.0
    %2442 = vmatprep.subr.mxu0 0.0
    %2443 = vmatpush1.msra.mxu0 0.0
    %2444 = vmatprep.subr.mxu0 0.0
    %2445 = vmatpush1.msra.mxu0 0.0
    %2446 = vmatprep.subr.mxu0 0.0
    %2447 = vmatpush1.msra.mxu0 0.0
    %2448 = vmatprep.subr.mxu0 0.0
    %2449 = vmatpush1.msra.mxu0 0.0
    %2450 = vmatprep.subr.mxu0 0.0
    %2451 = vmatpush1.msra.mxu0 0.0
    %2452 = vmatprep.subr.mxu0 0.0
    %2453 = vmatpush1.msra.mxu0 0.0
    %2454 = vmatprep.subr.mxu0 0.0
    %2455 = vmatpush1.msra.mxu0 0.0
    %2456 = vmatprep.subr.mxu0 0.0
    %2457 = vmatpush1.msra.mxu0 0.0
    %2458 = vmatprep.subr.mxu0 0.0
    %2459 = vmatpush1.msra.mxu0 0.0
    %2460 = vmatprep.subr.mxu0 0.0
    %2461 = vmatpush1.msra.mxu0 0.0
    %2462 = vmatprep.subr.mxu0 0.0
    %2463 = vmatpush1.msra.mxu0 0.0
    %2464 = vmatprep.subr.mxu0 0.0
    %2465 = vmatpush1.msra.mxu0 0.0
    %2466 = vmatprep.subr.mxu0 0.0
    %2467 = vmatpush1.msra.mxu0 0.0
    %2468 = vmatprep.subr.mxu0 0.0
    %2469 = vmatpush1.msra.mxu0 0.0
    %2470 = vmatprep.subr.mxu0 0.0
    %2471 = vmatpush1.msra.mxu0 0.0
    %2472 = vmatprep.subr.mxu0 0.0
    %2473 = vmatpush1.msra.mxu0 0.0
    %2474 = vmatprep.subr.mxu0 0.0
    %2475 = vmatpush1.msra.mxu0 0.0
    %2476 = vmatprep.subr.mxu0 0.0
    %2477 = vmatpush1.msra.mxu0 0.0
    %2478 = vmatprep.subr.mxu0 0.0
    %2479 = vmatpush1.msra.mxu0 0.0
    %2480 = vmatprep.subr.mxu0 0.0
    %2481 = vmatpush1.msra.mxu0 0.0
    %2482 = vmatprep.mubr.f32.mxu0 0.0
    %2483 = vmatmul.mubr.f32.gmra.mrb[0].mxu0 %v2416
    %v2484 = vpop.f32.mrb[0].mxu0
    %v2485 = vadd.f32 0.0, %v2484
    %v2486 = vpop.f32.mrb[0].mxu0
    %2487 = vdwg.mxu0
    %v2489 = vrot.slane %v2485, 4
    %v2491 = vadd.f32 %v2412, %v2489
    %v2492 = vxor.u32 %v2491, 2147483648
    %v2493 = vmul.f32 %v2492, 1.442695
    %v2494 = vpow.pop %v2493
    %v2495 = vadd.f32 %v2494, 1.0
    %v2496 = vrcp.pop %v2495
    %v2497 = vmul.f32 1.0, %v2496
    %v2498 = vtanh.pop %v2491
    %v2500 = vrot.slane %v2286, 6
    %v2502 = vmul.f32 %v2497, %v2500
    %2504 = vrot.lane.b32.xlu0 %v2498, 64
    %v2505 = vpop.permute.xlu0 %2504
    %v2507 = vmul.f32 %v2497, %v2505
    %2509 = vrot.lane.b32.xlu0 %v2507, 32
    %v2510 = vpop.permute.xlu0 %2509
    %v2512 = vadd.f32 %v2502, %v2510
    %v2513 = vtanh.pop %v2512
    %2515 = vrot.lane.b32.xlu0 %v2513, 64
    %v2516 = vpop.permute.xlu0 %2515
    %v2518 = vmul.f32 %v2497, %v2516
    %v2519 = vld [vmem:[#allocation2 + $0x18] sm:$0xc]
    %v2520 = vrot.slane %v2399, 4
    %2521 = vrot.lane.b32.xlu0 %v2520, 32
    %v2522 = vpop.permute.xlu0 %2521
    %v2523 = vsel %vm57, %v2522, 0
    %2525 = vmatprep.subr.mxu0 0.0
    %2526 = vmatpush1.msra.mxu0 %v171
    %2527 = vmatprep.subr.mxu0 0.0
    %2528 = vmatpush1.msra.mxu0 %v172
    %2529 = vmatprep.subr.mxu0 0.0
    %2530 = vmatpush1.msra.mxu0 %v173
    %2531 = vmatprep.subr.mxu0 0.0
    %2532 = vmatpush1.msra.mxu0 %v174
    %2533 = vmatprep.subr.mxu0 0.0
    %2534 = vmatpush1.msra.mxu0 0.0
    %2535 = vmatprep.subr.mxu0 0.0
    %2536 = vmatpush1.msra.mxu0 0.0
    %2537 = vmatprep.subr.mxu0 0.0
    %2538 = vmatpush1.msra.mxu0 0.0
    %2539 = vmatprep.subr.mxu0 0.0
    %2540 = vmatpush1.msra.mxu0 0.0
    %2541 = vmatprep.subr.mxu0 0.0
    %2542 = vmatpush1.msra.mxu0 0.0
    %2543 = vmatprep.subr.mxu0 0.0
    %2544 = vmatpush1.msra.mxu0 0.0
    %2545 = vmatprep.subr.mxu0 0.0
    %2546 = vmatpush1.msra.mxu0 0.0
    %2547 = vmatprep.subr.mxu0 0.0
    %2548 = vmatpush1.msra.mxu0 0.0
    %2549 = vmatprep.subr.mxu0 0.0
    %2550 = vmatpush1.msra.mxu0 0.0
    %2551 = vmatprep.subr.mxu0 0.0
    %2552 = vmatpush1.msra.mxu0 0.0
    %2553 = vmatprep.subr.mxu0 0.0
    %2554 = vmatpush1.msra.mxu0 0.0
    %2555 = vmatprep.subr.mxu0 0.0
    %2556 = vmatpush1.msra.mxu0 0.0
    %2557 = vmatprep.subr.mxu0 0.0
    %2558 = vmatpush1.msra.mxu0 0.0
    %2559 = vmatprep.subr.mxu0 0.0
    %2560 = vmatpush1.msra.mxu0 0.0
    %2561 = vmatprep.subr.mxu0 0.0
    %2562 = vmatpush1.msra.mxu0 0.0
    %2563 = vmatprep.subr.mxu0 0.0
    %2564 = vmatpush1.msra.mxu0 0.0
    %2565 = vmatprep.subr.mxu0 0.0
    %2566 = vmatpush1.msra.mxu0 0.0
    %2567 = vmatprep.subr.mxu0 0.0
    %2568 = vmatpush1.msra.mxu0 0.0
    %2569 = vmatprep.subr.mxu0 0.0
    %2570 = vmatpush1.msra.mxu0 0.0
    %2571 = vmatprep.subr.mxu0 0.0
    %2572 = vmatpush1.msra.mxu0 0.0
    %2573 = vmatprep.subr.mxu0 0.0
    %2574 = vmatpush1.msra.mxu0 0.0
    %2575 = vmatprep.subr.mxu0 0.0
    %2576 = vmatpush1.msra.mxu0 0.0
    %2577 = vmatprep.subr.mxu0 0.0
    %2578 = vmatpush1.msra.mxu0 0.0
    %2579 = vmatprep.subr.mxu0 0.0
    %2580 = vmatpush1.msra.mxu0 0.0
    %2581 = vmatprep.subr.mxu0 0.0
    %2582 = vmatpush1.msra.mxu0 0.0
    %2583 = vmatprep.subr.mxu0 0.0
    %2584 = vmatpush1.msra.mxu0 0.0
    %2585 = vmatprep.subr.mxu0 0.0
    %2586 = vmatpush1.msra.mxu0 0.0
    %2587 = vmatprep.subr.mxu0 0.0
    %2588 = vmatpush1.msra.mxu0 0.0
    %2589 = vmatprep.mubr.f32.mxu0 0.0
    %2590 = vmatmul.mubr.f32.gmra.mrb[0].mxu0 %v2523
    %v2591 = vpop.f32.mrb[0].mxu0
    %v2592 = vadd.f32 0.0, %v2591
    %v2593 = vpop.f32.mrb[0].mxu0
    %2594 = vdwg.mxu0
    %v2596 = vrot.slane %v2592, 6
    %v2598 = vadd.f32 %v2519, %v2596
    %v2599 = vxor.u32 %v2598, 2147483648
    %v2600 = vmul.f32 %v2599, 1.442695
    %v2601 = vpow.pop %v2600
    %v2602 = vadd.f32 %v2601, 1.0
    %v2603 = vrcp.pop %v2602
    %v2604 = vmul.f32 1.0, %v2603
    %v2605 = vtanh.pop %v2598
    %v2607 = vrot.slane %v2393, 2
    %v2609 = vmul.f32 %v2604, %v2607
    %2611 = vrot.lane.b32.xlu0 %v2605, 64
    %v2612 = vpop.permute.xlu0 %2611
    %v2614 = vmul.f32 %v2604, %v2612
    %2616 = vrot.lane.b32.xlu0 %v2614, 32
    %v2617 = vpop.permute.xlu0 %2616
    %v2619 = vadd.f32 %v2609, %v2617
    %v2620 = vtanh.pop %v2619
    %2622 = vrot.lane.b32.xlu0 %v2620, 64
    %v2623 = vpop.permute.xlu0 %2622
    %v2625 = vmul.f32 %v2604, %v2623
    %2627 = vrot.lane.b32.xlu0 %v2518, 32
    %v2628 = vpop.permute.xlu0 %2627
    %2630 = vst.msk [vmem:[#allocation3 + $0x6] sm:$0x10] %vm834, %v2628
    %2632 = vrot.lane.b32.xlu0 %v2625, 64
    %v2633 = vpop.permute.xlu0 %2632
    %2635 = vst.msk [vmem:[#allocation3 + $0x3] sm:$0x4] %vm840, %v2633
    %2636 = vst.msk [vmem:[#allocation3 + $0x15] sm:$0x20] %vm842, %v2628
    %2637 = vst.msk [vmem:[#allocation3 + $0x12] sm:$0x8] %vm844, %v2633
    %v2638 = vld [vmem:[#allocation2 + $0x20] sm:$0xc0]
    %v2639 = vrot.slane %v2518, 4
    %2640 = vrot.lane.b32.xlu0 %v2639, 32
    %v2641 = vpop.permute.xlu0 %2640
    %v2642 = vsel %vm57, %v2641, 0
    %2644 = vmatprep.subr.mxu0 0.0
    %2645 = vmatpush1.msra.mxu0 %v167
    %2646 = vmatprep.subr.mxu0 0.0
    %2647 = vmatpush1.msra.mxu0 %v168
    %2648 = vmatprep.subr.mxu0 0.0
    %2649 = vmatpush1.msra.mxu0 %v169
    %2650 = vmatprep.subr.mxu0 0.0
    %2651 = vmatpush1.msra.mxu0 %v170
    %2652 = vmatprep.subr.mxu0 0.0
    %2653 = vmatpush1.msra.mxu0 0.0
    %2654 = vmatprep.subr.mxu0 0.0
    %2655 = vmatpush1.msra.mxu0 0.0
    %2656 = vmatprep.subr.mxu0 0.0
    %2657 = vmatpush1.msra.mxu0 0.0
    %2658 = vmatprep.subr.mxu0 0.0
    %2659 = vmatpush1.msra.mxu0 0.0
    %2660 = vmatprep.subr.mxu0 0.0
    %2661 = vmatpush1.msra.mxu0 0.0
    %2662 = vmatprep.subr.mxu0 0.0
    %2663 = vmatpush1.msra.mxu0 0.0
    %2664 = vmatprep.subr.mxu0 0.0
    %2665 = vmatpush1.msra.mxu0 0.0
    %2666 = vmatprep.subr.mxu0 0.0
    %2667 = vmatpush1.msra.mxu0 0.0
    %2668 = vmatprep.subr.mxu0 0.0
    %2669 = vmatpush1.msra.mxu0 0.0
    %2670 = vmatprep.subr.mxu0 0.0
    %2671 = vmatpush1.msra.mxu0 0.0
    %2672 = vmatprep.subr.mxu0 0.0
    %2673 = vmatpush1.msra.mxu0 0.0
    %2674 = vmatprep.subr.mxu0 0.0
    %2675 = vmatpush1.msra.mxu0 0.0
    %2676 = vmatprep.subr.mxu0 0.0
    %2677 = vmatpush1.msra.mxu0 0.0
    %2678 = vmatprep.subr.mxu0 0.0
    %2679 = vmatpush1.msra.mxu0 0.0
    %2680 = vmatprep.subr.mxu0 0.0
    %2681 = vmatpush1.msra.mxu0 0.0
    %2682 = vmatprep.subr.mxu0 0.0
    %2683 = vmatpush1.msra.mxu0 0.0
    %2684 = vmatprep.subr.mxu0 0.0
    %2685 = vmatpush1.msra.mxu0 0.0
    %2686 = vmatprep.subr.mxu0 0.0
    %2687 = vmatpush1.msra.mxu0 0.0
    %2688 = vmatprep.subr.mxu0 0.0
    %2689 = vmatpush1.msra.mxu0 0.0
    %2690 = vmatprep.subr.mxu0 0.0
    %2691 = vmatpush1.msra.mxu0 0.0
    %2692 = vmatprep.subr.mxu0 0.0
    %2693 = vmatpush1.msra.mxu0 0.0
    %2694 = vmatprep.subr.mxu0 0.0
    %2695 = vmatpush1.msra.mxu0 0.0
    %2696 = vmatprep.subr.mxu0 0.0
    %2697 = vmatpush1.msra.mxu0 0.0
    %2698 = vmatprep.subr.mxu0 0.0
    %2699 = vmatpush1.msra.mxu0 0.0
    %2700 = vmatprep.subr.mxu0 0.0
    %2701 = vmatpush1.msra.mxu0 0.0
    %2702 = vmatprep.subr.mxu0 0.0
    %2703 = vmatpush1.msra.mxu0 0.0
    %2704 = vmatprep.subr.mxu0 0.0
    %2705 = vmatpush1.msra.mxu0 0.0
    %2706 = vmatprep.subr.mxu0 0.0
    %2707 = vmatpush1.msra.mxu0 0.0
    %2708 = vmatprep.mubr.f32.mxu0 0.0
    %2709 = vmatmul.mubr.f32.gmra.mrb[0].mxu0 %v2642
    %v2710 = vpop.f32.mrb[0].mxu0
    %v2711 = vadd.f32 0.0, %v2710
    %v2712 = vpop.f32.mrb[0].mxu0
    %2713 = vdwg.mxu0
    %v2715 = vrot.slane %v2711, 2
    %v2717 = vadd.f32 %v2638, %v2715
    %v2718 = vxor.u32 %v2717, 2147483648
    %v2719 = vmul.f32 %v2718, 1.442695
    %v2720 = vpow.pop %v2719
    %v2721 = vadd.f32 %v2720, 1.0
    %v2722 = vrcp.pop %v2721
    %v2723 = vmul.f32 1.0, %v2722
    %v2724 = vtanh.pop %v2717
    %v2726 = vrot.slane %v2512, 6
    %v2728 = vmul.f32 %v2723, %v2726
    %2730 = vrot.lane.b32.xlu0 %v2724, 64
    %v2731 = vpop.permute.xlu0 %2730
    %v2733 = vmul.f32 %v2723, %v2731
    %2735 = vrot.lane.b32.xlu0 %v2733, 32
    %v2736 = vpop.permute.xlu0 %2735
    %v2738 = vadd.f32 %v2728, %v2736
    %v2739 = vtanh.pop %v2738
    %2741 = vrot.lane.b32.xlu0 %v2739, 64
    %v2742 = vpop.permute.xlu0 %2741
    %v2744 = vmul.f32 %v2723, %v2742
    %v2745 = vld [vmem:[#allocation2 + $0x18] sm:$0x3]
    %v2746 = vrot.slane %v2625, 2
    %2747 = vrot.lane.b32.xlu0 %v2746, 32
    %v2748 = vpop.permute.xlu0 %2747
    %v2749 = vsel %vm57, %v2748, 0
    %2751 = vmatprep.subr.mxu0 0.0
    %2752 = vmatpush1.msra.mxu0 %v171
    %2753 = vmatprep.subr.mxu0 0.0
    %2754 = vmatpush1.msra.mxu0 %v172
    %2755 = vmatprep.subr.mxu0 0.0
    %2756 = vmatpush1.msra.mxu0 %v173
    %2757 = vmatprep.subr.mxu0 0.0
    %2758 = vmatpush1.msra.mxu0 %v174
    %2759 = vmatprep.subr.mxu0 0.0
    %2760 = vmatpush1.msra.mxu0 0.0
    %2761 = vmatprep.subr.mxu0 0.0
    %2762 = vmatpush1.msra.mxu0 0.0
    %2763 = vmatprep.subr.mxu0 0.0
    %2764 = vmatpush1.msra.mxu0 0.0
    %2765 = vmatprep.subr.mxu0 0.0
    %2766 = vmatpush1.msra.mxu0 0.0
    %2767 = vmatprep.subr.mxu0 0.0
    %2768 = vmatpush1.msra.mxu0 0.0
    %2769 = vmatprep.subr.mxu0 0.0
    %2770 = vmatpush1.msra.mxu0 0.0
    %2771 = vmatprep.subr.mxu0 0.0
    %2772 = vmatpush1.msra.mxu0 0.0
    %2773 = vmatprep.subr.mxu0 0.0
    %2774 = vmatpush1.msra.mxu0 0.0
    %2775 = vmatprep.subr.mxu0 0.0
    %2776 = vmatpush1.msra.mxu0 0.0
    %2777 = vmatprep.subr.mxu0 0.0
    %2778 = vmatpush1.msra.mxu0 0.0
    %2779 = vmatprep.subr.mxu0 0.0
    %2780 = vmatpush1.msra.mxu0 0.0
    %2781 = vmatprep.subr.mxu0 0.0
    %2782 = vmatpush1.msra.mxu0 0.0
    %2783 = vmatprep.subr.mxu0 0.0
    %2784 = vmatpush1.msra.mxu0 0.0
    %2785 = vmatprep.subr.mxu0 0.0
    %2786 = vmatpush1.msra.mxu0 0.0
    %2787 = vmatprep.subr.mxu0 0.0
    %2788 = vmatpush1.msra.mxu0 0.0
    %2789 = vmatprep.subr.mxu0 0.0
    %2790 = vmatpush1.msra.mxu0 0.0
    %2791 = vmatprep.subr.mxu0 0.0
    %2792 = vmatpush1.msra.mxu0 0.0
    %2793 = vmatprep.subr.mxu0 0.0
    %2794 = vmatpush1.msra.mxu0 0.0
    %2795 = vmatprep.subr.mxu0 0.0
    %2796 = vmatpush1.msra.mxu0 0.0
    %2797 = vmatprep.subr.mxu0 0.0
    %2798 = vmatpush1.msra.mxu0 0.0
    %2799 = vmatprep.subr.mxu0 0.0
    %2800 = vmatpush1.msra.mxu0 0.0
    %2801 = vmatprep.subr.mxu0 0.0
    %2802 = vmatpush1.msra.mxu0 0.0
    %2803 = vmatprep.subr.mxu0 0.0
    %2804 = vmatpush1.msra.mxu0 0.0
    %2805 = vmatprep.subr.mxu0 0.0
    %2806 = vmatpush1.msra.mxu0 0.0
    %2807 = vmatprep.subr.mxu0 0.0
    %2808 = vmatpush1.msra.mxu0 0.0
    %2809 = vmatprep.subr.mxu0 0.0
    %2810 = vmatpush1.msra.mxu0 0.0
    %2811 = vmatprep.subr.mxu0 0.0
    %2812 = vmatpush1.msra.mxu0 0.0
    %2813 = vmatprep.subr.mxu0 0.0
    %2814 = vmatpush1.msra.mxu0 0.0
    %2815 = vmatprep.mubr.f32.mxu0 0.0
    %2816 = vmatmul.mubr.f32.gmra.mrb[0].mxu0 %v2749
    %v2817 = vpop.f32.mrb[0].mxu0
    %v2818 = vadd.f32 0.0, %v2817
    %v2819 = vpop.f32.mrb[0].mxu0
    %2820 = vdwg.mxu0
    %v2821 = vadd.f32 %v2745, %v2818
    %v2822 = vxor.u32 %v2821, 2147483648
    %v2823 = vmul.f32 %v2822, 1.442695
    %v2824 = vpow.pop %v2823
    %v2825 = vadd.f32 %v2824, 1.0
    %v2826 = vrcp.pop %v2825
    %v2827 = vmul.f32 1.0, %v2826
    %v2828 = vtanh.pop %v2821
    %v2830 = vrot.slane %v2619, 2
    %v2832 = vmul.f32 %v2827, %v2830
    %2834 = vrot.lane.b32.xlu0 %v2828, 64
    %v2835 = vpop.permute.xlu0 %2834
    %v2837 = vmul.f32 %v2827, %v2835
    %2839 = vrot.lane.b32.xlu0 %v2837, 32
    %v2840 = vpop.permute.xlu0 %2839
    %v2842 = vadd.f32 %v2832, %v2840
    %v2843 = vtanh.pop %v2842
    %2845 = vrot.lane.b32.xlu0 %v2843, 64
    %v2846 = vpop.permute.xlu0 %2845
    %v2848 = vmul.f32 %v2827, %v2846
    %2850 = vrot.lane.b32.xlu0 %v2744, 32
    %v2851 = vpop.permute.xlu0 %2850
    %2853 = vst.msk [vmem:[#allocation3 + $0x5] sm:$0x40] %vm1061, %v2851
    %2855 = vrot.lane.b32.xlu0 %v2848, 64
    %v2856 = vpop.permute.xlu0 %2855
    %2858 = vst.msk [vmem:[#allocation3 + $0x4] sm:$0x1] %vm1067, %v2856
    %2859 = vst.msk [vmem:[#allocation3 + $0x14] sm:$0x80] %vm1069, %v2851
    %2860 = vst.msk [vmem:[#allocation3 + $0x13] sm:$0x2] %vm1071, %v2856
    %v2861 = vld [vmem:[#allocation2 + $0x30] sm:$0x3]
    %v2862 = vrot.slane %v2744, 6
    %2863 = vrot.lane.b32.xlu0 %v2862, 32
    %v2864 = vpop.permute.xlu0 %2863
    %v2865 = vsel %vm57, %v2864, 0
    %2867 = vmatprep.subr.mxu0 0.0
    %2868 = vmatpush1.msra.mxu0 %v167
    %2869 = vmatprep.subr.mxu0 0.0
    %2870 = vmatpush1.msra.mxu0 %v168
    %2871 = vmatprep.subr.mxu0 0.0
    %2872 = vmatpush1.msra.mxu0 %v169
    %2873 = vmatprep.subr.mxu0 0.0
    %2874 = vmatpush1.msra.mxu0 %v170
    %2875 = vmatprep.subr.mxu0 0.0
    %2876 = vmatpush1.msra.mxu0 0.0
    %2877 = vmatprep.subr.mxu0 0.0
    %2878 = vmatpush1.msra.mxu0 0.0
    %2879 = vmatprep.subr.mxu0 0.0
    %2880 = vmatpush1.msra.mxu0 0.0
    %2881 = vmatprep.subr.mxu0 0.0
    %2882 = vmatpush1.msra.mxu0 0.0
    %2883 = vmatprep.subr.mxu0 0.0
    %2884 = vmatpush1.msra.mxu0 0.0
    %2885 = vmatprep.subr.mxu0 0.0
    %2886 = vmatpush1.msra.mxu0 0.0
    %2887 = vmatprep.subr.mxu0 0.0
    %2888 = vmatpush1.msra.mxu0 0.0
    %2889 = vmatprep.subr.mxu0 0.0
    %2890 = vmatpush1.msra.mxu0 0.0
    %2891 = vmatprep.subr.mxu0 0.0
    %2892 = vmatpush1.msra.mxu0 0.0
    %2893 = vmatprep.subr.mxu0 0.0
    %2894 = vmatpush1.msra.mxu0 0.0
    %2895 = vmatprep.subr.mxu0 0.0
    %2896 = vmatpush1.msra.mxu0 0.0
    %2897 = vmatprep.subr.mxu0 0.0
    %2898 = vmatpush1.msra.mxu0 0.0
    %2899 = vmatprep.subr.mxu0 0.0
    %2900 = vmatpush1.msra.mxu0 0.0
    %2901 = vmatprep.subr.mxu0 0.0
    %2902 = vmatpush1.msra.mxu0 0.0
    %2903 = vmatprep.subr.mxu0 0.0
    %2904 = vmatpush1.msra.mxu0 0.0
    %2905 = vmatprep.subr.mxu0 0.0
    %2906 = vmatpush1.msra.mxu0 0.0
    %2907 = vmatprep.subr.mxu0 0.0
    %2908 = vmatpush1.msra.mxu0 0.0
    %2909 = vmatprep.subr.mxu0 0.0
    %2910 = vmatpush1.msra.mxu0 0.0
    %2911 = vmatprep.subr.mxu0 0.0
    %2912 = vmatpush1.msra.mxu0 0.0
    %2913 = vmatprep.subr.mxu0 0.0
    %2914 = vmatpush1.msra.mxu0 0.0
    %2915 = vmatprep.subr.mxu0 0.0
    %2916 = vmatpush1.msra.mxu0 0.0
    %2917 = vmatprep.subr.mxu0 0.0
    %2918 = vmatpush1.msra.mxu0 0.0
    %2919 = vmatprep.subr.mxu0 0.0
    %2920 = vmatpush1.msra.mxu0 0.0
    %2921 = vmatprep.subr.mxu0 0.0
    %2922 = vmatpush1.msra.mxu0 0.0
    %2923 = vmatprep.subr.mxu0 0.0
    %2924 = vmatpush1.msra.mxu0 0.0
    %2925 = vmatprep.subr.mxu0 0.0
    %2926 = vmatpush1.msra.mxu0 0.0
    %2927 = vmatprep.subr.mxu0 0.0
    %2928 = vmatpush1.msra.mxu0 0.0
    %2929 = vmatprep.subr.mxu0 0.0
    %2930 = vmatpush1.msra.mxu0 0.0
    %2931 = vmatprep.mubr.f32.mxu0 0.0
    %2932 = vmatmul.mubr.f32.gmra.mrb[0].mxu0 %v2865
    %v2933 = vpop.f32.mrb[0].mxu0
    %v2934 = vadd.f32 0.0, %v2933
    %v2935 = vpop.f32.mrb[0].mxu0
    %2936 = vdwg.mxu0
    %v2937 = vadd.f32 %v2861, %v2934
    %v2938 = vxor.u32 %v2937, 2147483648
    %v2939 = vmul.f32 %v2938, 1.442695
    %v2940 = vpow.pop %v2939
    %v2941 = vadd.f32 %v2940, 1.0
    %v2942 = vrcp.pop %v2941
    %v2943 = vmul.f32 1.0, %v2942
    %v2944 = vtanh.pop %v2937
    %v2946 = vrot.slane %v2738, 6
    %v2948 = vmul.f32 %v2943, %v2946
    %2950 = vrot.lane.b32.xlu0 %v2944, 64
    %v2951 = vpop.permute.xlu0 %2950
    %v2953 = vmul.f32 %v2943, %v2951
    %2955 = vrot.lane.b32.xlu0 %v2953, 32
    %v2956 = vpop.permute.xlu0 %2955
    %v2958 = vadd.f32 %v2948, %v2956
    %v2959 = vtanh.pop %v2958
    %2961 = vrot.lane.b32.xlu0 %v2959, 64
    %v2962 = vpop.permute.xlu0 %2961
    %v2964 = vmul.f32 %v2943, %v2962
    %v2965 = vld [vmem:[#allocation2 + $0x8] sm:$0xc0]
    %2966 = vrot.lane.b32.xlu0 %v2848, 32
    %v2967 = vpop.permute.xlu0 %2966
    %v2968 = vsel %vm57, %v2967, 0
    %2970 = vmatprep.subr.mxu0 0.0
    %2971 = vmatpush1.msra.mxu0 %v171
    %2972 = vmatprep.subr.mxu0 0.0
    %2973 = vmatpush1.msra.mxu0 %v172
    %2974 = vmatprep.subr.mxu0 0.0
    %2975 = vmatpush1.msra.mxu0 %v173
    %2976 = vmatprep.subr.mxu0 0.0
    %2977 = vmatpush1.msra.mxu0 %v174
    %2978 = vmatprep.subr.mxu0 0.0
    %2979 = vmatpush1.msra.mxu0 0.0
    %2980 = vmatprep.subr.mxu0 0.0
    %2981 = vmatpush1.msra.mxu0 0.0
    %2982 = vmatprep.subr.mxu0 0.0
    %2983 = vmatpush1.msra.mxu0 0.0
    %2984 = vmatprep.subr.mxu0 0.0
    %2985 = vmatpush1.msra.mxu0 0.0
    %2986 = vmatprep.subr.mxu0 0.0
    %2987 = vmatpush1.msra.mxu0 0.0
    %2988 = vmatprep.subr.mxu0 0.0
    %2989 = vmatpush1.msra.mxu0 0.0
    %2990 = vmatprep.subr.mxu0 0.0
    %2991 = vmatpush1.msra.mxu0 0.0
    %2992 = vmatprep.subr.mxu0 0.0
    %2993 = vmatpush1.msra.mxu0 0.0
    %2994 = vmatprep.subr.mxu0 0.0
    %2995 = vmatpush1.msra.mxu0 0.0
    %2996 = vmatprep.subr.mxu0 0.0
    %2997 = vmatpush1.msra.mxu0 0.0
    %2998 = vmatprep.subr.mxu0 0.0
    %2999 = vmatpush1.msra.mxu0 0.0
    %3000 = vmatprep.subr.mxu0 0.0
    %3001 = vmatpush1.msra.mxu0 0.0
    %3002 = vmatprep.subr.mxu0 0.0
    %3003 = vmatpush1.msra.mxu0 0.0
    %3004 = vmatprep.subr.mxu0 0.0
    %3005 = vmatpush1.msra.mxu0 0.0
    %3006 = vmatprep.subr.mxu0 0.0
    %3007 = vmatpush1.msra.mxu0 0.0
    %3008 = vmatprep.subr.mxu0 0.0
    %3009 = vmatpush1.msra.mxu0 0.0
    %3010 = vmatprep.subr.mxu0 0.0
    %3011 = vmatpush1.msra.mxu0 0.0
    %3012 = vmatprep.subr.mxu0 0.0
    %3013 = vmatpush1.msra.mxu0 0.0
    %3014 = vmatprep.subr.mxu0 0.0
    %3015 = vmatpush1.msra.mxu0 0.0
    %3016 = vmatprep.subr.mxu0 0.0
    %3017 = vmatpush1.msra.mxu0 0.0
    %3018 = vmatprep.subr.mxu0 0.0
    %3019 = vmatpush1.msra.mxu0 0.0
    %3020 = vmatprep.subr.mxu0 0.0
    %3021 = vmatpush1.msra.mxu0 0.0
    %3022 = vmatprep.subr.mxu0 0.0
    %3023 = vmatpush1.msra.mxu0 0.0
    %3024 = vmatprep.subr.mxu0 0.0
    %3025 = vmatpush1.msra.mxu0 0.0
    %3026 = vmatprep.subr.mxu0 0.0
    %3027 = vmatpush1.msra.mxu0 0.0
    %3028 = vmatprep.subr.mxu0 0.0
    %3029 = vmatpush1.msra.mxu0 0.0
    %3030 = vmatprep.subr.mxu0 0.0
    %3031 = vmatpush1.msra.mxu0 0.0
    %3032 = vmatprep.subr.mxu0 0.0
    %3033 = vmatpush1.msra.mxu0 0.0
    %3034 = vmatprep.mubr.f32.mxu0 0.0
    %3035 = vmatmul.mubr.f32.gmra.mrb[0].mxu0 %v2968
    %v3036 = vpop.f32.mrb[0].mxu0
    %v3037 = vadd.f32 0.0, %v3036
    %v3038 = vpop.f32.mrb[0].mxu0
    %3039 = vdwg.mxu0
    %v3041 = vrot.slane %v3037, 2
    %v3043 = vadd.f32 %v2965, %v3041
    %v3044 = vxor.u32 %v3043, 2147483648
    %v3045 = vmul.f32 %v3044, 1.442695
    %v3046 = vpow.pop %v3045
    %v3047 = vadd.f32 %v3046, 1.0
    %v3048 = vrcp.pop %v3047
    %v3049 = vmul.f32 1.0, %v3048
    %v3050 = vtanh.pop %v3043
    %v3052 = vrot.slane %v2842, 2
    %v3054 = vmul.f32 %v3049, %v3052
    %3056 = vrot.lane.b32.xlu0 %v3050, 64
    %v3057 = vpop.permute.xlu0 %3056
    %v3059 = vmul.f32 %v3049, %v3057
    %3061 = vrot.lane.b32.xlu0 %v3059, 32
    %v3062 = vpop.permute.xlu0 %3061
    %v3064 = vadd.f32 %v3054, %v3062
    %v3065 = vtanh.pop %v3064
    %3067 = vrot.lane.b32.xlu0 %v3065, 64
    %v3068 = vpop.permute.xlu0 %3067
    %v3070 = vmul.f32 %v3049, %v3068
    %3072 = vrot.lane.b32.xlu0 %v2964, 32
    %v3073 = vpop.permute.xlu0 %3072
    %3075 = vst.msk [vmem:[#allocation3 + $0xc] sm:$0x1] %vm377, %v3073
    %3077 = vrot.lane.b32.xlu0 %v3070, 64
    %v3078 = vpop.permute.xlu0 %3077
    %3080 = vst.msk [vmem:[#allocation3 - $0x3] sm:$0x40] %vm383, %v3078
    %3081 = vst.msk [vmem:[#allocation3 + $0x1b] sm:$0x2] %vm385, %v3073
    %3082 = vst.msk [vmem:[#allocation3 + $0xc] sm:$0x80] %vm387, %v3078
    %v3083 = vld [vmem:[#allocation2 + $0x30] sm:$0xc]
    %v3084 = vsel %vm57, %v3073, 0
    %3086 = vmatprep.subr.mxu0 0.0
    %3087 = vmatpush1.msra.mxu0 %v167
    %3088 = vmatprep.subr.mxu0 0.0
    %3089 = vmatpush1.msra.mxu0 %v168
    %3090 = vmatprep.subr.mxu0 0.0
    %3091 = vmatpush1.msra.mxu0 %v169
    %3092 = vmatprep.subr.mxu0 0.0
    %3093 = vmatpush1.msra.mxu0 %v170
    %3094 = vmatprep.subr.mxu0 0.0
    %3095 = vmatpush1.msra.mxu0 0.0
    %3096 = vmatprep.subr.mxu0 0.0
    %3097 = vmatpush1.msra.mxu0 0.0
    %3098 = vmatprep.subr.mxu0 0.0
    %3099 = vmatpush1.msra.mxu0 0.0
    %3100 = vmatprep.subr.mxu0 0.0
    %3101 = vmatpush1.msra.mxu0 0.0
    %3102 = vmatprep.subr.mxu0 0.0
    %3103 = vmatpush1.msra.mxu0 0.0
    %3104 = vmatprep.subr.mxu0 0.0
    %3105 = vmatpush1.msra.mxu0 0.0
    %3106 = vmatprep.subr.mxu0 0.0
    %3107 = vmatpush1.msra.mxu0 0.0
    %3108 = vmatprep.subr.mxu0 0.0
    %3109 = vmatpush1.msra.mxu0 0.0
    %3110 = vmatprep.subr.mxu0 0.0
    %3111 = vmatpush1.msra.mxu0 0.0
    %3112 = vmatprep.subr.mxu0 0.0
    %3113 = vmatpush1.msra.mxu0 0.0
    %3114 = vmatprep.subr.mxu0 0.0
    %3115 = vmatpush1.msra.mxu0 0.0
    %3116 = vmatprep.subr.mxu0 0.0
    %3117 = vmatpush1.msra.mxu0 0.0
    %3118 = vmatprep.subr.mxu0 0.0
    %3119 = vmatpush1.msra.mxu0 0.0
    %3120 = vmatprep.subr.mxu0 0.0
    %3121 = vmatpush1.msra.mxu0 0.0
    %3122 = vmatprep.subr.mxu0 0.0
    %3123 = vmatpush1.msra.mxu0 0.0
    %3124 = vmatprep.subr.mxu0 0.0
    %3125 = vmatpush1.msra.mxu0 0.0
    %3126 = vmatprep.subr.mxu0 0.0
    %3127 = vmatpush1.msra.mxu0 0.0
    %3128 = vmatprep.subr.mxu0 0.0
    %3129 = vmatpush1.msra.mxu0 0.0
    %3130 = vmatprep.subr.mxu0 0.0
    %3131 = vmatpush1.msra.mxu0 0.0
    %3132 = vmatprep.subr.mxu0 0.0
    %3133 = vmatpush1.msra.mxu0 0.0
    %3134 = vmatprep.subr.mxu0 0.0
    %3135 = vmatpush1.msra.mxu0 0.0
    %3136 = vmatprep.subr.mxu0 0.0
    %3137 = vmatpush1.msra.mxu0 0.0
    %3138 = vmatprep.subr.mxu0 0.0
    %3139 = vmatpush1.msra.mxu0 0.0
    %3140 = vmatprep.subr.mxu0 0.0
    %3141 = vmatpush1.msra.mxu0 0.0
    %3142 = vmatprep.subr.mxu0 0.0
    %3143 = vmatpush1.msra.mxu0 0.0
    %3144 = vmatprep.subr.mxu0 0.0
    %3145 = vmatpush1.msra.mxu0 0.0
    %3146 = vmatprep.subr.mxu0 0.0
    %3147 = vmatpush1.msra.mxu0 0.0
    %3148 = vmatprep.subr.mxu0 0.0
    %3149 = vmatpush1.msra.mxu0 0.0
    %3150 = vmatprep.mubr.f32.mxu0 0.0
    %3151 = vmatmul.mubr.f32.gmra.mrb[0].mxu0 %v3084
    %v3152 = vpop.f32.mrb[0].mxu0
    %v3153 = vadd.f32 0.0, %v3152
    %v3154 = vpop.f32.mrb[0].mxu0
    %3155 = vdwg.mxu0
    %v3157 = vrot.slane %v3153, 6
    %v3159 = vadd.f32 %v3083, %v3157
    %v3160 = vxor.u32 %v3159, 2147483648
    %v3161 = vmul.f32 %v3160, 1.442695
    %v3162 = vpow.pop %v3161
    %v3163 = vadd.f32 %v3162, 1.0
    %v3164 = vrcp.pop %v3163
    %v3165 = vmul.f32 1.0, %v3164
    %v3166 = vtanh.pop %v3159
    %v3168 = vrot.slane %v2958, 6
    %v3170 = vmul.f32 %v3165, %v3168
    %3172 = vrot.lane.b32.xlu0 %v3166, 64
    %v3173 = vpop.permute.xlu0 %3172
    %v3175 = vmul.f32 %v3165, %v3173
    %3177 = vrot.lane.b32.xlu0 %v3175, 32
    %v3178 = vpop.permute.xlu0 %3177
    %v3180 = vadd.f32 %v3170, %v3178
    %v3181 = vtanh.pop %v3180
    %3183 = vrot.lane.b32.xlu0 %v3181, 64
    %v3184 = vpop.permute.xlu0 %3183
    %v3186 = vmul.f32 %v3165, %v3184
    %v3187 = vld [vmem:[#allocation2 + $0x8] sm:$0x30]
    %v3188 = vrot.slane %v3070, 6
    %3189 = vrot.lane.b32.xlu0 %v3188, 32
    %v3190 = vpop.permute.xlu0 %3189
    %v3191 = vsel %vm57, %v3190, 0
    %3193 = vmatprep.subr.mxu0 0.0
    %3194 = vmatpush1.msra.mxu0 %v171
    %3195 = vmatprep.subr.mxu0 0.0
    %3196 = vmatpush1.msra.mxu0 %v172
    %3197 = vmatprep.subr.mxu0 0.0
    %3198 = vmatpush1.msra.mxu0 %v173
    %3199 = vmatprep.subr.mxu0 0.0
    %3200 = vmatpush1.msra.mxu0 %v174
    %3201 = vmatprep.subr.mxu0 0.0
    %3202 = vmatpush1.msra.mxu0 0.0
    %3203 = vmatprep.subr.mxu0 0.0
    %3204 = vmatpush1.msra.mxu0 0.0
    %3205 = vmatprep.subr.mxu0 0.0
    %3206 = vmatpush1.msra.mxu0 0.0
    %3207 = vmatprep.subr.mxu0 0.0
    %3208 = vmatpush1.msra.mxu0 0.0
    %3209 = vmatprep.subr.mxu0 0.0
    %3210 = vmatpush1.msra.mxu0 0.0
    %3211 = vmatprep.subr.mxu0 0.0
    %3212 = vmatpush1.msra.mxu0 0.0
    %3213 = vmatprep.subr.mxu0 0.0
    %3214 = vmatpush1.msra.mxu0 0.0
    %3215 = vmatprep.subr.mxu0 0.0
    %3216 = vmatpush1.msra.mxu0 0.0
    %3217 = vmatprep.subr.mxu0 0.0
    %3218 = vmatpush1.msra.mxu0 0.0
    %3219 = vmatprep.subr.mxu0 0.0
    %3220 = vmatpush1.msra.mxu0 0.0
    %3221 = vmatprep.subr.mxu0 0.0
    %3222 = vmatpush1.msra.mxu0 0.0
    %3223 = vmatprep.subr.mxu0 0.0
    %3224 = vmatpush1.msra.mxu0 0.0
    %3225 = vmatprep.subr.mxu0 0.0
    %3226 = vmatpush1.msra.mxu0 0.0
    %3227 = vmatprep.subr.mxu0 0.0
    %3228 = vmatpush1.msra.mxu0 0.0
    %3229 = vmatprep.subr.mxu0 0.0
    %3230 = vmatpush1.msra.mxu0 0.0
    %3231 = vmatprep.subr.mxu0 0.0
    %3232 = vmatpush1.msra.mxu0 0.0
    %3233 = vmatprep.subr.mxu0 0.0
    %3234 = vmatpush1.msra.mxu0 0.0
    %3235 = vmatprep.subr.mxu0 0.0
    %3236 = vmatpush1.msra.mxu0 0.0
    %3237 = vmatprep.subr.mxu0 0.0
    %3238 = vmatpush1.msra.mxu0 0.0
    %3239 = vmatprep.subr.mxu0 0.0
    %3240 = vmatpush1.msra.mxu0 0.0
    %3241 = vmatprep.subr.mxu0 0.0
    %3242 = vmatpush1.msra.mxu0 0.0
    %3243 = vmatprep.subr.mxu0 0.0
    %3244 = vmatpush1.msra.mxu0 0.0
    %3245 = vmatprep.subr.mxu0 0.0
    %3246 = vmatpush1.msra.mxu0 0.0
    %3247 = vmatprep.subr.mxu0 0.0
    %3248 = vmatpush1.msra.mxu0 0.0
    %3249 = vmatprep.subr.mxu0 0.0
    %3250 = vmatpush1.msra.mxu0 0.0
    %3251 = vmatprep.subr.mxu0 0.0
    %3252 = vmatpush1.msra.mxu0 0.0
    %3253 = vmatprep.subr.mxu0 0.0
    %3254 = vmatpush1.msra.mxu0 0.0
    %3255 = vmatprep.subr.mxu0 0.0
    %3256 = vmatpush1.msra.mxu0 0.0
    %3257 = vmatprep.mubr.f32.mxu0 0.0
    %3258 = vmatmul.mubr.f32.gmra.mrb[0].mxu0 %v3191
    %v3259 = vpop.f32.mrb[0].mxu0
    %v3260 = vadd.f32 0.0, %v3259
    %v3261 = vpop.f32.mrb[0].mxu0
    %3262 = vdwg.mxu0
    %v3264 = vrot.slane %v3260, 4
    %v3266 = vadd.f32 %v3187, %v3264
    %v3267 = vxor.u32 %v3266, 2147483648
    %v3268 = vmul.f32 %v3267, 1.442695
    %v3269 = vpow.pop %v3268
    %v3270 = vadd.f32 %v3269, 1.0
    %v3271 = vrcp.pop %v3270
    %v3272 = vmul.f32 1.0, %v3271
    %v3273 = vtanh.pop %v3266
    %v3275 = vrot.slane %v3064, 2
    %v3277 = vmul.f32 %v3272, %v3275
    %3279 = vrot.lane.b32.xlu0 %v3273, 64
    %v3280 = vpop.permute.xlu0 %3279
    %v3282 = vmul.f32 %v3272, %v3280
    %3284 = vrot.lane.b32.xlu0 %v3282, 32
    %v3285 = vpop.permute.xlu0 %3284
    %v3287 = vadd.f32 %v3277, %v3285
    %v3288 = vtanh.pop %v3287
    %3290 = vrot.lane.b32.xlu0 %v3288, 64
    %v3291 = vpop.permute.xlu0 %3290
    %v3293 = vmul.f32 %v3272, %v3291
    %3295 = vrot.lane.b32.xlu0 %v3186, 32
    %v3296 = vpop.permute.xlu0 %3295
    %3298 = vst.msk [vmem:[#allocation3 + $0xb] sm:$0x4] %vm604, %v3296
    %3300 = vrot.lane.b32.xlu0 %v3293, 64
    %v3301 = vpop.permute.xlu0 %3300
    %3303 = vst.msk [vmem:[#allocation3 - $0x2] sm:$0x10] %vm610, %v3301
    %3304 = vst.msk [vmem:[#allocation3 + $0x1a] sm:$0x8] %vm612, %v3296
    %3305 = vst.msk [vmem:[#allocation3 + $0xd] sm:$0x20] %vm614, %v3301
    %v3306 = vld [vmem:[#allocation2 + $0x30] sm:$0x30]
    %v3307 = vrot.slane %v3186, 2
    %3308 = vrot.lane.b32.xlu0 %v3307, 32
    %v3309 = vpop.permute.xlu0 %3308
    %v3310 = vsel %vm57, %v3309, 0
    %3312 = vmatprep.subr.mxu0 0.0
    %3313 = vmatpush1.msra.mxu0 %v167
    %3314 = vmatprep.subr.mxu0 0.0
    %3315 = vmatpush1.msra.mxu0 %v168
    %3316 = vmatprep.subr.mxu0 0.0
    %3317 = vmatpush1.msra.mxu0 %v169
    %3318 = vmatprep.subr.mxu0 0.0
    %3319 = vmatpush1.msra.mxu0 %v170
    %3320 = vmatprep.subr.mxu0 0.0
    %3321 = vmatpush1.msra.mxu0 0.0
    %3322 = vmatprep.subr.mxu0 0.0
    %3323 = vmatpush1.msra.mxu0 0.0
    %3324 = vmatprep.subr.mxu0 0.0
    %3325 = vmatpush1.msra.mxu0 0.0
    %3326 = vmatprep.subr.mxu0 0.0
    %3327 = vmatpush1.msra.mxu0 0.0
    %3328 = vmatprep.subr.mxu0 0.0
    %3329 = vmatpush1.msra.mxu0 0.0
    %3330 = vmatprep.subr.mxu0 0.0
    %3331 = vmatpush1.msra.mxu0 0.0
    %3332 = vmatprep.subr.mxu0 0.0
    %3333 = vmatpush1.msra.mxu0 0.0
    %3334 = vmatprep.subr.mxu0 0.0
    %3335 = vmatpush1.msra.mxu0 0.0
    %3336 = vmatprep.subr.mxu0 0.0
    %3337 = vmatpush1.msra.mxu0 0.0
    %3338 = vmatprep.subr.mxu0 0.0
    %3339 = vmatpush1.msra.mxu0 0.0
    %3340 = vmatprep.subr.mxu0 0.0
    %3341 = vmatpush1.msra.mxu0 0.0
    %3342 = vmatprep.subr.mxu0 0.0
    %3343 = vmatpush1.msra.mxu0 0.0
    %3344 = vmatprep.subr.mxu0 0.0
    %3345 = vmatpush1.msra.mxu0 0.0
    %3346 = vmatprep.subr.mxu0 0.0
    %3347 = vmatpush1.msra.mxu0 0.0
    %3348 = vmatprep.subr.mxu0 0.0
    %3349 = vmatpush1.msra.mxu0 0.0
    %3350 = vmatprep.subr.mxu0 0.0
    %3351 = vmatpush1.msra.mxu0 0.0
    %3352 = vmatprep.subr.mxu0 0.0
    %3353 = vmatpush1.msra.mxu0 0.0
    %3354 = vmatprep.subr.mxu0 0.0
    %3355 = vmatpush1.msra.mxu0 0.0
    %3356 = vmatprep.subr.mxu0 0.0
    %3357 = vmatpush1.msra.mxu0 0.0
    %3358 = vmatprep.subr.mxu0 0.0
    %3359 = vmatpush1.msra.mxu0 0.0
    %3360 = vmatprep.subr.mxu0 0.0
    %3361 = vmatpush1.msra.mxu0 0.0
    %3362 = vmatprep.subr.mxu0 0.0
    %3363 = vmatpush1.msra.mxu0 0.0
    %3364 = vmatprep.subr.mxu0 0.0
    %3365 = vmatpush1.msra.mxu0 0.0
    %3366 = vmatprep.subr.mxu0 0.0
    %3367 = vmatpush1.msra.mxu0 0.0
    %3368 = vmatprep.subr.mxu0 0.0
    %3369 = vmatpush1.msra.mxu0 0.0
    %3370 = vmatprep.subr.mxu0 0.0
    %3371 = vmatpush1.msra.mxu0 0.0
    %3372 = vmatprep.subr.mxu0 0.0
    %3373 = vmatpush1.msra.mxu0 0.0
    %3374 = vmatprep.subr.mxu0 0.0
    %3375 = vmatpush1.msra.mxu0 0.0
    %3376 = vmatprep.mubr.f32.mxu0 0.0
    %3377 = vmatmul.mubr.f32.gmra.mrb[0].mxu0 %v3310
    %v3378 = vpop.f32.mrb[0].mxu0
    %v3379 = vadd.f32 0.0, %v3378
    %v3380 = vpop.f32.mrb[0].mxu0
    %3381 = vdwg.mxu0
    %v3383 = vrot.slane %v3379, 4
    %v3385 = vadd.f32 %v3306, %v3383
    %v3386 = vxor.u32 %v3385, 2147483648
    %v3387 = vmul.f32 %v3386, 1.442695
    %v3388 = vpow.pop %v3387
    %v3389 = vadd.f32 %v3388, 1.0
    %v3390 = vrcp.pop %v3389
    %v3391 = vmul.f32 1.0, %v3390
    %v3392 = vtanh.pop %v3385
    %v3394 = vrot.slane %v3180, 6
    %v3396 = vmul.f32 %v3391, %v3394
    %3398 = vrot.lane.b32.xlu0 %v3392, 64
    %v3399 = vpop.permute.xlu0 %3398
    %v3401 = vmul.f32 %v3391, %v3399
    %3403 = vrot.lane.b32.xlu0 %v3401, 32
    %v3404 = vpop.permute.xlu0 %3403
    %v3406 = vadd.f32 %v3396, %v3404
    %v3407 = vtanh.pop %v3406
    %3409 = vrot.lane.b32.xlu0 %v3407, 64
    %v3410 = vpop.permute.xlu0 %3409
    %v3412 = vmul.f32 %v3391, %v3410
    %v3413 = vld [vmem:[#allocation2 + $0x8] sm:$0xc]
    %v3414 = vrot.slane %v3293, 4
    %3415 = vrot.lane.b32.xlu0 %v3414, 32
    %v3416 = vpop.permute.xlu0 %3415
    %v3417 = vsel %vm57, %v3416, 0
    %3419 = vmatprep.subr.mxu0 0.0
    %3420 = vmatpush1.msra.mxu0 %v171
    %3421 = vmatprep.subr.mxu0 0.0
    %3422 = vmatpush1.msra.mxu0 %v172
    %3423 = vmatprep.subr.mxu0 0.0
    %3424 = vmatpush1.msra.mxu0 %v173
    %3425 = vmatprep.subr.mxu0 0.0
    %3426 = vmatpush1.msra.mxu0 %v174
    %3427 = vmatprep.subr.mxu0 0.0
    %3428 = vmatpush1.msra.mxu0 0.0
    %3429 = vmatprep.subr.mxu0 0.0
    %3430 = vmatpush1.msra.mxu0 0.0
    %3431 = vmatprep.subr.mxu0 0.0
    %3432 = vmatpush1.msra.mxu0 0.0
    %3433 = vmatprep.subr.mxu0 0.0
    %3434 = vmatpush1.msra.mxu0 0.0
    %3435 = vmatprep.subr.mxu0 0.0
    %3436 = vmatpush1.msra.mxu0 0.0
    %3437 = vmatprep.subr.mxu0 0.0
    %3438 = vmatpush1.msra.mxu0 0.0
    %3439 = vmatprep.subr.mxu0 0.0
    %3440 = vmatpush1.msra.mxu0 0.0
    %3441 = vmatprep.subr.mxu0 0.0
    %3442 = vmatpush1.msra.mxu0 0.0
    %3443 = vmatprep.subr.mxu0 0.0
    %3444 = vmatpush1.msra.mxu0 0.0
    %3445 = vmatprep.subr.mxu0 0.0
    %3446 = vmatpush1.msra.mxu0 0.0
    %3447 = vmatprep.subr.mxu0 0.0
    %3448 = vmatpush1.msra.mxu0 0.0
    %3449 = vmatprep.subr.mxu0 0.0
    %3450 = vmatpush1.msra.mxu0 0.0
    %3451 = vmatprep.subr.mxu0 0.0
    %3452 = vmatpush1.msra.mxu0 0.0
    %3453 = vmatprep.subr.mxu0 0.0
    %3454 = vmatpush1.msra.mxu0 0.0
    %3455 = vmatprep.subr.mxu0 0.0
    %3456 = vmatpush1.msra.mxu0 0.0
    %3457 = vmatprep.subr.mxu0 0.0
    %3458 = vmatpush1.msra.mxu0 0.0
    %3459 = vmatprep.subr.mxu0 0.0
    %3460 = vmatpush1.msra.mxu0 0.0
    %3461 = vmatprep.subr.mxu0 0.0
    %3462 = vmatpush1.msra.mxu0 0.0
    %3463 = vmatprep.subr.mxu0 0.0
    %3464 = vmatpush1.msra.mxu0 0.0
    %3465 = vmatprep.subr.mxu0 0.0
    %3466 = vmatpush1.msra.mxu0 0.0
    %3467 = vmatprep.subr.mxu0 0.0
    %3468 = vmatpush1.msra.mxu0 0.0
    %3469 = vmatprep.subr.mxu0 0.0
    %3470 = vmatpush1.msra.mxu0 0.0
    %3471 = vmatprep.subr.mxu0 0.0
    %3472 = vmatpush1.msra.mxu0 0.0
    %3473 = vmatprep.subr.mxu0 0.0
    %3474 = vmatpush1.msra.mxu0 0.0
    %3475 = vmatprep.subr.mxu0 0.0
    %3476 = vmatpush1.msra.mxu0 0.0
    %3477 = vmatprep.subr.mxu0 0.0
    %3478 = vmatpush1.msra.mxu0 0.0
    %3479 = vmatprep.subr.mxu0 0.0
    %3480 = vmatpush1.msra.mxu0 0.0
    %3481 = vmatprep.subr.mxu0 0.0
    %3482 = vmatpush1.msra.mxu0 0.0
    %3483 = vmatprep.mubr.f32.mxu0 0.0
    %3484 = vmatmul.mubr.f32.gmra.mrb[0].mxu0 %v3417
    %v3485 = vpop.f32.mrb[0].mxu0
    %v3486 = vadd.f32 0.0, %v3485
    %v3487 = vpop.f32.mrb[0].mxu0
    %3488 = vdwg.mxu0
    %v3490 = vrot.slane %v3486, 6
    %v3492 = vadd.f32 %v3413, %v3490
    %v3493 = vxor.u32 %v3492, 2147483648
    %v3494 = vmul.f32 %v3493, 1.442695
    %v3495 = vpow.pop %v3494
    %v3496 = vadd.f32 %v3495, 1.0
    %v3497 = vrcp.pop %v3496
    %v3498 = vmul.f32 1.0, %v3497
    %v3499 = vtanh.pop %v3492
    %v3501 = vrot.slane %v3287, 2
    %v3503 = vmul.f32 %v3498, %v3501
    %3505 = vrot.lane.b32.xlu0 %v3499, 64
    %v3506 = vpop.permute.xlu0 %3505
    %v3508 = vmul.f32 %v3498, %v3506
    %3510 = vrot.lane.b32.xlu0 %v3508, 32
    %v3511 = vpop.permute.xlu0 %3510
    %v3513 = vadd.f32 %v3503, %v3511
    %v3514 = vtanh.pop %v3513
    %3516 = vrot.lane.b32.xlu0 %v3514, 64
    %v3517 = vpop.permute.xlu0 %3516
    %v3519 = vmul.f32 %v3498, %v3517
    %3521 = vrot.lane.b32.xlu0 %v3412, 32
    %v3522 = vpop.permute.xlu0 %3521
    %3524 = vst.msk [vmem:[#allocation3 + $0xa] sm:$0x10] %vm834, %v3522
    %3526 = vrot.lane.b32.xlu0 %v3519, 64
    %v3527 = vpop.permute.xlu0 %3526
    %3529 = vst.msk [vmem:[#allocation3 - $0x1] sm:$0x4] %vm840, %v3527
    %3530 = vst.msk [vmem:[#allocation3 + $0x19] sm:$0x20] %vm842, %v3522
    %3531 = vst.msk [vmem:[#allocation3 + $0xe] sm:$0x8] %vm844, %v3527
    %v3532 = vld [vmem:[#allocation2 + $0x30] sm:$0xc0]
    %v3533 = vrot.slane %v3412, 4
    %3534 = vrot.lane.b32.xlu0 %v3533, 32
    %v3535 = vpop.permute.xlu0 %3534
    %v3536 = vsel %vm57, %v3535, 0
    %3538 = vmatprep.subr.mxu0 0.0
    %3539 = vmatpush1.msra.mxu0 %v167
    %3540 = vmatprep.subr.mxu0 0.0
    %3541 = vmatpush1.msra.mxu0 %v168
    %3542 = vmatprep.subr.mxu0 0.0
    %3543 = vmatpush1.msra.mxu0 %v169
    %3544 = vmatprep.subr.mxu0 0.0
    %3545 = vmatpush1.msra.mxu0 %v170
    %3546 = vmatprep.subr.mxu0 0.0
    %3547 = vmatpush1.msra.mxu0 0.0
    %3548 = vmatprep.subr.mxu0 0.0
    %3549 = vmatpush1.msra.mxu0 0.0
    %3550 = vmatprep.subr.mxu0 0.0
    %3551 = vmatpush1.msra.mxu0 0.0
    %3552 = vmatprep.subr.mxu0 0.0
    %3553 = vmatpush1.msra.mxu0 0.0
    %3554 = vmatprep.subr.mxu0 0.0
    %3555 = vmatpush1.msra.mxu0 0.0
    %3556 = vmatprep.subr.mxu0 0.0
    %3557 = vmatpush1.msra.mxu0 0.0
    %3558 = vmatprep.subr.mxu0 0.0
    %3559 = vmatpush1.msra.mxu0 0.0
    %3560 = vmatprep.subr.mxu0 0.0
    %3561 = vmatpush1.msra.mxu0 0.0
    %3562 = vmatprep.subr.mxu0 0.0
    %3563 = vmatpush1.msra.mxu0 0.0
    %3564 = vmatprep.subr.mxu0 0.0
    %3565 = vmatpush1.msra.mxu0 0.0
    %3566 = vmatprep.subr.mxu0 0.0
    %3567 = vmatpush1.msra.mxu0 0.0
    %3568 = vmatprep.subr.mxu0 0.0
    %3569 = vmatpush1.msra.mxu0 0.0
    %3570 = vmatprep.subr.mxu0 0.0
    %3571 = vmatpush1.msra.mxu0 0.0
    %3572 = vmatprep.subr.mxu0 0.0
    %3573 = vmatpush1.msra.mxu0 0.0
    %3574 = vmatprep.subr.mxu0 0.0
    %3575 = vmatpush1.msra.mxu0 0.0
    %3576 = vmatprep.subr.mxu0 0.0
    %3577 = vmatpush1.msra.mxu0 0.0
    %3578 = vmatprep.subr.mxu0 0.0
    %3579 = vmatpush1.msra.mxu0 0.0
    %3580 = vmatprep.subr.mxu0 0.0
    %3581 = vmatpush1.msra.mxu0 0.0
    %3582 = vmatprep.subr.mxu0 0.0
    %3583 = vmatpush1.msra.mxu0 0.0
    %3584 = vmatprep.subr.mxu0 0.0
    %3585 = vmatpush1.msra.mxu0 0.0
    %3586 = vmatprep.subr.mxu0 0.0
    %3587 = vmatpush1.msra.mxu0 0.0
    %3588 = vmatprep.subr.mxu0 0.0
    %3589 = vmatpush1.msra.mxu0 0.0
    %3590 = vmatprep.subr.mxu0 0.0
    %3591 = vmatpush1.msra.mxu0 0.0
    %3592 = vmatprep.subr.mxu0 0.0
    %3593 = vmatpush1.msra.mxu0 0.0
    %3594 = vmatprep.subr.mxu0 0.0
    %3595 = vmatpush1.msra.mxu0 0.0
    %3596 = vmatprep.subr.mxu0 0.0
    %3597 = vmatpush1.msra.mxu0 0.0
    %3598 = vmatprep.subr.mxu0 0.0
    %3599 = vmatpush1.msra.mxu0 0.0
    %3600 = vmatprep.subr.mxu0 0.0
    %3601 = vmatpush1.msra.mxu0 0.0
    %3602 = vmatprep.mubr.f32.mxu0 0.0
    %3603 = vmatmul.mubr.f32.gmra.mrb[0].mxu0 %v3536
    %v3604 = vpop.f32.mrb[0].mxu0
    %v3605 = vadd.f32 0.0, %v3604
    %v3606 = vpop.f32.mrb[0].mxu0
    %3607 = vdwg.mxu0
    %v3609 = vrot.slane %v3605, 2
    %v3611 = vadd.f32 %v3532, %v3609
    %v3612 = vxor.u32 %v3611, 2147483648
    %v3613 = vmul.f32 %v3612, 1.442695
    %v3614 = vpow.pop %v3613
    %v3615 = vadd.f32 %v3614, 1.0
    %v3616 = vrcp.pop %v3615
    %v3617 = vmul.f32 1.0, %v3616
    %v3618 = vtanh.pop %v3611
    %v3620 = vrot.slane %v3406, 6
    %v3622 = vmul.f32 %v3617, %v3620
    %3624 = vrot.lane.b32.xlu0 %v3618, 64
    %v3625 = vpop.permute.xlu0 %3624
    %v3627 = vmul.f32 %v3617, %v3625
    %3629 = vrot.lane.b32.xlu0 %v3627, 32
    %v3630 = vpop.permute.xlu0 %3629
    %v3632 = vadd.f32 %v3622, %v3630
    %v3633 = vtanh.pop %v3632
    %3635 = vrot.lane.b32.xlu0 %v3633, 64
    %v3636 = vpop.permute.xlu0 %3635
    %v3638 = vmul.f32 %v3617, %v3636
    %v3639 = vld [vmem:[#allocation2 + $0x8] sm:$0x3]
    %v3640 = vrot.slane %v3519, 2
    %3641 = vrot.lane.b32.xlu0 %v3640, 32
    %v3642 = vpop.permute.xlu0 %3641
    %v3643 = vsel %vm57, %v3642, 0
    %3645 = vmatprep.subr.mxu0 0.0
    %3646 = vmatpush1.msra.mxu0 %v171
    %3647 = vmatprep.subr.mxu0 0.0
    %3648 = vmatpush1.msra.mxu0 %v172
    %3649 = vmatprep.subr.mxu0 0.0
    %3650 = vmatpush1.msra.mxu0 %v173
    %3651 = vmatprep.subr.mxu0 0.0
    %3652 = vmatpush1.msra.mxu0 %v174
    %3653 = vmatprep.subr.mxu0 0.0
    %3654 = vmatpush1.msra.mxu0 0.0
    %3655 = vmatprep.subr.mxu0 0.0
    %3656 = vmatpush1.msra.mxu0 0.0
    %3657 = vmatprep.subr.mxu0 0.0
    %3658 = vmatpush1.msra.mxu0 0.0
    %3659 = vmatprep.subr.mxu0 0.0
    %3660 = vmatpush1.msra.mxu0 0.0
    %3661 = vmatprep.subr.mxu0 0.0
    %3662 = vmatpush1.msra.mxu0 0.0
    %3663 = vmatprep.subr.mxu0 0.0
    %3664 = vmatpush1.msra.mxu0 0.0
    %3665 = vmatprep.subr.mxu0 0.0
    %3666 = vmatpush1.msra.mxu0 0.0
    %3667 = vmatprep.subr.mxu0 0.0
    %3668 = vmatpush1.msra.mxu0 0.0
    %3669 = vmatprep.subr.mxu0 0.0
    %3670 = vmatpush1.msra.mxu0 0.0
    %3671 = vmatprep.subr.mxu0 0.0
    %3672 = vmatpush1.msra.mxu0 0.0
    %3673 = vmatprep.subr.mxu0 0.0
    %3674 = vmatpush1.msra.mxu0 0.0
    %3675 = vmatprep.subr.mxu0 0.0
    %3676 = vmatpush1.msra.mxu0 0.0
    %3677 = vmatprep.subr.mxu0 0.0
    %3678 = vmatpush1.msra.mxu0 0.0
    %3679 = vmatprep.subr.mxu0 0.0
    %3680 = vmatpush1.msra.mxu0 0.0
    %3681 = vmatprep.subr.mxu0 0.0
    %3682 = vmatpush1.msra.mxu0 0.0
    %3683 = vmatprep.subr.mxu0 0.0
    %3684 = vmatpush1.msra.mxu0 0.0
    %3685 = vmatprep.subr.mxu0 0.0
    %3686 = vmatpush1.msra.mxu0 0.0
    %3687 = vmatprep.subr.mxu0 0.0
    %3688 = vmatpush1.msra.mxu0 0.0
    %3689 = vmatprep.subr.mxu0 0.0
    %3690 = vmatpush1.msra.mxu0 0.0
    %3691 = vmatprep.subr.mxu0 0.0
    %3692 = vmatpush1.msra.mxu0 0.0
    %3693 = vmatprep.subr.mxu0 0.0
    %3694 = vmatpush1.msra.mxu0 0.0
    %3695 = vmatprep.subr.mxu0 0.0
    %3696 = vmatpush1.msra.mxu0 0.0
    %3697 = vmatprep.subr.mxu0 0.0
    %3698 = vmatpush1.msra.mxu0 0.0
    %3699 = vmatprep.subr.mxu0 0.0
    %3700 = vmatpush1.msra.mxu0 0.0
    %3701 = vmatprep.subr.mxu0 0.0
    %3702 = vmatpush1.msra.mxu0 0.0
    %3703 = vmatprep.subr.mxu0 0.0
    %3704 = vmatpush1.msra.mxu0 0.0
    %3705 = vmatprep.subr.mxu0 0.0
    %3706 = vmatpush1.msra.mxu0 0.0
    %3707 = vmatprep.subr.mxu0 0.0
    %3708 = vmatpush1.msra.mxu0 0.0
    %3709 = vmatprep.mubr.f32.mxu0 0.0
    %3710 = vmatmul.mubr.f32.gmra.mrb[0].mxu0 %v3643
    %v3711 = vpop.f32.mrb[0].mxu0
    %v3712 = vadd.f32 0.0, %v3711
    %v3713 = vpop.f32.mrb[0].mxu0
    %3714 = vdwg.mxu0
    %v3715 = vadd.f32 %v3639, %v3712
    %v3716 = vxor.u32 %v3715, 2147483648
    %v3717 = vmul.f32 %v3716, 1.442695
    %v3718 = vpow.pop %v3717
    %v3719 = vadd.f32 %v3718, 1.0
    %v3720 = vrcp.pop %v3719
    %v3721 = vmul.f32 1.0, %v3720
    %v3722 = vtanh.pop %v3715
    %v3724 = vrot.slane %v3513, 2
    %v3726 = vmul.f32 %v3721, %v3724
    %3728 = vrot.lane.b32.xlu0 %v3722, 64
    %v3729 = vpop.permute.xlu0 %3728
    %v3731 = vmul.f32 %v3721, %v3729
    %3733 = vrot.lane.b32.xlu0 %v3731, 32
    %v3734 = vpop.permute.xlu0 %3733
    %v3736 = vadd.f32 %v3726, %v3734
    %v3737 = vtanh.pop %v3736
    %3739 = vrot.lane.b32.xlu0 %v3737, 64
    %v3740 = vpop.permute.xlu0 %3739
    %v3742 = vmul.f32 %v3721, %v3740
    %3744 = vrot.lane.b32.xlu0 %v3638, 32
    %v3745 = vpop.permute.xlu0 %3744
    %3747 = vst.msk [vmem:[#allocation3 + $0x9] sm:$0x40] %vm1061, %v3745
    %3749 = vrot.lane.b32.xlu0 %v3742, 64
    %v3750 = vpop.permute.xlu0 %3749
    %3752 = vst.msk [vmem:[#allocation3] sm:$0x1] %vm1067, %v3750
    %3753 = vst.msk [vmem:[#allocation3 + $0x18] sm:$0x80] %vm1069, %v3745
    %3754 = vst.msk [vmem:[#allocation3 + $0xf] sm:$0x2] %vm1071, %v3750
    %v3755 = vld [vmem:[#allocation3] sm:$0xff]
    %v3756 = vld [vmem:[#allocation3 + $0x8] sm:$0xff]
    %v3757 = vld [vmem:[#allocation3 + $0x10] sm:$0xff]
    %v3758 = vld [vmem:[#allocation3 + $0x18] sm:$0xff]
    %v3759 = vld [vmem:[%s5] sm:$0xff]
    %v3760 = vld [vmem:[%s5 + $0x8] sm:$0xff]
    %v3761 = vld [vmem:[%s5 + $0x10] sm:$0xff]
    %v3762 = vld [vmem:[%s5 + $0x18] sm:$0xff]
    %v3763 = vld [vmem:[%s5 + $0x20] sm:$0xff]
    %v3764 = vld [vmem:[%s5 + $0x28] sm:$0xff]
    %v3765 = vld [vmem:[%s5 + $0x30] sm:$0xff]
    %v3766 = vld [vmem:[%s5 + $0x38] sm:$0xff]
    %vm3767 = vcmask 523264
    %v3769 = vsel %vm3767, %v3755, 0
    %v3772 = vsel %vm3767, %v3756, 0
    %v3775 = vsel %vm3767, %v3757, 0
    %v3778 = vsel %vm3767, %v3758, 0
    %3780 = vmatprep.subr.mxu0 0.0
    %3781 = vmatpush1.msra.mxu0 %v3759
    %3782 = vmatprep.subr.mxu0 0.0
    %3783 = vmatpush1.msra.mxu0 %v3760
    %3784 = vmatprep.subr.mxu0 0.0
    %3785 = vmatpush1.msra.mxu0 %v3761
    %3786 = vmatprep.subr.mxu0 0.0
    %3787 = vmatpush1.msra.mxu0 %v3762
    %3788 = vmatprep.subr.mxu0 0.0
    %3789 = vmatpush1.msra.mxu0 %v3763
    %3790 = vmatprep.subr.mxu0 0.0
    %3791 = vmatpush1.msra.mxu0 %v3764
    %3792 = vmatprep.subr.mxu0 0.0
    %3793 = vmatpush1.msra.mxu0 %v3765
    %3794 = vmatprep.subr.mxu0 0.0
    %3795 = vmatpush1.msra.mxu0 %v3766
    %3796 = vmatprep.subr.mxu0 0.0
    %3797 = vmatpush1.msra.mxu0 0.0
    %3798 = vmatprep.subr.mxu0 0.0
    %3799 = vmatpush1.msra.mxu0 0.0
    %3800 = vmatprep.subr.mxu0 0.0
    %3801 = vmatpush1.msra.mxu0 0.0
    %3802 = vmatprep.subr.mxu0 0.0
    %3803 = vmatpush1.msra.mxu0 0.0
    %3804 = vmatprep.subr.mxu0 0.0
    %3805 = vmatpush1.msra.mxu0 0.0
    %3806 = vmatprep.subr.mxu0 0.0
    %3807 = vmatpush1.msra.mxu0 0.0
    %3808 = vmatprep.subr.mxu0 0.0
    %3809 = vmatpush1.msra.mxu0 0.0
    %3810 = vmatprep.subr.mxu0 0.0
    %3811 = vmatpush1.msra.mxu0 0.0
    %3812 = vmatprep.subr.mxu0 0.0
    %3813 = vmatpush1.msra.mxu0 0.0
    %3814 = vmatprep.subr.mxu0 0.0
    %3815 = vmatpush1.msra.mxu0 0.0
    %3816 = vmatprep.subr.mxu0 0.0
    %3817 = vmatpush1.msra.mxu0 0.0
    %3818 = vmatprep.subr.mxu0 0.0
    %3819 = vmatpush1.msra.mxu0 0.0
    %3820 = vmatprep.subr.mxu0 0.0
    %3821 = vmatpush1.msra.mxu0 0.0
    %3822 = vmatprep.subr.mxu0 0.0
    %3823 = vmatpush1.msra.mxu0 0.0
    %3824 = vmatprep.subr.mxu0 0.0
    %3825 = vmatpush1.msra.mxu0 0.0
    %3826 = vmatprep.subr.mxu0 0.0
    %3827 = vmatpush1.msra.mxu0 0.0
    %3828 = vmatprep.subr.mxu0 0.0
    %3829 = vmatpush1.msra.mxu0 0.0
    %3830 = vmatprep.subr.mxu0 0.0
    %3831 = vmatpush1.msra.mxu0 0.0
    %3832 = vmatprep.subr.mxu0 0.0
    %3833 = vmatpush1.msra.mxu0 0.0
    %3834 = vmatprep.subr.mxu0 0.0
    %3835 = vmatpush1.msra.mxu0 0.0
    %3836 = vmatprep.subr.mxu0 0.0
    %3837 = vmatpush1.msra.mxu0 0.0
    %3838 = vmatprep.subr.mxu0 0.0
    %3839 = vmatpush1.msra.mxu0 0.0
    %3840 = vmatprep.subr.mxu0 0.0
    %3841 = vmatpush1.msra.mxu0 0.0
    %3842 = vmatprep.subr.mxu0 0.0
    %3843 = vmatpush1.msra.mxu0 0.0
    %3844 = vmatprep.mubr.f32.mxu0 0.0
    %3845 = vmatmul.mubr.f32.gmra.mrb[0].mxu0 %v3769
    %v3846 = vpop.f32.mrb[0].mxu0
    %v3847 = vadd.f32 0.0, %v3846
    %v3848 = vpop.f32.mrb[0].mxu0
    %3849 = vmatprep.mubr.f32.mxu0 0.0
    %3850 = vmatmul.mubr.f32.gmra.mrb[0].mxu0 %v3772
    %v3851 = vpop.f32.mrb[0].mxu0
    %v3852 = vadd.f32 0.0, %v3851
    %v3853 = vpop.f32.mrb[0].mxu0
    %3854 = vmatprep.mubr.f32.mxu0 0.0
    %3855 = vmatmul.mubr.f32.gmra.mrb[0].mxu0 %v3775
    %v3856 = vpop.f32.mrb[0].mxu0
    %v3857 = vadd.f32 0.0, %v3856
    %v3858 = vpop.f32.mrb[0].mxu0
    %3859 = vmatprep.mubr.f32.mxu0 0.0
    %3860 = vmatmul.mubr.f32.gmra.mrb[0].mxu0 %v3778
    %v3861 = vpop.f32.mrb[0].mxu0
    %v3862 = vadd.f32 0.0, %v3861
    %v3863 = vpop.f32.mrb[0].mxu0
    %3864 = vdwg.mxu0
    %v3865 = vtanh.pop %v3847
    %v3866 = vtanh.pop %v3852
    %v3867 = vtanh.pop %v3857
    %v3868 = vtanh.pop %v3862
    %v3869 = vld [vmem:[%s6] sm:$0x1]
    %v3871 = vlaneseq
    %v3872 = vshrl.u32 %v3871, 7
    %v3873 = vsub.s32 0, %v3872
    %v3874 = vrot.slane %v3869, %v3873
    %v3876 = vmul.f32 %v3865, %v3874
    %v3877 = vmul.f32 %v3866, %v3874
    %v3878 = vmul.f32 %v3867, %v3874
    %v3879 = vmul.f32 %v3868, %v3874
    %v3880 = vsel %vm3767, %v3876, 0.0
    %3881 = vadd.xlane.f32.xlu0 %v3880
    %v3882 = vpop.xlane.xlu0 %3881
    %v3883 = vsel %vm3767, %v3877, 0.0
    %3884 = vadd.xlane.f32.xlu0 %v3883
    %v3885 = vpop.xlane.xlu0 %3884
    %v3886 = vsel %vm3767, %v3878, 0.0
    %3887 = vadd.xlane.f32.xlu0 %v3886
    %v3888 = vpop.xlane.xlu0 %3887
    %v3889 = vsel %vm3767, %v3879, 0.0
    %3890 = vadd.xlane.f32.xlu0 %v3889
    %v3891 = vpop.xlane.xlu0 %3890
    %v3892 = vmax.f32 %v3882, %v3885
    %v3893 = vrot.slane %v3892, 4
    %v3894 = vmax.f32 %v3892, %v3893
    %v3895 = vrot.slane %v3894, 2
    %v3896 = vmax.f32 %v3894, %v3895
    %v3897 = vrot.slane %v3896, 1
    %v3898 = vmax.f32 %v3896, %v3897
    %v3899 = vsub.f32 %v3882, %v3898
    %v3900 = vsub.f32 %v3885, %v3898
    %v3901 = vmul.f32 %v3899, 1.442695
    %v3902 = vpow.pop %v3901
    %v3903 = vmul.f32 %v3900, 1.442695
    %v3904 = vpow.pop %v3903
    %v3905 = vadd.f32 %v3902, %v3904
    %v3906 = vrot.slane %v3905, 4
    %v3907 = vadd.f32 %v3905, %v3906
    %v3908 = vrot.slane %v3907, 2
    %v3909 = vadd.f32 %v3907, %v3908
    %v3910 = vrot.slane %v3909, 1
    %v3911 = vadd.f32 %v3909, %v3910
    %v3912 = vrcp.pop %v3911
    %v3913 = vmul.f32 %v3902, %v3912
    %v3914 = vmul.f32 %v3904, %v3912
    %v3915 = vmul.f32 %v3755, %v3913
    %v3916 = vmul.f32 %v3756, %v3914
    %v3917 = vsel %vm3767, %v3915, 0.0
    %v3918 = vsel %vm3767, %v3916, 0.0
    %v3919 = vadd.f32 %v3917, %v3918
    %v3920 = vrot.slane %v3919, 4
    %v3921 = vadd.f32 %v3919, %v3920
    %v3922 = vrot.slane %v3921, 2
    %v3923 = vadd.f32 %v3921, %v3922
    %v3924 = vrot.slane %v3923, 1
    %v3925 = vadd.f32 %v3923, %v3924
    %v3926 = vmax.f32 %v3888, %v3891
    %v3927 = vrot.slane %v3926, 4
    %v3928 = vmax.f32 %v3926, %v3927
    %v3929 = vrot.slane %v3928, 2
    %v3930 = vmax.f32 %v3928, %v3929
    %v3931 = vrot.slane %v3930, 1
    %v3932 = vmax.f32 %v3930, %v3931
    %v3933 = vsub.f32 %v3888, %v3932
    %v3934 = vsub.f32 %v3891, %v3932
    %v3935 = vmul.f32 %v3933, 1.442695
    %v3936 = vpow.pop %v3935
    %v3937 = vmul.f32 %v3934, 1.442695
    %v3938 = vpow.pop %v3937
    %v3939 = vadd.f32 %v3936, %v3938
    %v3940 = vrot.slane %v3939, 4
    %v3941 = vadd.f32 %v3939, %v3940
    %v3942 = vrot.slane %v3941, 2
    %v3943 = vadd.f32 %v3941, %v3942
    %v3944 = vrot.slane %v3943, 1
    %v3945 = vadd.f32 %v3943, %v3944
    %v3946 = vrcp.pop %v3945
    %v3947 = vmul.f32 %v3936, %v3946
    %v3948 = vmul.f32 %v3938, %v3946
    %v3949 = vmul.f32 %v3757, %v3947
    %v3950 = vmul.f32 %v3758, %v3948
    %v3951 = vsel %vm3767, %v3949, 0.0
    %v3952 = vsel %vm3767, %v3950, 0.0
    %v3953 = vadd.f32 %v3951, %v3952
    %v3954 = vrot.slane %v3953, 4
    %v3955 = vadd.f32 %v3953, %v3954
    %v3956 = vrot.slane %v3955, 2
    %v3957 = vadd.f32 %v3955, %v3956
    %v3958 = vrot.slane %v3957, 1
    %v3959 = vadd.f32 %v3957, %v3958
    %vm3960 = vcmask 1040384
    %v3961 = vsel %vm3960, %v3925, %v3959
    %v3962 = vld [vmem:[%s7] sm:$0xff]
    %v3963 = vld [vmem:[%s7 + $0x8] sm:$0xff]
    %v3964 = vld [vmem:[%s7 + $0x10] sm:$0xff]
    %v3965 = vld [vmem:[%s7 + $0x18] sm:$0xff]
    %v3966 = vld [vmem:[%s7 + $0x20] sm:$0xff]
    %v3967 = vld [vmem:[%s7 + $0x28] sm:$0xff]
    %v3968 = vld [vmem:[%s7 + $0x30] sm:$0xff]
    %v3969 = vld [vmem:[%s7 + $0x38] sm:$0xff]
    %v3970 = vld [vmem:[%s8] sm:$0x1]
    %v3972 = vlaneseq
    %v3973 = vshrl.u32 %v3972, 7
    %v3974 = vsub.s32 0, %v3973
    %v3975 = vrot.slane %v3970, %v3974
    %v3978 = vsel %vm3767, %v3961, 0
    %3980 = vmatprep.subr.mxu0 0.0
    %3981 = vmatpush1.msra.mxu0 %v3962
    %3982 = vmatprep.subr.mxu0 0.0
    %3983 = vmatpush1.msra.mxu0 %v3963
    %3984 = vmatprep.subr.mxu0 0.0
    %3985 = vmatpush1.msra.mxu0 %v3964
    %3986 = vmatprep.subr.mxu0 0.0
    %3987 = vmatpush1.msra.mxu0 %v3965
    %3988 = vmatprep.subr.mxu0 0.0
    %3989 = vmatpush1.msra.mxu0 %v3966
    %3990 = vmatprep.subr.mxu0 0.0
    %3991 = vmatpush1.msra.mxu0 %v3967
    %3992 = vmatprep.subr.mxu0 0.0
    %3993 = vmatpush1.msra.mxu0 %v3968
    %3994 = vmatprep.subr.mxu0 0.0
    %3995 = vmatpush1.msra.mxu0 %v3969
    %3996 = vmatprep.subr.mxu0 0.0
    %3997 = vmatpush1.msra.mxu0 0.0
    %3998 = vmatprep.subr.mxu0 0.0
    %3999 = vmatpush1.msra.mxu0 0.0
    %4000 = vmatprep.subr.mxu0 0.0
    %4001 = vmatpush1.msra.mxu0 0.0
    %4002 = vmatprep.subr.mxu0 0.0
    %4003 = vmatpush1.msra.mxu0 0.0
    %4004 = vmatprep.subr.mxu0 0.0
    %4005 = vmatpush1.msra.mxu0 0.0
    %4006 = vmatprep.subr.mxu0 0.0
    %4007 = vmatpush1.msra.mxu0 0.0
    %4008 = vmatprep.subr.mxu0 0.0
    %4009 = vmatpush1.msra.mxu0 0.0
    %4010 = vmatprep.subr.mxu0 0.0
    %4011 = vmatpush1.msra.mxu0 0.0
    %4012 = vmatprep.subr.mxu0 0.0
    %4013 = vmatpush1.msra.mxu0 0.0
    %4014 = vmatprep.subr.mxu0 0.0
    %4015 = vmatpush1.msra.mxu0 0.0
    %4016 = vmatprep.subr.mxu0 0.0
    %4017 = vmatpush1.msra.mxu0 0.0
    %4018 = vmatprep.subr.mxu0 0.0
    %4019 = vmatpush1.msra.mxu0 0.0
    %4020 = vmatprep.subr.mxu0 0.0
    %4021 = vmatpush1.msra.mxu0 0.0
    %4022 = vmatprep.subr.mxu0 0.0
    %4023 = vmatpush1.msra.mxu0 0.0
    %4024 = vmatprep.subr.mxu0 0.0
    %4025 = vmatpush1.msra.mxu0 0.0
    %4026 = vmatprep.subr.mxu0 0.0
    %4027 = vmatpush1.msra.mxu0 0.0
    %4028 = vmatprep.subr.mxu0 0.0
    %4029 = vmatpush1.msra.mxu0 0.0
    %4030 = vmatprep.subr.mxu0 0.0
    %4031 = vmatpush1.msra.mxu0 0.0
    %4032 = vmatprep.subr.mxu0 0.0
    %4033 = vmatpush1.msra.mxu0 0.0
    %4034 = vmatprep.subr.mxu0 0.0
    %4035 = vmatpush1.msra.mxu0 0.0
    %4036 = vmatprep.subr.mxu0 0.0
    %4037 = vmatpush1.msra.mxu0 0.0
    %4038 = vmatprep.subr.mxu0 0.0
    %4039 = vmatpush1.msra.mxu0 0.0
    %4040 = vmatprep.subr.mxu0 0.0
    %4041 = vmatpush1.msra.mxu0 0.0
    %4042 = vmatprep.subr.mxu0 0.0
    %4043 = vmatpush1.msra.mxu0 0.0
    %4044 = vmatprep.mubr.f32.mxu0 0.0
    %4045 = vmatmul.mubr.f32.gmra.mrb[0].mxu0 %v3978
    %v4046 = vpop.f32.mrb[0].mxu0
    %v4047 = vadd.f32 %v3975, %v4046
    %v4048 = vpop.f32.mrb[0].mxu0
    %4049 = vdwg.mxu0
    %v4050 = vxor.u32 %v4047, 2147483648
    %v4051 = vmul.f32 %v4050, 1.442695
    %v4052 = vpow.pop %v4051
    %v4053 = vadd.f32 %v4052, 1.0
    %v4054 = vrcp.pop %v4053
    %v4055 = vmul.f32 1.0, %v4054
    %4056 = vst [vmem:[#allocation4] sm:$0x3] %v4055
    // Predicated region
    $region38: #{bilstm_atten_forward.1} parent=1 // pred_check
      _
    $region39: #{bilstm_atten_forward.1} parent=1 // pred_check_branch
      %4058 = sbr.rel (0) target = $region41
    $region40: #{bilstm_atten_forward.1} parent=1 // pred_region
      %s4060 = ssub.s32 32, 32
      %4061 = vsyncadd [#allocation5], %s4060
      %s4063 = sshll.u32 [#allocation4], 4
      %s4064 = int_to_ptr.vmem [resolvable:$true] %s4063
      %4066 = dma.vmem_to_hbm [thread:$0]  %s4064, 32, %s9, [#allocation5]
    $region41: #{bilstm_atten_forward.1} parent=1 // pred_fallthru
      _
    // Predicated region
    $region42: #{bilstm_atten_forward.1} parent=1 // pred_check
      _
    $region43: #{bilstm_atten_forward.1} parent=1 // pred_check_branch
      %4068 = sbr.rel (0) target = $region45
    $region44: #{bilstm_atten_forward.1} parent=1 // pred_region
      %4069 = dma.done [#allocation5], 32
    $region45: #{bilstm_atten_forward.1} parent=1 // pred_fallthru
      _
    %4070 = vsyncpa [#allocation5], 1

</llo_original>
